<compile_context>
chip_gen: v5e
topology: v5e:2x2
jax: 0.10.0
libtpu: 0.0.40
codegen_flags: <defaults>
</compile_context>

<pallas_src>
import functools

import jax
import jax.numpy as jnp
from jax import lax
from jax.experimental import pallas as pl
from jax.experimental.pallas import tpu as pltpu

N_NODES = 64        # protein residues (pro_node_s rows)
D_MODEL = 128       # hidden channels
N_HEADS = 4
HEAD_DIM = D_MODEL // N_HEADS
N_EDGES = 32        # protein-loop cross edges fed to edge_init_layer
EDGE_IN = 6
EDGE_IN_PAD = 8     # pad contraction dim to a sublane multiple
M_ATOMS = 40        # loop atoms for the rmsd reduction
B_BATCH = 2         # graph batch size
LEAKY_SLOPE = 0.01  # PyTorch nn.LeakyReLU default negative_slope

_VMEM = pl.BlockSpec(memory_space=pltpu.MemorySpace.VMEM)
_SMEM = pl.BlockSpec(memory_space=pltpu.MemorySpace.SMEM)


# ----------------------------------------------------------------------------
# Fused kernel: hierarchical fusion + edge_init + cal_rmsd
# ----------------------------------------------------------------------------
def _karma_fused_kernel(
        alpha_ref,                                  # SMEM [1,1] f32
        pro_ref, atom_ref,                          # [N,128] f32
        w1a_ref, w1b_ref, b1_ref,                   # [128,256] bf16 x2, [1,256] f32
        w2_ref, b2_ref,                             # [256,128] bf16, [1,128] f32
        wq_ref, wk_ref, wv_ref,                     # [H,128,32] bf16
        bq_ref, bk_ref, bv_ref,                     # [H,1,32]  f32
        wo_ref, bo_ref,                             # [H,32,128] bf16, [1,128] f32
        edge_ref, ew_ref, eb_ref,                   # [E,8] f32, [8,128] bf16, [1,128] f32
        pred_ref, true_ref, batch_ref,              # [M,3] f32, [M,3] f32, [M,1] i32
        pro_out_ref, edge_out_ref, rmsd_out_ref):   # [N,128] f32, [E,128] f32, [1,B] f32
    f32 = jnp.float32
    bf16 = jnp.bfloat16

    pro = pro_ref[...].astype(bf16)
    atom = atom_ref[...].astype(bf16)
    alpha = alpha_ref[0, 0]
    beta = 1.0 - alpha

    # ---- merge_hierarchical: Linear(256,256) -> Dropout(id) -> LeakyReLU -> Linear(256,128)
    # concat([pro, atom], -1) @ W1.T is computed as two half-matmuls (no concat).
    h = (jnp.dot(pro, w1a_ref[...], preferred_element_type=f32)
         + jnp.dot(atom, w1b_ref[...], preferred_element_type=f32)
         + b1_ref[...])
    h = jnp.where(h > 0, h, LEAKY_SLOPE * h)
    merged = (jnp.dot(h.astype(bf16), w2_ref[...], preferred_element_type=f32)
              + b2_ref[...])
    # Write the scaled merged path immediately -> h / merged die here (small live set).
    pro_out_ref[...] = alpha * merged

    # ---- attn_fusion: MultiheadAttention(128, 4), query=pro, key=value=atom.
    # Per-head weights are pre-split on the host; accumulate (1-alpha)*head@Wo_h into out.
    scale = 1.0 / jnp.sqrt(jnp.float32(HEAD_DIM))
    for hd in range(N_HEADS):
        q = jnp.dot(pro, wq_ref[hd], preferred_element_type=f32) + bq_ref[hd]
        k = jnp.dot(atom, wk_ref[hd], preferred_element_type=f32) + bk_ref[hd]
        v = jnp.dot(atom, wv_ref[hd], preferred_element_type=f32) + bv_ref[hd]
        s = lax.dot_general(q.astype(bf16), k.astype(bf16),
                            dimension_numbers=(((1,), (1,)), ((), ())),
                            preferred_element_type=f32) * scale          # [N,N]
        s = s - jnp.max(s, axis=-1, keepdims=True)
        p = jnp.exp(s)
        p = p * pl.reciprocal(jnp.sum(p, axis=-1, keepdims=True), approx=True)
        head = jnp.dot(p.astype(bf16), v.astype(bf16),
                       preferred_element_type=f32)                        # [N,32]
        pro_out_ref[...] += beta * jnp.dot(head.astype(bf16), wo_ref[hd],
                                           preferred_element_type=f32)
    pro_out_ref[...] += beta * bo_ref[...]

    # ---- edge_init_layer = nn.Linear(6, 128)  (input zero-padded to 8 lanes)
    edge_out_ref[...] = (jnp.dot(edge_ref[...].astype(bf16), ew_ref[...],
                                 preferred_element_type=f32) + eb_ref[...])

    # ---- cal_rmsd = sqrt(scatter_mean(sum((pred - true)^2, -1), batch))  (kept f32)
    d = pred_ref[...] - true_ref[...]                                     # [M,3]
    sq = jnp.sum(d * d, axis=-1, keepdims=True)                           # [M,1]
    bid = batch_ref[...]                                                  # [M,1] i32
    iota = lax.broadcasted_iota(jnp.int32, (bid.shape[0], rmsd_out_ref.shape[1]), 1)
    mask = (bid == iota).astype(f32)                                      # one-hot [M,B]
    sums = jnp.sum(mask * sq, axis=0, keepdims=True)                      # [1,B]
    counts = jnp.sum(mask, axis=0, keepdims=True)                         # [1,B]
    rmsd_out_ref[...] = jnp.sqrt(sums / jnp.maximum(counts, 1.0))


def karma_fused_call(pro_s, atom_s, edge_s_pad, pos_pred, pos_true, batch_ids,
                     kparams, num_batches):
    n = pro_s.shape[0]
    e = edge_s_pad.shape[0]
    out_shapes = (
        jax.ShapeDtypeStruct((n, D_MODEL), jnp.float32),
        jax.ShapeDtypeStruct((e, D_MODEL), jnp.float32),
        jax.ShapeDtypeStruct((1, num_batches), jnp.float32),
    )
    # TODO(synk): with many complexes per step, add a leading "parallel" grid axis
    #             over complexes (dimension_semantics) to use both v7x TensorCores.
    return pl.pallas_call(
        _karma_fused_kernel,
        out_shape=out_shapes,
        in_specs=[_SMEM] + [_VMEM] * 21,
        out_specs=(_VMEM, _VMEM, _VMEM),
    )(kparams["alpha"],
      pro_s, atom_s,
      kparams["w1a_t"], kparams["w1b_t"], kparams["b1"],
      kparams["w2_t"], kparams["b2"],
      kparams["wq_h"], kparams["wk_h"], kparams["wv_h"],
      kparams["bq_h"], kparams["bk_h"], kparams["bv_h"],
      kparams["wo_h"], kparams["bo"],
      edge_s_pad, kparams["edge_w_t"], kparams["edge_b"],
      pos_pred, pos_true, batch_ids)


# ----------------------------------------------------------------------------
# Parameters: PyTorch-layout init + one-time host-side kernel layout prep
# ----------------------------------------------------------------------------
def init_params(key):
    ks = jax.random.split(key, 10)
    s = 0.05
    return {
        "w1": jax.random.normal(ks[0], (256, 2 * D_MODEL), jnp.float32) * s,  # Linear(256,256).weight
        "b1": jax.random.normal(ks[1], (256,), jnp.float32) * s,
        "w2": jax.random.normal(ks[2], (D_MODEL, 256), jnp.float32) * s,      # Linear(256,128).weight
        "b2": jax.random.normal(ks[3], (D_MODEL,), jnp.float32) * s,
        # MultiheadAttention in_proj (q/k/v) + out_proj, PyTorch [out,in] layout
        "wq": jax.random.normal(ks[4], (D_MODEL, D_MODEL), jnp.float32) * s,
        "wk": jax.random.normal(ks[5], (D_MODEL, D_MODEL), jnp.float32) * s,
        "wv": jax.random.normal(ks[6], (D_MODEL, D_MODEL), jnp.float32) * s,
        "wo": jax.random.normal(ks[7], (D_MODEL, D_MODEL), jnp.float32) * s,
        "bq": jnp.zeros((D_MODEL,), jnp.float32),
        "bk": jnp.zeros((D_MODEL,), jnp.float32),
        "bv": jnp.zeros((D_MODEL,), jnp.float32),
        "bo": jnp.zeros((D_MODEL,), jnp.float32),
        # PyTorch inits alpha = 1.0; use 0.7 here so the attention branch is exercised
        # by the test (formula alpha*merged + (1-alpha)*attn is unchanged).
        "alpha": jnp.array(0.7, dtype=jnp.float32),
        # edge_init_layer = nn.Linear(6, 128)
        "edge_w": jax.random.normal(ks[8], (D_MODEL, EDGE_IN), jnp.float32) * s,
        "edge_b": jax.random.normal(ks[9], (D_MODEL,), jnp.float32) * s,
    }


def prepare_kernel_params(p):
    """One-time layout prep so the kernel never transposes weights, slices 32-lane
    head chunks out of a 128-lane vreg, or concatenates heads. bf16 for MXU inputs."""
    bf16 = jnp.bfloat16

    def split_in_proj(w):   # y_h = x @ (W[lo:hi, :]).T  -> stack of [128, 32]
        return jnp.stack([w[h * HEAD_DIM:(h + 1) * HEAD_DIM, :].T
                          for h in range(N_HEADS)], axis=0).astype(bf16)

    def split_bias(b):      # stack of [1, 32]
        return jnp.stack([b[h * HEAD_DIM:(h + 1) * HEAD_DIM].reshape(1, HEAD_DIM)
                          for h in range(N_HEADS)], axis=0)

    wo_h = jnp.stack([p["wo"][:, h * HEAD_DIM:(h + 1) * HEAD_DIM].T
                      for h in range(N_HEADS)], axis=0).astype(bf16)       # [H,32,128]
    edge_w_t = jnp.zeros((EDGE_IN_PAD, D_MODEL), jnp.float32)
    edge_w_t = edge_w_t.at[:EDGE_IN].set(p["edge_w"].T)                    # pad K 6->8

    return {
        "alpha": jnp.reshape(p["alpha"], (1, 1)),
        "w1a_t": p["w1"][:, :D_MODEL].T.astype(bf16),                      # [128,256]
        "w1b_t": p["w1"][:, D_MODEL:].T.astype(bf16),                      # [128,256]
        "b1": p["b1"].reshape(1, 2 * D_MODEL),
        "w2_t": p["w2"].T.astype(bf16),                                    # [256,128]
        "b2": p["b2"].reshape(1, D_MODEL),
        "wq_h": split_in_proj(p["wq"]),
        "wk_h": split_in_proj(p["wk"]),
        "wv_h": split_in_proj(p["wv"]),
        "bq_h": split_bias(p["bq"]),
        "bk_h": split_bias(p["bk"]),
        "bv_h": split_bias(p["bv"]),
        "wo_h": wo_h,
        "bo": p["bo"].reshape(1, D_MODEL),
        "edge_w_t": edge_w_t.astype(bf16),                                 # [8,128]
        "edge_b": p["edge_b"].reshape(1, D_MODEL),
    }


# ----------------------------------------------------------------------------
# Forward wrapper: the pieces of KarmaLoop defined in its own source.
# TODO(synk): GraghTransformer / GVP_embedding / GraphNorm / EGNN / MDN_Block are
#             external submodules with no source; their outputs are modeled as the
#             pro_node_s / proatom_node_s inputs below.
# TODO(synk): sampling_atom_pos / construct_interaction_graph use torch.rand-driven
#             data-dependent masking; not reproduced.
# ----------------------------------------------------------------------------
@functools.partial(jax.jit, static_argnames=("num_batches",))
def karma_loop_forward(pro_node_s, proatom_node_s, edge_s_raw,
                       pos_pred, pos_true, batch_ids, kparams, num_batches):
    edge_pad = jnp.pad(edge_s_raw, ((0, 0), (0, EDGE_IN_PAD - EDGE_IN)))
    pro_fused, edge_feat, rmsd = karma_fused_call(
        pro_node_s, proatom_node_s, edge_pad, pos_pred, pos_true, batch_ids,
        kparams, num_batches)
    rmsd_loss = jnp.mean(rmsd)                 # train=True -> rmsd_losss.mean()
    return rmsd_loss, pro_fused, edge_feat, rmsd


# ----------------------------------------------------------------------------
# Pure-JAX reference (bf16-matched at matmul boundaries) for correctness check
# ----------------------------------------------------------------------------
def reference_forward(pro, atom, edge_raw, pred, true, bid, p, num_batches):
    bf16, f32 = jnp.bfloat16, jnp.float32
    pro_b, atom_b = pro.astype(bf16), atom.astype(bf16)
    x = jnp.concatenate([pro, atom], axis=-1).astype(bf16)
    h = jnp.dot(x, p["w1"].astype(bf16).T, preferred_element_type=f32) + p["b1"]
    h = jnp.where(h > 0, h, LEAKY_SLOPE * h)
    merged = jnp.dot(h.astype(bf16), p["w2"].astype(bf16).T,
                     preferred_element_type=f32) + p["b2"]
    q = jnp.dot(pro_b, p["wq"].astype(bf16).T, preferred_element_type=f32) + p["bq"]
    k = jnp.dot(atom_b, p["wk"].astype(bf16).T, preferred_element_type=f32) + p["bk"]
    v = jnp.dot(atom_b, p["wv"].astype(bf16).T, preferred_element_type=f32) + p["bv"]
    scale = 1.0 / jnp.sqrt(jnp.float32(HEAD_DIM))
    outs = []
    for hd in range(N_HEADS):
        lo, hi = hd * HEAD_DIM, (hd + 1) * HEAD_DIM
        s = jnp.dot(q[:, lo:hi].astype(bf16), k[:, lo:hi].astype(bf16).T,
                    preferred_element_type=f32) * scale
        pm = jax.nn.softmax(s, axis=-1)
        outs.append(jnp.dot(pm.astype(bf16), v[:, lo:hi].astype(bf16),
                            preferred_element_type=f32))
    attn_out = jnp.dot(jnp.concatenate(outs, -1).astype(bf16),
                       p["wo"].astype(bf16).T, preferred_element_type=f32) + p["bo"]
    pro_fused = p["alpha"] * merged + (1.0 - p["alpha"]) * attn_out
    edge_feat = jnp.dot(edge_raw.astype(bf16), p["edge_w"].astype(bf16).T,
                        preferred_element_type=f32) + p["edge_b"]
    sq = jnp.sum((pred - true) ** 2, axis=-1)
    b = bid.reshape(-1)
    sums = jnp.zeros((num_batches,), f32).at[b].add(sq)
    cnts = jnp.zeros((num_batches,), f32).at[b].add(1.0)
    rmsd = jnp.sqrt(sums / jnp.maximum(cnts, 1.0)).reshape(1, num_batches)
    return pro_fused, edge_feat, rmsd


if __name__ == "__main__":
    key = jax.random.PRNGKey(0)
    kp, k1, k2, k3, k4, k5 = jax.random.split(key, 6)

    params = init_params(kp)
    kparams = prepare_kernel_params(params)

    pro_node_s = jax.random.normal(k1, (N_NODES, D_MODEL), jnp.float32)
    proatom_node_s = jax.random.normal(k2, (N_NODES, D_MODEL), jnp.float32)
    edge_s_raw = jax.random.normal(k3, (N_EDGES, EDGE_IN), jnp.float32)
    pos_pred = jax.random.normal(k4, (M_ATOMS, 3), jnp.float32)
    pos_true = pos_pred + 0.1 * jax.random.normal(k5, (M_ATOMS, 3), jnp.float32)
    batch_ids = (jnp.arange(M_ATOMS, dtype=jnp.int32) % B_BATCH).reshape(M_ATOMS, 1)

    rmsd_loss, pro_fused, edge_feat, rmsd = karma_loop_forward(
        pro_node_s, proatom_node_s, edge_s_raw,
        pos_pred, pos_true, batch_ids, kparams, num_batches=B_BATCH)
    jax.block_until_ready((rmsd_loss, pro_fused, edge_feat, rmsd))

    ref_pro, ref_edge, ref_rmsd = reference_forward(
        pro_node_s, proatom_node_s, edge_s_raw, pos_pred, pos_true, batch_ids,
        params, B_BATCH)

    assert pro_fused.shape == (N_NODES, D_MODEL)
    assert edge_feat.shape == (N_EDGES, D_MODEL)
    assert rmsd.shape == (1, B_BATCH)
    assert rmsd_loss.shape == ()
    assert bool(jnp.all(jnp.isfinite(pro_fused)))
    assert bool(jnp.all(jnp.isfinite(edge_feat)))
    assert bool(jnp.isfinite(rmsd_loss))
    assert float(jnp.max(jnp.abs(pro_fused - ref_pro))) < 3e-2
    assert float(jnp.max(jnp.abs(edge_feat - ref_edge))) < 1e-2
    assert float(jnp.max(jnp.abs(rmsd - ref_rmsd))) < 1e-3

    print("KERNEL_OK")
</pallas_src>

<mosaic_0001>
module attributes {stable_mosaic.version = 11 : i64} {
  func.func @_karma_fused_kernel(%arg0: memref<1x1xf32, #tpu.memory_space<smem>>, %arg1: memref<64x128xf32, #tpu.memory_space<vmem>>, %arg2: memref<64x128xf32, #tpu.memory_space<vmem>>, %arg3: memref<128x256xbf16, #tpu.memory_space<vmem>>, %arg4: memref<128x256xbf16, #tpu.memory_space<vmem>>, %arg5: memref<1x256xf32, #tpu.memory_space<vmem>>, %arg6: memref<256x128xbf16, #tpu.memory_space<vmem>>, %arg7: memref<1x128xf32, #tpu.memory_space<vmem>>, %arg8: memref<4x128x32xbf16, #tpu.memory_space<vmem>>, %arg9: memref<4x128x32xbf16, #tpu.memory_space<vmem>>, %arg10: memref<4x128x32xbf16, #tpu.memory_space<vmem>>, %arg11: memref<4x1x32xf32, #tpu.memory_space<vmem>>, %arg12: memref<4x1x32xf32, #tpu.memory_space<vmem>>, %arg13: memref<4x1x32xf32, #tpu.memory_space<vmem>>, %arg14: memref<4x32x128xbf16, #tpu.memory_space<vmem>>, %arg15: memref<1x128xf32, #tpu.memory_space<vmem>>, %arg16: memref<32x8xf32, #tpu.memory_space<vmem>>, %arg17: memref<8x128xbf16, #tpu.memory_space<vmem>>, %arg18: memref<1x128xf32, #tpu.memory_space<vmem>>, %arg19: memref<40x3xf32, #tpu.memory_space<vmem>>, %arg20: memref<40x3xf32, #tpu.memory_space<vmem>>, %arg21: memref<40x1xi32, #tpu.memory_space<vmem>>, %arg22: memref<64x128xf32, #tpu.memory_space<vmem>>, %arg23: memref<32x128xf32, #tpu.memory_space<vmem>>, %arg24: memref<1x2xf32, #tpu.memory_space<vmem>>) attributes {dimension_semantics = [], scalar_prefetch = 0 : i64, scratch_operands = 0 : i64, tpu.core_type = #tpu.core_type<tc>} {
    %c0 = arith.constant 0 : index
    %c0_0 = arith.constant 0 : index
    %0 = vector.load %arg1[%c0, %c0_0] : memref<64x128xf32, #tpu.memory_space<vmem>>, vector<64x128xf32>
    %1 = arith.truncf %0 : vector<64x128xf32> to vector<64x128xbf16>
    %c0_1 = arith.constant 0 : index
    %c0_2 = arith.constant 0 : index
    %2 = vector.load %arg2[%c0_1, %c0_2] : memref<64x128xf32, #tpu.memory_space<vmem>>, vector<64x128xf32>
    %3 = arith.truncf %2 : vector<64x128xf32> to vector<64x128xbf16>
    %c0_3 = arith.constant 0 : index
    %c0_4 = arith.constant 0 : index
    %4 = memref.load %arg0[%c0_3, %c0_4] : memref<1x1xf32, #tpu.memory_space<smem>>
    %cst = arith.constant 1.000000e+00 : f32
    %5 = arith.subf %cst, %4 : f32
    %c0_5 = arith.constant 0 : index
    %c0_6 = arith.constant 0 : index
    %6 = vector.load %arg3[%c0_5, %c0_6] : memref<128x256xbf16, #tpu.memory_space<vmem>>, vector<128x256xbf16>
    %cst_7 = arith.constant dense<0.000000e+00> : vector<64x256xf32>
    %7 = tpu.matmul %1, %6, %cst_7 {dimension_numbers = #tpu.dot_dimension_numbers<[1], [0], [0], [1], [0, 0, 1, 1], [], []>} : vector<64x128xbf16>, vector<128x256xbf16>, vector<64x256xf32> -> vector<64x256xf32>
    %c0_8 = arith.constant 0 : index
    %c0_9 = arith.constant 0 : index
    %8 = vector.load %arg4[%c0_8, %c0_9] : memref<128x256xbf16, #tpu.memory_space<vmem>>, vector<128x256xbf16>
    %cst_10 = arith.constant dense<0.000000e+00> : vector<64x256xf32>
    %9 = tpu.matmul %3, %8, %cst_10 {dimension_numbers = #tpu.dot_dimension_numbers<[1], [0], [0], [1], [0, 0, 1, 1], [], []>} : vector<64x128xbf16>, vector<128x256xbf16>, vector<64x256xf32> -> vector<64x256xf32>
    %10 = arith.addf %7, %9 : vector<64x256xf32>
    %c0_11 = arith.constant 0 : index
    %c0_12 = arith.constant 0 : index
    %11 = vector.load %arg5[%c0_11, %c0_12] : memref<1x256xf32, #tpu.memory_space<vmem>>, vector<1x256xf32>
    %12 = vector.broadcast %11 : vector<1x256xf32> to vector<64x256xf32>
    %13 = arith.addf %10, %12 : vector<64x256xf32>
    %cst_13 = arith.constant 0.000000e+00 : f32
    %14 = vector.broadcast %cst_13 : f32 to vector<64x256xf32>
    %15 = arith.cmpf ogt, %13, %14 : vector<64x256xf32>
    %cst_14 = arith.constant 0.00999999977 : f32
    %16 = vector.broadcast %cst_14 : f32 to vector<64x256xf32>
    %17 = arith.mulf %16, %13 : vector<64x256xf32>
    %18 = arith.select %15, %13, %17 : vector<64x256xi1>, vector<64x256xf32>
    %19 = arith.truncf %18 : vector<64x256xf32> to vector<64x256xbf16>
    %c0_15 = arith.constant 0 : index
    %c0_16 = arith.constant 0 : index
    %20 = vector.load %arg6[%c0_15, %c0_16] : memref<256x128xbf16, #tpu.memory_space<vmem>>, vector<256x128xbf16>
    %cst_17 = arith.constant dense<0.000000e+00> : vector<64x128xf32>
    %21 = tpu.matmul %19, %20, %cst_17 {dimension_numbers = #tpu.dot_dimension_numbers<[1], [0], [0], [1], [0, 0, 1, 1], [], []>} : vector<64x256xbf16>, vector<256x128xbf16>, vector<64x128xf32> -> vector<64x128xf32>
    %c0_18 = arith.constant 0 : index
    %c0_19 = arith.constant 0 : index
    %22 = vector.load %arg7[%c0_18, %c0_19] : memref<1x128xf32, #tpu.memory_space<vmem>>, vector<1x128xf32>
    %23 = vector.broadcast %22 : vector<1x128xf32> to vector<64x128xf32>
    %24 = arith.addf %21, %23 : vector<64x128xf32>
    %25 = vector.broadcast %4 : f32 to vector<64x128xf32>
    %26 = arith.mulf %25, %24 : vector<64x128xf32>
    %c0_20 = arith.constant 0 : index
    %c0_21 = arith.constant 0 : index
    %27 = vector.load %arg22[%c0_20, %c0_21] : memref<64x128xf32, #tpu.memory_space<vmem>>, vector<64x128xf32>
    tpu.vector_store %arg22[%c0_20, %c0_21], %26 {strides = array<i32>} : memref<64x128xf32, #tpu.memory_space<vmem>>, vector<64x128xf32>,
    %cst_22 = arith.constant 3.200000e+01 : f32
    %28 = math.sqrt %cst_22 : f32
    %cst_23 = arith.constant 1.000000e+00 : f32
    %29 = arith.divf %cst_23, %28 : f32
    %c0_24 = arith.constant 0 : index
    %c0_25 = arith.constant 0 : index
    %c0_26 = arith.constant 0 : index
    %30 = vector.load %arg8[%c0_24, %c0_25, %c0_26] : memref<4x128x32xbf16, #tpu.memory_space<vmem>>, vector<1x128x32xbf16>
    %31 = vector.shape_cast %30 : vector<1x128x32xbf16> to vector<128x32xbf16>
    %cst_27 = arith.constant dense<0.000000e+00> : vector<64x32xf32>
    %32 = tpu.matmul %1, %31, %cst_27 {dimension_numbers = #tpu.dot_dimension_numbers<[1], [0], [0], [1], [0, 0, 1, 1], [], []>} : vector<64x128xbf16>, vector<128x32xbf16>, vector<64x32xf32> -> vector<64x32xf32>
    %c0_28 = arith.constant 0 : index
    %c0_29 = arith.constant 0 : index
    %c0_30 = arith.constant 0 : index
    %33 = vector.load %arg11[%c0_28, %c0_29, %c0_30] : memref<4x1x32xf32, #tpu.memory_space<vmem>>, vector<1x1x32xf32>
    %34 = vector.shape_cast %33 : vector<1x1x32xf32> to vector<1x32xf32>
    %35 = vector.broadcast %34 : vector<1x32xf32> to vector<64x32xf32>
    %36 = arith.addf %32, %35 : vector<64x32xf32>
    %c0_31 = arith.constant 0 : index
    %c0_32 = arith.constant 0 : index
    %c0_33 = arith.constant 0 : index
    %37 = vector.load %arg9[%c0_31, %c0_32, %c0_33] : memref<4x128x32xbf16, #tpu.memory_space<vmem>>, vector<1x128x32xbf16>
    %38 = vector.shape_cast %37 : vector<1x128x32xbf16> to vector<128x32xbf16>
    %cst_34 = arith.constant dense<0.000000e+00> : vector<64x32xf32>
    %39 = tpu.matmul %3, %38, %cst_34 {dimension_numbers = #tpu.dot_dimension_numbers<[1], [0], [0], [1], [0, 0, 1, 1], [], []>} : vector<64x128xbf16>, vector<128x32xbf16>, vector<64x32xf32> -> vector<64x32xf32>
    %c0_35 = arith.constant 0 : index
    %c0_36 = arith.constant 0 : index
    %c0_37 = arith.constant 0 : index
    %40 = vector.load %arg12[%c0_35, %c0_36, %c0_37] : memref<4x1x32xf32, #tpu.memory_space<vmem>>, vector<1x1x32xf32>
    %41 = vector.shape_cast %40 : vector<1x1x32xf32> to vector<1x32xf32>
    %42 = vector.broadcast %41 : vector<1x32xf32> to vector<64x32xf32>
    %43 = arith.addf %39, %42 : vector<64x32xf32>
    %c0_38 = arith.constant 0 : index
    %c0_39 = arith.constant 0 : index
    %c0_40 = arith.constant 0 : index
    %44 = vector.load %arg10[%c0_38, %c0_39, %c0_40] : memref<4x128x32xbf16, #tpu.memory_space<vmem>>, vector<1x128x32xbf16>
    %45 = vector.shape_cast %44 : vector<1x128x32xbf16> to vector<128x32xbf16>
    %cst_41 = arith.constant dense<0.000000e+00> : vector<64x32xf32>
    %46 = tpu.matmul %3, %45, %cst_41 {dimension_numbers = #tpu.dot_dimension_numbers<[1], [0], [0], [1], [0, 0, 1, 1], [], []>} : vector<64x128xbf16>, vector<128x32xbf16>, vector<64x32xf32> -> vector<64x32xf32>
    %c0_42 = arith.constant 0 : index
    %c0_43 = arith.constant 0 : index
    %c0_44 = arith.constant 0 : index
    %47 = vector.load %arg13[%c0_42, %c0_43, %c0_44] : memref<4x1x32xf32, #tpu.memory_space<vmem>>, vector<1x1x32xf32>
    %48 = vector.shape_cast %47 : vector<1x1x32xf32> to vector<1x32xf32>
    %49 = vector.broadcast %48 : vector<1x32xf32> to vector<64x32xf32>
    %50 = arith.addf %46, %49 : vector<64x32xf32>
    %51 = arith.truncf %36 : vector<64x32xf32> to vector<64x32xbf16>
    %52 = arith.truncf %43 : vector<64x32xf32> to vector<64x32xbf16>
    %cst_45 = arith.constant dense<0.000000e+00> : vector<64x64xf32>
    %53 = tpu.matmul %51, %52, %cst_45 {dimension_numbers = #tpu.dot_dimension_numbers<[1], [1], [0], [0], [0, 0, 1, 0], [], []>} : vector<64x32xbf16>, vector<64x32xbf16>, vector<64x64xf32> -> vector<64x64xf32>
    %54 = vector.broadcast %29 : f32 to vector<64x64xf32>
    %55 = arith.mulf %53, %54 : vector<64x64xf32>
    %cst_46 = arith.constant dense<0xFF800000> : vector<64xf32>
    %56 = vector.multi_reduction <maximumf>, %55, %cst_46 [1] : vector<64x64xf32> to vector<64xf32>
    %57 = vector.shape_cast %56 : vector<64xf32> to vector<64x1xf32>
    %58 = vector.broadcast %57 : vector<64x1xf32> to vector<64x64xf32>
    %59 = arith.subf %55, %58 : vector<64x64xf32>
    %60 = math.exp %59 : vector<64x64xf32>
    %cst_47 = arith.constant dense<0.000000e+00> : vector<64xf32>
    %61 = vector.multi_reduction <add>, %60, %cst_47 [1] : vector<64x64xf32> to vector<64xf32>
    %62 = vector.shape_cast %61 : vector<64xf32> to vector<64x1xf32>
    %63 = tpu.reciprocal %62 {approx = true} : vector<64x1xf32> -> vector<64x1xf32>
    %64 = vector.broadcast %63 : vector<64x1xf32> to vector<64x64xf32>
    %65 = arith.mulf %60, %64 : vector<64x64xf32>
    %66 = arith.truncf %65 : vector<64x64xf32> to vector<64x64xbf16>
    %67 = arith.truncf %50 : vector<64x32xf32> to vector<64x32xbf16>
    %cst_48 = arith.constant dense<0.000000e+00> : vector<64x32xf32>
    %68 = tpu.matmul %66, %67, %cst_48 {dimension_numbers = #tpu.dot_dimension_numbers<[1], [0], [0], [1], [0, 0, 1, 1], [], []>} : vector<64x64xbf16>, vector<64x32xbf16>, vector<64x32xf32> -> vector<64x32xf32>
    %c0_49 = arith.constant 0 : index
    %c0_50 = arith.constant 0 : index
    %69 = vector.load %arg22[%c0_49, %c0_50] : memref<64x128xf32, #tpu.memory_space<vmem>>, vector<64x128xf32>
    %70 = arith.truncf %68 : vector<64x32xf32> to vector<64x32xbf16>
    %c0_51 = arith.constant 0 : index
    %c0_52 = arith.constant 0 : index
    %c0_53 = arith.constant 0 : index
    %71 = vector.load %arg14[%c0_51, %c0_52, %c0_53] : memref<4x32x128xbf16, #tpu.memory_space<vmem>>, vector<1x32x128xbf16>
    %72 = vector.shape_cast %71 : vector<1x32x128xbf16> to vector<32x128xbf16>
    %cst_54 = arith.constant dense<0.000000e+00> : vector<64x128xf32>
    %73 = tpu.matmul %70, %72, %cst_54 {dimension_numbers = #tpu.dot_dimension_numbers<[1], [0], [0], [1], [0, 0, 1, 1], [], []>} : vector<64x32xbf16>, vector<32x128xbf16>, vector<64x128xf32> -> vector<64x128xf32>
    %74 = vector.broadcast %5 : f32 to vector<64x128xf32>
    %75 = arith.mulf %74, %73 : vector<64x128xf32>
    %76 = arith.addf %69, %75 : vector<64x128xf32>
    %c0_55 = arith.constant 0 : index
    %c0_56 = arith.constant 0 : index
    %77 = vector.load %arg22[%c0_55, %c0_56] : memref<64x128xf32, #tpu.memory_space<vmem>>, vector<64x128xf32>
    tpu.vector_store %arg22[%c0_55, %c0_56], %76 {strides = array<i32>} : memref<64x128xf32, #tpu.memory_space<vmem>>, vector<64x128xf32>,
    %c1 = arith.constant 1 : index
    %c0_57 = arith.constant 0 : index
    %c0_58 = arith.constant 0 : index
    %78 = vector.load %arg8[%c1, %c0_57, %c0_58] : memref<4x128x32xbf16, #tpu.memory_space<vmem>>, vector<1x128x32xbf16>
    %79 = vector.shape_cast %78 : vector<1x128x32xbf16> to vector<128x32xbf16>
    %cst_59 = arith.constant dense<0.000000e+00> : vector<64x32xf32>
    %80 = tpu.matmul %1, %79, %cst_59 {dimension_numbers = #tpu.dot_dimension_numbers<[1], [0], [0], [1], [0, 0, 1, 1], [], []>} : vector<64x128xbf16>, vector<128x32xbf16>, vector<64x32xf32> -> vector<64x32xf32>
    %c1_60 = arith.constant 1 : index
    %c0_61 = arith.constant 0 : index
    %c0_62 = arith.constant 0 : index
    %81 = vector.load %arg11[%c1_60, %c0_61, %c0_62] : memref<4x1x32xf32, #tpu.memory_space<vmem>>, vector<1x1x32xf32>
    %82 = vector.shape_cast %81 : vector<1x1x32xf32> to vector<1x32xf32>
    %83 = vector.broadcast %82 : vector<1x32xf32> to vector<64x32xf32>
    %84 = arith.addf %80, %83 : vector<64x32xf32>
    %c1_63 = arith.constant 1 : index
    %c0_64 = arith.constant 0 : index
    %c0_65 = arith.constant 0 : index
    %85 = vector.load %arg9[%c1_63, %c0_64, %c0_65] : memref<4x128x32xbf16, #tpu.memory_space<vmem>>, vector<1x128x32xbf16>
    %86 = vector.shape_cast %85 : vector<1x128x32xbf16> to vector<128x32xbf16>
    %cst_66 = arith.constant dense<0.000000e+00> : vector<64x32xf32>
    %87 = tpu.matmul %3, %86, %cst_66 {dimension_numbers = #tpu.dot_dimension_numbers<[1], [0], [0], [1], [0, 0, 1, 1], [], []>} : vector<64x128xbf16>, vector<128x32xbf16>, vector<64x32xf32> -> vector<64x32xf32>
    %c1_67 = arith.constant 1 : index
    %c0_68 = arith.constant 0 : index
    %c0_69 = arith.constant 0 : index
    %88 = vector.load %arg12[%c1_67, %c0_68, %c0_69] : memref<4x1x32xf32, #tpu.memory_space<vmem>>, vector<1x1x32xf32>
    %89 = vector.shape_cast %88 : vector<1x1x32xf32> to vector<1x32xf32>
    %90 = vector.broadcast %89 : vector<1x32xf32> to vector<64x32xf32>
    %91 = arith.addf %87, %90 : vector<64x32xf32>
    %c1_70 = arith.constant 1 : index
    %c0_71 = arith.constant 0 : index
    %c0_72 = arith.constant 0 : index
    %92 = vector.load %arg10[%c1_70, %c0_71, %c0_72] : memref<4x128x32xbf16, #tpu.memory_space<vmem>>, vector<1x128x32xbf16>
    %93 = vector.shape_cast %92 : vector<1x128x32xbf16> to vector<128x32xbf16>
    %cst_73 = arith.constant dense<0.000000e+00> : vector<64x32xf32>
    %94 = tpu.matmul %3, %93, %cst_73 {dimension_numbers = #tpu.dot_dimension_numbers<[1], [0], [0], [1], [0, 0, 1, 1], [], []>} : vector<64x128xbf16>, vector<128x32xbf16>, vector<64x32xf32> -> vector<64x32xf32>
    %c1_74 = arith.constant 1 : index
    %c0_75 = arith.constant 0 : index
    %c0_76 = arith.constant 0 : index
    %95 = vector.load %arg13[%c1_74, %c0_75, %c0_76] : memref<4x1x32xf32, #tpu.memory_space<vmem>>, vector<1x1x32xf32>
    %96 = vector.shape_cast %95 : vector<1x1x32xf32> to vector<1x32xf32>
    %97 = vector.broadcast %96 : vector<1x32xf32> to vector<64x32xf32>
    %98 = arith.addf %94, %97 : vector<64x32xf32>
    %99 = arith.truncf %84 : vector<64x32xf32> to vector<64x32xbf16>
    %100 = arith.truncf %91 : vector<64x32xf32> to vector<64x32xbf16>
    %cst_77 = arith.constant dense<0.000000e+00> : vector<64x64xf32>
    %101 = tpu.matmul %99, %100, %cst_77 {dimension_numbers = #tpu.dot_dimension_numbers<[1], [1], [0], [0], [0, 0, 1, 0], [], []>} : vector<64x32xbf16>, vector<64x32xbf16>, vector<64x64xf32> -> vector<64x64xf32>
    %102 = vector.broadcast %29 : f32 to vector<64x64xf32>
    %103 = arith.mulf %101, %102 : vector<64x64xf32>
    %cst_78 = arith.constant dense<0xFF800000> : vector<64xf32>
    %104 = vector.multi_reduction <maximumf>, %103, %cst_78 [1] : vector<64x64xf32> to vector<64xf32>
    %105 = vector.shape_cast %104 : vector<64xf32> to vector<64x1xf32>
    %106 = vector.broadcast %105 : vector<64x1xf32> to vector<64x64xf32>
    %107 = arith.subf %103, %106 : vector<64x64xf32>
    %108 = math.exp %107 : vector<64x64xf32>
    %cst_79 = arith.constant dense<0.000000e+00> : vector<64xf32>
    %109 = vector.multi_reduction <add>, %108, %cst_79 [1] : vector<64x64xf32> to vector<64xf32>
    %110 = vector.shape_cast %109 : vector<64xf32> to vector<64x1xf32>
    %111 = tpu.reciprocal %110 {approx = true} : vector<64x1xf32> -> vector<64x1xf32>
    %112 = vector.broadcast %111 : vector<64x1xf32> to vector<64x64xf32>
    %113 = arith.mulf %108, %112 : vector<64x64xf32>
    %114 = arith.truncf %113 : vector<64x64xf32> to vector<64x64xbf16>
    %115 = arith.truncf %98 : vector<64x32xf32> to vector<64x32xbf16>
    %cst_80 = arith.constant dense<0.000000e+00> : vector<64x32xf32>
    %116 = tpu.matmul %114, %115, %cst_80 {dimension_numbers = #tpu.dot_dimension_numbers<[1], [0], [0], [1], [0, 0, 1, 1], [], []>} : vector<64x64xbf16>, vector<64x32xbf16>, vector<64x32xf32> -> vector<64x32xf32>
    %c0_81 = arith.constant 0 : index
    %c0_82 = arith.constant 0 : index
    %117 = vector.load %arg22[%c0_81, %c0_82] : memref<64x128xf32, #tpu.memory_space<vmem>>, vector<64x128xf32>
    %118 = arith.truncf %116 : vector<64x32xf32> to vector<64x32xbf16>
    %c1_83 = arith.constant 1 : index
    %c0_84 = arith.constant 0 : index
    %c0_85 = arith.constant 0 : index
    %119 = vector.load %arg14[%c1_83, %c0_84, %c0_85] : memref<4x32x128xbf16, #tpu.memory_space<vmem>>, vector<1x32x128xbf16>
    %120 = vector.shape_cast %119 : vector<1x32x128xbf16> to vector<32x128xbf16>
    %cst_86 = arith.constant dense<0.000000e+00> : vector<64x128xf32>
    %121 = tpu.matmul %118, %120, %cst_86 {dimension_numbers = #tpu.dot_dimension_numbers<[1], [0], [0], [1], [0, 0, 1, 1], [], []>} : vector<64x32xbf16>, vector<32x128xbf16>, vector<64x128xf32> -> vector<64x128xf32>
    %122 = vector.broadcast %5 : f32 to vector<64x128xf32>
    %123 = arith.mulf %122, %121 : vector<64x128xf32>
    %124 = arith.addf %117, %123 : vector<64x128xf32>
    %c0_87 = arith.constant 0 : index
    %c0_88 = arith.constant 0 : index
    %125 = vector.load %arg22[%c0_87, %c0_88] : memref<64x128xf32, #tpu.memory_space<vmem>>, vector<64x128xf32>
    tpu.vector_store %arg22[%c0_87, %c0_88], %124 {strides = array<i32>} : memref<64x128xf32, #tpu.memory_space<vmem>>, vector<64x128xf32>,
    %c2 = arith.constant 2 : index
    %c0_89 = arith.constant 0 : index
    %c0_90 = arith.constant 0 : index
    %126 = vector.load %arg8[%c2, %c0_89, %c0_90] : memref<4x128x32xbf16, #tpu.memory_space<vmem>>, vector<1x128x32xbf16>
    %127 = vector.shape_cast %126 : vector<1x128x32xbf16> to vector<128x32xbf16>
    %cst_91 = arith.constant dense<0.000000e+00> : vector<64x32xf32>
    %128 = tpu.matmul %1, %127, %cst_91 {dimension_numbers = #tpu.dot_dimension_numbers<[1], [0], [0], [1], [0, 0, 1, 1], [], []>} : vector<64x128xbf16>, vector<128x32xbf16>, vector<64x32xf32> -> vector<64x32xf32>
    %c2_92 = arith.constant 2 : index
    %c0_93 = arith.constant 0 : index
    %c0_94 = arith.constant 0 : index
    %129 = vector.load %arg11[%c2_92, %c0_93, %c0_94] : memref<4x1x32xf32, #tpu.memory_space<vmem>>, vector<1x1x32xf32>
    %130 = vector.shape_cast %129 : vector<1x1x32xf32> to vector<1x32xf32>
    %131 = vector.broadcast %130 : vector<1x32xf32> to vector<64x32xf32>
    %132 = arith.addf %128, %131 : vector<64x32xf32>
    %c2_95 = arith.constant 2 : index
    %c0_96 = arith.constant 0 : index
    %c0_97 = arith.constant 0 : index
    %133 = vector.load %arg9[%c2_95, %c0_96, %c0_97] : memref<4x128x32xbf16, #tpu.memory_space<vmem>>, vector<1x128x32xbf16>
    %134 = vector.shape_cast %133 : vector<1x128x32xbf16> to vector<128x32xbf16>
    %cst_98 = arith.constant dense<0.000000e+00> : vector<64x32xf32>
    %135 = tpu.matmul %3, %134, %cst_98 {dimension_numbers = #tpu.dot_dimension_numbers<[1], [0], [0], [1], [0, 0, 1, 1], [], []>} : vector<64x128xbf16>, vector<128x32xbf16>, vector<64x32xf32> -> vector<64x32xf32>
    %c2_99 = arith.constant 2 : index
    %c0_100 = arith.constant 0 : index
    %c0_101 = arith.constant 0 : index
    %136 = vector.load %arg12[%c2_99, %c0_100, %c0_101] : memref<4x1x32xf32, #tpu.memory_space<vmem>>, vector<1x1x32xf32>
    %137 = vector.shape_cast %136 : vector<1x1x32xf32> to vector<1x32xf32>
    %138 = vector.broadcast %137 : vector<1x32xf32> to vector<64x32xf32>
    %139 = arith.addf %135, %138 : vector<64x32xf32>
    %c2_102 = arith.constant 2 : index
    %c0_103 = arith.constant 0 : index
    %c0_104 = arith.constant 0 : index
    %140 = vector.load %arg10[%c2_102, %c0_103, %c0_104] : memref<4x128x32xbf16, #tpu.memory_space<vmem>>, vector<1x128x32xbf16>
    %141 = vector.shape_cast %140 : vector<1x128x32xbf16> to vector<128x32xbf16>
    %cst_105 = arith.constant dense<0.000000e+00> : vector<64x32xf32>
    %142 = tpu.matmul %3, %141, %cst_105 {dimension_numbers = #tpu.dot_dimension_numbers<[1], [0], [0], [1], [0, 0, 1, 1], [], []>} : vector<64x128xbf16>, vector<128x32xbf16>, vector<64x32xf32> -> vector<64x32xf32>
    %c2_106 = arith.constant 2 : index
    %c0_107 = arith.constant 0 : index
    %c0_108 = arith.constant 0 : index
    %143 = vector.load %arg13[%c2_106, %c0_107, %c0_108] : memref<4x1x32xf32, #tpu.memory_space<vmem>>, vector<1x1x32xf32>
    %144 = vector.shape_cast %143 : vector<1x1x32xf32> to vector<1x32xf32>
    %145 = vector.broadcast %144 : vector<1x32xf32> to vector<64x32xf32>
    %146 = arith.addf %142, %145 : vector<64x32xf32>
    %147 = arith.truncf %132 : vector<64x32xf32> to vector<64x32xbf16>
    %148 = arith.truncf %139 : vector<64x32xf32> to vector<64x32xbf16>
    %cst_109 = arith.constant dense<0.000000e+00> : vector<64x64xf32>
    %149 = tpu.matmul %147, %148, %cst_109 {dimension_numbers = #tpu.dot_dimension_numbers<[1], [1], [0], [0], [0, 0, 1, 0], [], []>} : vector<64x32xbf16>, vector<64x32xbf16>, vector<64x64xf32> -> vector<64x64xf32>
    %150 = vector.broadcast %29 : f32 to vector<64x64xf32>
    %151 = arith.mulf %149, %150 : vector<64x64xf32>
    %cst_110 = arith.constant dense<0xFF800000> : vector<64xf32>
    %152 = vector.multi_reduction <maximumf>, %151, %cst_110 [1] : vector<64x64xf32> to vector<64xf32>
    %153 = vector.shape_cast %152 : vector<64xf32> to vector<64x1xf32>
    %154 = vector.broadcast %153 : vector<64x1xf32> to vector<64x64xf32>
    %155 = arith.subf %151, %154 : vector<64x64xf32>
    %156 = math.exp %155 : vector<64x64xf32>
    %cst_111 = arith.constant dense<0.000000e+00> : vector<64xf32>
    %157 = vector.multi_reduction <add>, %156, %cst_111 [1] : vector<64x64xf32> to vector<64xf32>
    %158 = vector.shape_cast %157 : vector<64xf32> to vector<64x1xf32>
    %159 = tpu.reciprocal %158 {approx = true} : vector<64x1xf32> -> vector<64x1xf32>
    %160 = vector.broadcast %159 : vector<64x1xf32> to vector<64x64xf32>
    %161 = arith.mulf %156, %160 : vector<64x64xf32>
    %162 = arith.truncf %161 : vector<64x64xf32> to vector<64x64xbf16>
    %163 = arith.truncf %146 : vector<64x32xf32> to vector<64x32xbf16>
    %cst_112 = arith.constant dense<0.000000e+00> : vector<64x32xf32>
    %164 = tpu.matmul %162, %163, %cst_112 {dimension_numbers = #tpu.dot_dimension_numbers<[1], [0], [0], [1], [0, 0, 1, 1], [], []>} : vector<64x64xbf16>, vector<64x32xbf16>, vector<64x32xf32> -> vector<64x32xf32>
    %c0_113 = arith.constant 0 : index
    %c0_114 = arith.constant 0 : index
    %165 = vector.load %arg22[%c0_113, %c0_114] : memref<64x128xf32, #tpu.memory_space<vmem>>, vector<64x128xf32>
    %166 = arith.truncf %164 : vector<64x32xf32> to vector<64x32xbf16>
    %c2_115 = arith.constant 2 : index
    %c0_116 = arith.constant 0 : index
    %c0_117 = arith.constant 0 : index
    %167 = vector.load %arg14[%c2_115, %c0_116, %c0_117] : memref<4x32x128xbf16, #tpu.memory_space<vmem>>, vector<1x32x128xbf16>
    %168 = vector.shape_cast %167 : vector<1x32x128xbf16> to vector<32x128xbf16>
    %cst_118 = arith.constant dense<0.000000e+00> : vector<64x128xf32>
    %169 = tpu.matmul %166, %168, %cst_118 {dimension_numbers = #tpu.dot_dimension_numbers<[1], [0], [0], [1], [0, 0, 1, 1], [], []>} : vector<64x32xbf16>, vector<32x128xbf16>, vector<64x128xf32> -> vector<64x128xf32>
    %170 = vector.broadcast %5 : f32 to vector<64x128xf32>
    %171 = arith.mulf %170, %169 : vector<64x128xf32>
    %172 = arith.addf %165, %171 : vector<64x128xf32>
    %c0_119 = arith.constant 0 : index
    %c0_120 = arith.constant 0 : index
    %173 = vector.load %arg22[%c0_119, %c0_120] : memref<64x128xf32, #tpu.memory_space<vmem>>, vector<64x128xf32>
    tpu.vector_store %arg22[%c0_119, %c0_120], %172 {strides = array<i32>} : memref<64x128xf32, #tpu.memory_space<vmem>>, vector<64x128xf32>,
    %c3 = arith.constant 3 : index
    %c0_121 = arith.constant 0 : index
    %c0_122 = arith.constant 0 : index
    %174 = vector.load %arg8[%c3, %c0_121, %c0_122] : memref<4x128x32xbf16, #tpu.memory_space<vmem>>, vector<1x128x32xbf16>
    %175 = vector.shape_cast %174 : vector<1x128x32xbf16> to vector<128x32xbf16>
    %cst_123 = arith.constant dense<0.000000e+00> : vector<64x32xf32>
    %176 = tpu.matmul %1, %175, %cst_123 {dimension_numbers = #tpu.dot_dimension_numbers<[1], [0], [0], [1], [0, 0, 1, 1], [], []>} : vector<64x128xbf16>, vector<128x32xbf16>, vector<64x32xf32> -> vector<64x32xf32>
    %c3_124 = arith.constant 3 : index
    %c0_125 = arith.constant 0 : index
    %c0_126 = arith.constant 0 : index
    %177 = vector.load %arg11[%c3_124, %c0_125, %c0_126] : memref<4x1x32xf32, #tpu.memory_space<vmem>>, vector<1x1x32xf32>
    %178 = vector.shape_cast %177 : vector<1x1x32xf32> to vector<1x32xf32>
    %179 = vector.broadcast %178 : vector<1x32xf32> to vector<64x32xf32>
    %180 = arith.addf %176, %179 : vector<64x32xf32>
    %c3_127 = arith.constant 3 : index
    %c0_128 = arith.constant 0 : index
    %c0_129 = arith.constant 0 : index
    %181 = vector.load %arg9[%c3_127, %c0_128, %c0_129] : memref<4x128x32xbf16, #tpu.memory_space<vmem>>, vector<1x128x32xbf16>
    %182 = vector.shape_cast %181 : vector<1x128x32xbf16> to vector<128x32xbf16>
    %cst_130 = arith.constant dense<0.000000e+00> : vector<64x32xf32>
    %183 = tpu.matmul %3, %182, %cst_130 {dimension_numbers = #tpu.dot_dimension_numbers<[1], [0], [0], [1], [0, 0, 1, 1], [], []>} : vector<64x128xbf16>, vector<128x32xbf16>, vector<64x32xf32> -> vector<64x32xf32>
    %c3_131 = arith.constant 3 : index
    %c0_132 = arith.constant 0 : index
    %c0_133 = arith.constant 0 : index
    %184 = vector.load %arg12[%c3_131, %c0_132, %c0_133] : memref<4x1x32xf32, #tpu.memory_space<vmem>>, vector<1x1x32xf32>
    %185 = vector.shape_cast %184 : vector<1x1x32xf32> to vector<1x32xf32>
    %186 = vector.broadcast %185 : vector<1x32xf32> to vector<64x32xf32>
    %187 = arith.addf %183, %186 : vector<64x32xf32>
    %c3_134 = arith.constant 3 : index
    %c0_135 = arith.constant 0 : index
    %c0_136 = arith.constant 0 : index
    %188 = vector.load %arg10[%c3_134, %c0_135, %c0_136] : memref<4x128x32xbf16, #tpu.memory_space<vmem>>, vector<1x128x32xbf16>
    %189 = vector.shape_cast %188 : vector<1x128x32xbf16> to vector<128x32xbf16>
    %cst_137 = arith.constant dense<0.000000e+00> : vector<64x32xf32>
    %190 = tpu.matmul %3, %189, %cst_137 {dimension_numbers = #tpu.dot_dimension_numbers<[1], [0], [0], [1], [0, 0, 1, 1], [], []>} : vector<64x128xbf16>, vector<128x32xbf16>, vector<64x32xf32> -> vector<64x32xf32>
    %c3_138 = arith.constant 3 : index
    %c0_139 = arith.constant 0 : index
    %c0_140 = arith.constant 0 : index
    %191 = vector.load %arg13[%c3_138, %c0_139, %c0_140] : memref<4x1x32xf32, #tpu.memory_space<vmem>>, vector<1x1x32xf32>
    %192 = vector.shape_cast %191 : vector<1x1x32xf32> to vector<1x32xf32>
    %193 = vector.broadcast %192 : vector<1x32xf32> to vector<64x32xf32>
    %194 = arith.addf %190, %193 : vector<64x32xf32>
    %195 = arith.truncf %180 : vector<64x32xf32> to vector<64x32xbf16>
    %196 = arith.truncf %187 : vector<64x32xf32> to vector<64x32xbf16>
    %cst_141 = arith.constant dense<0.000000e+00> : vector<64x64xf32>
    %197 = tpu.matmul %195, %196, %cst_141 {dimension_numbers = #tpu.dot_dimension_numbers<[1], [1], [0], [0], [0, 0, 1, 0], [], []>} : vector<64x32xbf16>, vector<64x32xbf16>, vector<64x64xf32> -> vector<64x64xf32>
    %198 = vector.broadcast %29 : f32 to vector<64x64xf32>
    %199 = arith.mulf %197, %198 : vector<64x64xf32>
    %cst_142 = arith.constant dense<0xFF800000> : vector<64xf32>
    %200 = vector.multi_reduction <maximumf>, %199, %cst_142 [1] : vector<64x64xf32> to vector<64xf32>
    %201 = vector.shape_cast %200 : vector<64xf32> to vector<64x1xf32>
    %202 = vector.broadcast %201 : vector<64x1xf32> to vector<64x64xf32>
    %203 = arith.subf %199, %202 : vector<64x64xf32>
    %204 = math.exp %203 : vector<64x64xf32>
    %cst_143 = arith.constant dense<0.000000e+00> : vector<64xf32>
    %205 = vector.multi_reduction <add>, %204, %cst_143 [1] : vector<64x64xf32> to vector<64xf32>
    %206 = vector.shape_cast %205 : vector<64xf32> to vector<64x1xf32>
    %207 = tpu.reciprocal %206 {approx = true} : vector<64x1xf32> -> vector<64x1xf32>
    %208 = vector.broadcast %207 : vector<64x1xf32> to vector<64x64xf32>
    %209 = arith.mulf %204, %208 : vector<64x64xf32>
    %210 = arith.truncf %209 : vector<64x64xf32> to vector<64x64xbf16>
    %211 = arith.truncf %194 : vector<64x32xf32> to vector<64x32xbf16>
    %cst_144 = arith.constant dense<0.000000e+00> : vector<64x32xf32>
    %212 = tpu.matmul %210, %211, %cst_144 {dimension_numbers = #tpu.dot_dimension_numbers<[1], [0], [0], [1], [0, 0, 1, 1], [], []>} : vector<64x64xbf16>, vector<64x32xbf16>, vector<64x32xf32> -> vector<64x32xf32>
    %c0_145 = arith.constant 0 : index
    %c0_146 = arith.constant 0 : index
    %213 = vector.load %arg22[%c0_145, %c0_146] : memref<64x128xf32, #tpu.memory_space<vmem>>, vector<64x128xf32>
    %214 = arith.truncf %212 : vector<64x32xf32> to vector<64x32xbf16>
    %c3_147 = arith.constant 3 : index
    %c0_148 = arith.constant 0 : index
    %c0_149 = arith.constant 0 : index
    %215 = vector.load %arg14[%c3_147, %c0_148, %c0_149] : memref<4x32x128xbf16, #tpu.memory_space<vmem>>, vector<1x32x128xbf16>
    %216 = vector.shape_cast %215 : vector<1x32x128xbf16> to vector<32x128xbf16>
    %cst_150 = arith.constant dense<0.000000e+00> : vector<64x128xf32>
    %217 = tpu.matmul %214, %216, %cst_150 {dimension_numbers = #tpu.dot_dimension_numbers<[1], [0], [0], [1], [0, 0, 1, 1], [], []>} : vector<64x32xbf16>, vector<32x128xbf16>, vector<64x128xf32> -> vector<64x128xf32>
    %218 = vector.broadcast %5 : f32 to vector<64x128xf32>
    %219 = arith.mulf %218, %217 : vector<64x128xf32>
    %220 = arith.addf %213, %219 : vector<64x128xf32>
    %c0_151 = arith.constant 0 : index
    %c0_152 = arith.constant 0 : index
    %221 = vector.load %arg22[%c0_151, %c0_152] : memref<64x128xf32, #tpu.memory_space<vmem>>, vector<64x128xf32>
    tpu.vector_store %arg22[%c0_151, %c0_152], %220 {strides = array<i32>} : memref<64x128xf32, #tpu.memory_space<vmem>>, vector<64x128xf32>,
    %c0_153 = arith.constant 0 : index
    %c0_154 = arith.constant 0 : index
    %222 = vector.load %arg22[%c0_153, %c0_154] : memref<64x128xf32, #tpu.memory_space<vmem>>, vector<64x128xf32>
    %c0_155 = arith.constant 0 : index
    %c0_156 = arith.constant 0 : index
    %223 = vector.load %arg15[%c0_155, %c0_156] : memref<1x128xf32, #tpu.memory_space<vmem>>, vector<1x128xf32>
    %224 = vector.broadcast %5 : f32 to vector<1x128xf32>
    %225 = arith.mulf %224, %223 : vector<1x128xf32>
    %226 = vector.broadcast %225 : vector<1x128xf32> to vector<64x128xf32>
    %227 = arith.addf %222, %226 : vector<64x128xf32>
    %c0_157 = arith.constant 0 : index
    %c0_158 = arith.constant 0 : index
    %228 = vector.load %arg22[%c0_157, %c0_158] : memref<64x128xf32, #tpu.memory_space<vmem>>, vector<64x128xf32>
    tpu.vector_store %arg22[%c0_157, %c0_158], %227 {strides = array<i32>} : memref<64x128xf32, #tpu.memory_space<vmem>>, vector<64x128xf32>,
    %c0_159 = arith.constant 0 : index
    %c0_160 = arith.constant 0 : index
    %229 = vector.load %arg16[%c0_159, %c0_160] : memref<32x8xf32, #tpu.memory_space<vmem>>, vector<32x8xf32>
    %230 = arith.truncf %229 : vector<32x8xf32> to vector<32x8xbf16>
    %c0_161 = arith.constant 0 : index
    %c0_162 = arith.constant 0 : index
    %231 = vector.load %arg17[%c0_161, %c0_162] : memref<8x128xbf16, #tpu.memory_space<vmem>>, vector<8x128xbf16>
    %cst_163 = arith.constant dense<0.000000e+00> : vector<32x128xf32>
    %232 = tpu.matmul %230, %231, %cst_163 {dimension_numbers = #tpu.dot_dimension_numbers<[1], [0], [0], [1], [0, 0, 1, 1], [], []>} : vector<32x8xbf16>, vector<8x128xbf16>, vector<32x128xf32> -> vector<32x128xf32>
    %c0_164 = arith.constant 0 : index
    %c0_165 = arith.constant 0 : index
    %233 = vector.load %arg18[%c0_164, %c0_165] : memref<1x128xf32, #tpu.memory_space<vmem>>, vector<1x128xf32>
    %234 = vector.broadcast %233 : vector<1x128xf32> to vector<32x128xf32>
    %235 = arith.addf %232, %234 : vector<32x128xf32>
    %c0_166 = arith.constant 0 : index
    %c0_167 = arith.constant 0 : index
    %236 = vector.load %arg23[%c0_166, %c0_167] : memref<32x128xf32, #tpu.memory_space<vmem>>, vector<32x128xf32>
    tpu.vector_store %arg23[%c0_166, %c0_167], %235 {strides = array<i32>} : memref<32x128xf32, #tpu.memory_space<vmem>>, vector<32x128xf32>,
    %c0_168 = arith.constant 0 : index
    %c0_169 = arith.constant 0 : index
    %237 = vector.load %arg19[%c0_168, %c0_169] : memref<40x3xf32, #tpu.memory_space<vmem>>, vector<40x3xf32>
    %c0_170 = arith.constant 0 : index
    %c0_171 = arith.constant 0 : index
    %238 = vector.load %arg20[%c0_170, %c0_171] : memref<40x3xf32, #tpu.memory_space<vmem>>, vector<40x3xf32>
    %239 = arith.subf %237, %238 : vector<40x3xf32>
    %240 = arith.mulf %239, %239 : vector<40x3xf32>
    %cst_172 = arith.constant dense<0.000000e+00> : vector<40xf32>
    %241 = vector.multi_reduction <add>, %240, %cst_172 [1] : vector<40x3xf32> to vector<40xf32>
    %242 = vector.shape_cast %241 : vector<40xf32> to vector<40x1xf32>
    %c0_173 = arith.constant 0 : index
    %c0_174 = arith.constant 0 : index
    %243 = vector.load %arg21[%c0_173, %c0_174] : memref<40x1xi32, #tpu.memory_space<vmem>>, vector<40x1xi32>
    %244 = tpu.iota {dimensions = array<i32: 1>} : vector<40x2xi32>
    %245 = vector.broadcast %243 : vector<40x1xi32> to vector<40x2xi32>
    %246 = arith.cmpi eq, %245, %244 : vector<40x2xi32>
    %247 = arith.extui %246 : vector<40x2xi1> to vector<40x2xi32>
    %248 = arith.sitofp %247 : vector<40x2xi32> to vector<40x2xf32>
    %249 = vector.broadcast %242 : vector<40x1xf32> to vector<40x2xf32>
    %250 = arith.mulf %248, %249 : vector<40x2xf32>
    %cst_175 = arith.constant dense<0.000000e+00> : vector<2xf32>
    %251 = vector.multi_reduction <add>, %250, %cst_175 [0] : vector<40x2xf32> to vector<2xf32>
    %252 = vector.shape_cast %251 : vector<2xf32> to vector<1x2xf32>
    %cst_176 = arith.constant dense<0.000000e+00> : vector<2xf32>
    %253 = vector.multi_reduction <add>, %248, %cst_176 [0] : vector<40x2xf32> to vector<2xf32>
    %254 = vector.shape_cast %253 : vector<2xf32> to vector<1x2xf32>
    %cst_177 = arith.constant 1.000000e+00 : f32
    %255 = vector.broadcast %cst_177 : f32 to vector<1x2xf32>
    %256 = arith.maximumf %254, %255 : vector<1x2xf32>
    %257 = arith.divf %252, %256 : vector<1x2xf32>
    %258 = math.sqrt %257 : vector<1x2xf32>
    %c0_178 = arith.constant 0 : index
    %c0_179 = arith.constant 0 : index
    %259 = vector.load %arg24[%c0_178, %c0_179] : memref<1x2xf32, #tpu.memory_space<vmem>>, vector<1x2xf32>
    tpu.vector_store %arg24[%c0_178, %c0_179], %258 {strides = array<i32>} : memref<1x2xf32, #tpu.memory_space<vmem>>, vector<1x2xf32>,
    return
  }
}

</mosaic_0001>

<llo_original>
// kernel: karma_loop_forward.1
$region0: #{karma_loop_forward.1}
  #allocation0 [shape = 'u32[]', space=smem, size = 0x4, offset = 0x4, fixed_abs, tag = 'smem constant byte address 0x4 - core index']
  #allocation1 [shape = 'u32[72,128]{1,0:T(1,128)}', space=vmem, size = 0x9000, scoped, tag = 'internal scratch']
  #allocation2 [shape = 'f32[1,1]{1,0:T(1,128)S(6)}', space=smem, size = 0x200, scoped, tag = 'scoped memory for karma_loop_forward.1']
  %s0 = inlined_call_operand.<no memory space> [shape: f32[1,1], index: 0, kind: input, shape index: {}]
  %s1 = inlined_call_operand.vmem [shape: f32[64,128], index: 1, kind: input, shape index: {}]
  %s2 = inlined_call_operand.vmem [shape: f32[64,128], index: 2, kind: input, shape index: {}]
  %s3 = inlined_call_operand.vmem [shape: bf16[128,256], index: 3, kind: input, shape index: {}]
  %s4 = inlined_call_operand.vmem [shape: bf16[128,256], index: 4, kind: input, shape index: {}]
  %s5 = inlined_call_operand.vmem [shape: f32[1,256], index: 5, kind: input, shape index: {}]
  %s6 = inlined_call_operand.vmem [shape: bf16[256,128], index: 6, kind: input, shape index: {}]
  %s7 = inlined_call_operand.vmem [shape: f32[1,128], index: 7, kind: input, shape index: {}]
  %s8 = inlined_call_operand.vmem [shape: bf16[4,128,32], index: 8, kind: input, shape index: {}]
  %s9 = inlined_call_operand.vmem [shape: bf16[4,128,32], index: 9, kind: input, shape index: {}]
  %s10 = inlined_call_operand.vmem [shape: bf16[4,128,32], index: 10, kind: input, shape index: {}]
  %s11 = inlined_call_operand.vmem [shape: f32[4,1,32], index: 11, kind: input, shape index: {}]
  %s12 = inlined_call_operand.vmem [shape: f32[4,1,32], index: 12, kind: input, shape index: {}]
  %s13 = inlined_call_operand.vmem [shape: f32[4,1,32], index: 13, kind: input, shape index: {}]
  %s14 = inlined_call_operand.vmem [shape: bf16[4,32,128], index: 14, kind: input, shape index: {}]
  %s15 = inlined_call_operand.vmem [shape: f32[1,128], index: 15, kind: input, shape index: {}]
  %s16 = inlined_call_operand.vmem [shape: f32[32,8], index: 16, kind: input, shape index: {}]
  %s17 = inlined_call_operand.vmem [shape: bf16[8,128], index: 17, kind: input, shape index: {}]
  %s18 = inlined_call_operand.vmem [shape: f32[1,128], index: 18, kind: input, shape index: {}]
  %s19 = inlined_call_operand.vmem [shape: f32[40,3], index: 19, kind: input, shape index: {}]
  %s20 = inlined_call_operand.vmem [shape: f32[40,3], index: 20, kind: input, shape index: {}]
  %s21 = inlined_call_operand.vmem [shape: s32[40,1], index: 21, kind: input, shape index: {}]
  %s22 = inlined_call_operand.hbm [shape: f32[64,128], index: 22, kind: output, shape index: {0}]
  %s23 = inlined_call_operand.hbm [shape: f32[32,128], index: 23, kind: output, shape index: {1}]
  %s24 = inlined_call_operand.vmem [shape: f32[1,2], index: 24, kind: output, shape index: {2}]
  %25 = xla_tuple %s22, %s23, %s24
  %s26 = sld [smem:[#allocation0]]
  $region114: #{karma_loop_forward.1} parent=0
    _
  %s28 = ssub.s32 1, %s26
  %s29 = scalar_select 0, %s28, %s26
  %30 = sst [smem:[#allocation2]] %s0
  $region1: #{karma_loop_forward.1} parent=0
    #allocation3 [shape = 'u8[32768]{0}', space=vmem, size = 0x8000, scoped, tag = 'output window, operand 0, single buffered']
    #allocation4 [shape = 's32[1]{0}', space=sflag, size = 0x4, scoped, tag = 'scoped memory for karma_loop_forward.1']
    #allocation5 [shape = 'u8[16384]{0}', space=vmem, size = 0x4000, scoped, tag = 'output window, operand 1, single buffered']
    #allocation6 [shape = 's32[1]{0}', space=sflag, size = 0x4, scoped, tag = 'scoped memory for karma_loop_forward.1']
    %31 = vsyncpa [#allocation4], 0
    %32 = vsyncpa [#allocation6], 0
    // Predicated region
    $region2: #{karma_loop_forward.1} parent=1 // pred_check
      _
    $region3: #{karma_loop_forward.1} parent=1 // pred_check_branch
      %34 = sbr.rel (0) target = $region5
    $region4: #{karma_loop_forward.1} parent=1 // pred_region
      _
    $region5: #{karma_loop_forward.1} parent=1 // pred_fallthru
      _
    // Predicated region
    $region6: #{karma_loop_forward.1} parent=1 // pred_check
      _
    $region7: #{karma_loop_forward.1} parent=1 // pred_check_branch
      %36 = sbr.rel (0) target = $region9
    $region8: #{karma_loop_forward.1} parent=1 // pred_region
      _
    $region9: #{karma_loop_forward.1} parent=1 // pred_fallthru
      _
    // Predicated region
    $region10: #{karma_loop_forward.1} parent=1 // pred_check
      _
    $region11: #{karma_loop_forward.1} parent=1 // pred_check_branch
      %38 = sbr.rel (0) target = $region13
    $region12: #{karma_loop_forward.1} parent=1 // pred_region
      _
    $region13: #{karma_loop_forward.1} parent=1 // pred_fallthru
      _
    // Predicated region
    $region14: #{karma_loop_forward.1} parent=1 // pred_check
      _
    $region15: #{karma_loop_forward.1} parent=1 // pred_check_branch
      %40 = sbr.rel (0) target = $region17
    $region16: #{karma_loop_forward.1} parent=1 // pred_region
      _
    $region17: #{karma_loop_forward.1} parent=1 // pred_fallthru
      _
    // Predicated region
    $region18: #{karma_loop_forward.1} parent=1 // pred_check
      _
    $region19: #{karma_loop_forward.1} parent=1 // pred_check_branch
      %42 = sbr.rel (0) target = $region21
    $region20: #{karma_loop_forward.1} parent=1 // pred_region
      _
    $region21: #{karma_loop_forward.1} parent=1 // pred_fallthru
      _
    // Predicated region
    $region22: #{karma_loop_forward.1} parent=1 // pred_check
      _
    $region23: #{karma_loop_forward.1} parent=1 // pred_check_branch
      %44 = sbr.rel (0) target = $region25
    $region24: #{karma_loop_forward.1} parent=1 // pred_region
      _
    $region25: #{karma_loop_forward.1} parent=1 // pred_fallthru
      _
    // Predicated region
    $region26: #{karma_loop_forward.1} parent=1 // pred_check
      _
    $region27: #{karma_loop_forward.1} parent=1 // pred_check_branch
      %46 = sbr.rel (0) target = $region29
    $region28: #{karma_loop_forward.1} parent=1 // pred_region
      _
    $region29: #{karma_loop_forward.1} parent=1 // pred_fallthru
      _
    // Predicated region
    $region30: #{karma_loop_forward.1} parent=1 // pred_check
      _
    $region31: #{karma_loop_forward.1} parent=1 // pred_check_branch
      %48 = sbr.rel (0) target = $region33
    $region32: #{karma_loop_forward.1} parent=1 // pred_region
      _
    $region33: #{karma_loop_forward.1} parent=1 // pred_fallthru
      _
    // Predicated region
    $region34: #{karma_loop_forward.1} parent=1 // pred_check
      _
    $region35: #{karma_loop_forward.1} parent=1 // pred_check_branch
      %50 = sbr.rel (0) target = $region37
    $region36: #{karma_loop_forward.1} parent=1 // pred_region
      _
    $region37: #{karma_loop_forward.1} parent=1 // pred_fallthru
      _
    // Predicated region
    $region38: #{karma_loop_forward.1} parent=1 // pred_check
      _
    $region39: #{karma_loop_forward.1} parent=1 // pred_check_branch
      %52 = sbr.rel (0) target = $region41
    $region40: #{karma_loop_forward.1} parent=1 // pred_region
      _
    $region41: #{karma_loop_forward.1} parent=1 // pred_fallthru
      _
    // Predicated region
    $region42: #{karma_loop_forward.1} parent=1 // pred_check
      _
    $region43: #{karma_loop_forward.1} parent=1 // pred_check_branch
      %54 = sbr.rel (0) target = $region45
    $region44: #{karma_loop_forward.1} parent=1 // pred_region
      _
    $region45: #{karma_loop_forward.1} parent=1 // pred_fallthru
      _
    // Predicated region
    $region46: #{karma_loop_forward.1} parent=1 // pred_check
      _
    $region47: #{karma_loop_forward.1} parent=1 // pred_check_branch
      %56 = sbr.rel (0) target = $region49
    $region48: #{karma_loop_forward.1} parent=1 // pred_region
      _
    $region49: #{karma_loop_forward.1} parent=1 // pred_fallthru
      _
    // Predicated region
    $region50: #{karma_loop_forward.1} parent=1 // pred_check
      _
    $region51: #{karma_loop_forward.1} parent=1 // pred_check_branch
      %58 = sbr.rel (0) target = $region53
    $region52: #{karma_loop_forward.1} parent=1 // pred_region
      _
    $region53: #{karma_loop_forward.1} parent=1 // pred_fallthru
      _
    // Predicated region
    $region54: #{karma_loop_forward.1} parent=1 // pred_check
      _
    $region55: #{karma_loop_forward.1} parent=1 // pred_check_branch
      %60 = sbr.rel (0) target = $region57
    $region56: #{karma_loop_forward.1} parent=1 // pred_region
      _
    $region57: #{karma_loop_forward.1} parent=1 // pred_fallthru
      _
    // Predicated region
    $region58: #{karma_loop_forward.1} parent=1 // pred_check
      _
    $region59: #{karma_loop_forward.1} parent=1 // pred_check_branch
      %62 = sbr.rel (0) target = $region61
    $region60: #{karma_loop_forward.1} parent=1 // pred_region
      _
    $region61: #{karma_loop_forward.1} parent=1 // pred_fallthru
      _
    // Predicated region
    $region62: #{karma_loop_forward.1} parent=1 // pred_check
      _
    $region63: #{karma_loop_forward.1} parent=1 // pred_check_branch
      %64 = sbr.rel (0) target = $region65
    $region64: #{karma_loop_forward.1} parent=1 // pred_region
      _
    $region65: #{karma_loop_forward.1} parent=1 // pred_fallthru
      _
    // Predicated region
    $region66: #{karma_loop_forward.1} parent=1 // pred_check
      _
    $region67: #{karma_loop_forward.1} parent=1 // pred_check_branch
      %66 = sbr.rel (0) target = $region69
    $region68: #{karma_loop_forward.1} parent=1 // pred_region
      _
    $region69: #{karma_loop_forward.1} parent=1 // pred_fallthru
      _
    // Predicated region
    $region70: #{karma_loop_forward.1} parent=1 // pred_check
      _
    $region71: #{karma_loop_forward.1} parent=1 // pred_check_branch
      %68 = sbr.rel (0) target = $region73
    $region72: #{karma_loop_forward.1} parent=1 // pred_region
      _
    $region73: #{karma_loop_forward.1} parent=1 // pred_fallthru
      _
    // Predicated region
    $region74: #{karma_loop_forward.1} parent=1 // pred_check
      _
    $region75: #{karma_loop_forward.1} parent=1 // pred_check_branch
      %70 = sbr.rel (0) target = $region77
    $region76: #{karma_loop_forward.1} parent=1 // pred_region
      _
    $region77: #{karma_loop_forward.1} parent=1 // pred_fallthru
      _
    // Predicated region
    $region78: #{karma_loop_forward.1} parent=1 // pred_check
      _
    $region79: #{karma_loop_forward.1} parent=1 // pred_check_branch
      %72 = sbr.rel (0) target = $region81
    $region80: #{karma_loop_forward.1} parent=1 // pred_region
      _
    $region81: #{karma_loop_forward.1} parent=1 // pred_fallthru
      _
    // Predicated region
    $region82: #{karma_loop_forward.1} parent=1 // pred_check
      _
    $region83: #{karma_loop_forward.1} parent=1 // pred_check_branch
      %74 = sbr.rel (0) target = $region85
    $region84: #{karma_loop_forward.1} parent=1 // pred_region
      _
    $region85: #{karma_loop_forward.1} parent=1 // pred_fallthru
      _
    // Predicated region
    $region86: #{karma_loop_forward.1} parent=1 // pred_check
      _
    $region87: #{karma_loop_forward.1} parent=1 // pred_check_branch
      %76 = sbr.rel (0) target = $region89
    $region88: #{karma_loop_forward.1} parent=1 // pred_region
      _
    $region89: #{karma_loop_forward.1} parent=1 // pred_fallthru
      _
    %v78 = vld [vmem:[%s1] sm:$0xff]
    %v79 = vld [vmem:[%s1 + $0x8] sm:$0xff]
    %v80 = vld [vmem:[%s1 + $0x10] sm:$0xff]
    %v81 = vld [vmem:[%s1 + $0x18] sm:$0xff]
    %v82 = vld [vmem:[%s1 + $0x20] sm:$0xff]
    %v83 = vld [vmem:[%s1 + $0x28] sm:$0xff]
    %v84 = vld [vmem:[%s1 + $0x30] sm:$0xff]
    %v85 = vld [vmem:[%s1 + $0x38] sm:$0xff]
    %v86 = vpack.c.bf16 %v79, %v78
    %v87 = vpack.c.bf16 %v81, %v80
    %v88 = vpack.c.bf16 %v83, %v82
    %v89 = vpack.c.bf16 %v85, %v84
    %v90 = vld [vmem:[%s2] sm:$0xff]
    %v91 = vld [vmem:[%s2 + $0x8] sm:$0xff]
    %v92 = vld [vmem:[%s2 + $0x10] sm:$0xff]
    %v93 = vld [vmem:[%s2 + $0x18] sm:$0xff]
    %v94 = vld [vmem:[%s2 + $0x20] sm:$0xff]
    %v95 = vld [vmem:[%s2 + $0x28] sm:$0xff]
    %v96 = vld [vmem:[%s2 + $0x30] sm:$0xff]
    %v97 = vld [vmem:[%s2 + $0x38] sm:$0xff]
    %v98 = vpack.c.bf16 %v91, %v90
    %v99 = vpack.c.bf16 %v93, %v92
    %v100 = vpack.c.bf16 %v95, %v94
    %v101 = vpack.c.bf16 %v97, %v96
    %s102 = sld [smem:[#allocation2]]
    %s103 = ssub.f32 1.0, %s102
    %v104 = vld [vmem:[%s3] sm:$0xff]
    %v105 = vld [vmem:[%s3 + $0x8] sm:$0xff]
    %v106 = vld [vmem:[%s3 + $0x10] sm:$0xff]
    %v107 = vld [vmem:[%s3 + $0x18] sm:$0xff]
    %v108 = vld [vmem:[%s3 + $0x20] sm:$0xff]
    %v109 = vld [vmem:[%s3 + $0x28] sm:$0xff]
    %v110 = vld [vmem:[%s3 + $0x30] sm:$0xff]
    %v111 = vld [vmem:[%s3 + $0x38] sm:$0xff]
    %v112 = vld [vmem:[%s3 + $0x40] sm:$0xff]
    %v113 = vld [vmem:[%s3 + $0x48] sm:$0xff]
    %v114 = vld [vmem:[%s3 + $0x50] sm:$0xff]
    %v115 = vld [vmem:[%s3 + $0x58] sm:$0xff]
    %v116 = vld [vmem:[%s3 + $0x60] sm:$0xff]
    %v117 = vld [vmem:[%s3 + $0x68] sm:$0xff]
    %v118 = vld [vmem:[%s3 + $0x70] sm:$0xff]
    %v119 = vld [vmem:[%s3 + $0x78] sm:$0xff]
    %v120 = vld [vmem:[%s4] sm:$0xff]
    %v121 = vld [vmem:[%s4 + $0x8] sm:$0xff]
    %v122 = vld [vmem:[%s4 + $0x10] sm:$0xff]
    %v123 = vld [vmem:[%s4 + $0x18] sm:$0xff]
    %v124 = vld [vmem:[%s4 + $0x20] sm:$0xff]
    %v125 = vld [vmem:[%s4 + $0x28] sm:$0xff]
    %v126 = vld [vmem:[%s4 + $0x30] sm:$0xff]
    %v127 = vld [vmem:[%s4 + $0x38] sm:$0xff]
    %v128 = vld [vmem:[%s4 + $0x40] sm:$0xff]
    %v129 = vld [vmem:[%s4 + $0x48] sm:$0xff]
    %v130 = vld [vmem:[%s4 + $0x50] sm:$0xff]
    %v131 = vld [vmem:[%s4 + $0x58] sm:$0xff]
    %v132 = vld [vmem:[%s4 + $0x60] sm:$0xff]
    %v133 = vld [vmem:[%s4 + $0x68] sm:$0xff]
    %v134 = vld [vmem:[%s4 + $0x70] sm:$0xff]
    %v135 = vld [vmem:[%s4 + $0x78] sm:$0xff]
    %v152 = vunpack.c.l.b16 %v120
    %v153 = vunpack.c.h.b16 %v120
    %v154 = vunpack.c.l.b16 %v121
    %v155 = vunpack.c.h.b16 %v121
    %v156 = vunpack.c.l.b16 %v122
    %v157 = vunpack.c.h.b16 %v122
    %v158 = vunpack.c.l.b16 %v123
    %v159 = vunpack.c.h.b16 %v123
    %v160 = vunpack.c.l.b16 %v124
    %v161 = vunpack.c.h.b16 %v124
    %v162 = vunpack.c.l.b16 %v125
    %v163 = vunpack.c.h.b16 %v125
    %v164 = vunpack.c.l.b16 %v126
    %v165 = vunpack.c.h.b16 %v126
    %v166 = vunpack.c.l.b16 %v127
    %v167 = vunpack.c.h.b16 %v127
    %v168 = vunpack.c.l.b16 %v128
    %v169 = vunpack.c.h.b16 %v128
    %v170 = vunpack.c.l.b16 %v129
    %v171 = vunpack.c.h.b16 %v129
    %v172 = vunpack.c.l.b16 %v130
    %v173 = vunpack.c.h.b16 %v130
    %v174 = vunpack.c.l.b16 %v131
    %v175 = vunpack.c.h.b16 %v131
    %v176 = vunpack.c.l.b16 %v132
    %v177 = vunpack.c.h.b16 %v132
    %v178 = vunpack.c.l.b16 %v133
    %v179 = vunpack.c.h.b16 %v133
    %v180 = vunpack.c.l.b16 %v134
    %v181 = vunpack.c.h.b16 %v134
    %v182 = vunpack.c.l.b16 %v135
    %v183 = vunpack.c.h.b16 %v135
    %v184 = vpack.c.b16 %v154, %v152
    %v185 = vpack.c.b16 %v155, %v153
    %v186 = vpack.c.b16 %v158, %v156
    %v187 = vpack.c.b16 %v159, %v157
    %v188 = vpack.c.b16 %v162, %v160
    %v189 = vpack.c.b16 %v163, %v161
    %v190 = vpack.c.b16 %v166, %v164
    %v191 = vpack.c.b16 %v167, %v165
    %v192 = vpack.c.b16 %v170, %v168
    %v193 = vpack.c.b16 %v171, %v169
    %v194 = vpack.c.b16 %v174, %v172
    %v195 = vpack.c.b16 %v175, %v173
    %v196 = vpack.c.b16 %v178, %v176
    %v197 = vpack.c.b16 %v179, %v177
    %v198 = vpack.c.b16 %v182, %v180
    %v199 = vpack.c.b16 %v183, %v181
    %216 = vmatpush.bf16.msra.mxu0 %v198
    %217 = vmatpush.bf16.msra.mxu0 %v196
    %218 = vmatpush.bf16.msra.mxu0 %v194
    %219 = vmatpush.bf16.msra.mxu0 %v192
    %220 = vmatpush.bf16.msra.mxu0 %v190
    %221 = vmatpush.bf16.msra.mxu0 %v188
    %222 = vmatpush.bf16.msra.mxu0 %v186
    %223 = vmatpush.bf16.msra.mxu0 %v184
    %224 = vmatmul.bf16.gmra.mxu0 %v98
    %v225 = vpop.f32.mrf.mxu0
    %v226 = vadd.f32 0.0, %v225
    %v227 = vpop.f32.mrf.mxu0
    %v228 = vadd.f32 0.0, %v227
    %229 = vmatmul.bf16.gmra.mxu0 %v99
    %v230 = vpop.f32.mrf.mxu0
    %v231 = vadd.f32 0.0, %v230
    %v232 = vpop.f32.mrf.mxu0
    %v233 = vadd.f32 0.0, %v232
    %234 = vmatmul.bf16.gmra.mxu0 %v100
    %v235 = vpop.f32.mrf.mxu0
    %v236 = vadd.f32 0.0, %v235
    %v237 = vpop.f32.mrf.mxu0
    %v238 = vadd.f32 0.0, %v237
    %239 = vmatmul.bf16.gmra.mxu0 %v101
    %v240 = vpop.f32.mrf.mxu0
    %v241 = vadd.f32 0.0, %v240
    %v242 = vpop.f32.mrf.mxu0
    %v243 = vadd.f32 0.0, %v242
    %244 = vdwg.mxu0
    %245 = vmatpush.bf16.msra.mxu0 %v199
    %246 = vmatpush.bf16.msra.mxu0 %v197
    %247 = vmatpush.bf16.msra.mxu0 %v195
    %248 = vmatpush.bf16.msra.mxu0 %v193
    %249 = vmatpush.bf16.msra.mxu0 %v191
    %250 = vmatpush.bf16.msra.mxu0 %v189
    %251 = vmatpush.bf16.msra.mxu0 %v187
    %252 = vmatpush.bf16.msra.mxu0 %v185
    %253 = vmatmul.bf16.gmra.mxu0 %v98
    %v254 = vpop.f32.mrf.mxu0
    %v255 = vadd.f32 0.0, %v254
    %v256 = vpop.f32.mrf.mxu0
    %v257 = vadd.f32 0.0, %v256
    %258 = vmatmul.bf16.gmra.mxu0 %v99
    %v259 = vpop.f32.mrf.mxu0
    %v260 = vadd.f32 0.0, %v259
    %v261 = vpop.f32.mrf.mxu0
    %v262 = vadd.f32 0.0, %v261
    %263 = vmatmul.bf16.gmra.mxu0 %v100
    %v264 = vpop.f32.mrf.mxu0
    %v265 = vadd.f32 0.0, %v264
    %v266 = vpop.f32.mrf.mxu0
    %v267 = vadd.f32 0.0, %v266
    %268 = vmatmul.bf16.gmra.mxu0 %v101
    %v269 = vpop.f32.mrf.mxu0
    %v270 = vadd.f32 0.0, %v269
    %v271 = vpop.f32.mrf.mxu0
    %v272 = vadd.f32 0.0, %v271
    %273 = vdwg.mxu0
    %v290 = vunpack.c.l.b16 %v104
    %v291 = vunpack.c.h.b16 %v104
    %v292 = vunpack.c.l.b16 %v105
    %v293 = vunpack.c.h.b16 %v105
    %v294 = vunpack.c.l.b16 %v106
    %v295 = vunpack.c.h.b16 %v106
    %v296 = vunpack.c.l.b16 %v107
    %v297 = vunpack.c.h.b16 %v107
    %v298 = vunpack.c.l.b16 %v108
    %v299 = vunpack.c.h.b16 %v108
    %v300 = vunpack.c.l.b16 %v109
    %v301 = vunpack.c.h.b16 %v109
    %v302 = vunpack.c.l.b16 %v110
    %v303 = vunpack.c.h.b16 %v110
    %v304 = vunpack.c.l.b16 %v111
    %v305 = vunpack.c.h.b16 %v111
    %v306 = vunpack.c.l.b16 %v112
    %v307 = vunpack.c.h.b16 %v112
    %v308 = vunpack.c.l.b16 %v113
    %v309 = vunpack.c.h.b16 %v113
    %v310 = vunpack.c.l.b16 %v114
    %v311 = vunpack.c.h.b16 %v114
    %v312 = vunpack.c.l.b16 %v115
    %v313 = vunpack.c.h.b16 %v115
    %v314 = vunpack.c.l.b16 %v116
    %v315 = vunpack.c.h.b16 %v116
    %v316 = vunpack.c.l.b16 %v117
    %v317 = vunpack.c.h.b16 %v117
    %v318 = vunpack.c.l.b16 %v118
    %v319 = vunpack.c.h.b16 %v118
    %v320 = vunpack.c.l.b16 %v119
    %v321 = vunpack.c.h.b16 %v119
    %v322 = vpack.c.b16 %v292, %v290
    %v323 = vpack.c.b16 %v293, %v291
    %v324 = vpack.c.b16 %v296, %v294
    %v325 = vpack.c.b16 %v297, %v295
    %v326 = vpack.c.b16 %v300, %v298
    %v327 = vpack.c.b16 %v301, %v299
    %v328 = vpack.c.b16 %v304, %v302
    %v329 = vpack.c.b16 %v305, %v303
    %v330 = vpack.c.b16 %v308, %v306
    %v331 = vpack.c.b16 %v309, %v307
    %v332 = vpack.c.b16 %v312, %v310
    %v333 = vpack.c.b16 %v313, %v311
    %v334 = vpack.c.b16 %v316, %v314
    %v335 = vpack.c.b16 %v317, %v315
    %v336 = vpack.c.b16 %v320, %v318
    %v337 = vpack.c.b16 %v321, %v319
    %354 = vmatpush.bf16.msra.mxu0 %v336
    %355 = vmatpush.bf16.msra.mxu0 %v334
    %356 = vmatpush.bf16.msra.mxu0 %v332
    %357 = vmatpush.bf16.msra.mxu0 %v330
    %358 = vmatpush.bf16.msra.mxu0 %v328
    %359 = vmatpush.bf16.msra.mxu0 %v326
    %360 = vmatpush.bf16.msra.mxu0 %v324
    %361 = vmatpush.bf16.msra.mxu0 %v322
    %362 = vmatmul.bf16.gmra.mxu0 %v86
    %v363 = vpop.f32.mrf.mxu0
    %v364 = vadd.f32 %v226, %v363
    %v365 = vpop.f32.mrf.mxu0
    %v366 = vadd.f32 %v228, %v365
    %367 = vmatmul.bf16.gmra.mxu0 %v87
    %v368 = vpop.f32.mrf.mxu0
    %v369 = vadd.f32 %v231, %v368
    %v370 = vpop.f32.mrf.mxu0
    %v371 = vadd.f32 %v233, %v370
    %372 = vmatmul.bf16.gmra.mxu0 %v88
    %v373 = vpop.f32.mrf.mxu0
    %v374 = vadd.f32 %v236, %v373
    %v375 = vpop.f32.mrf.mxu0
    %v376 = vadd.f32 %v238, %v375
    %377 = vmatmul.bf16.gmra.mxu0 %v89
    %v378 = vpop.f32.mrf.mxu0
    %v379 = vadd.f32 %v241, %v378
    %v380 = vpop.f32.mrf.mxu0
    %v381 = vadd.f32 %v243, %v380
    %382 = vdwg.mxu0
    %383 = vmatpush.bf16.msra.mxu0 %v337
    %384 = vmatpush.bf16.msra.mxu0 %v335
    %385 = vmatpush.bf16.msra.mxu0 %v333
    %386 = vmatpush.bf16.msra.mxu0 %v331
    %387 = vmatpush.bf16.msra.mxu0 %v329
    %388 = vmatpush.bf16.msra.mxu0 %v327
    %389 = vmatpush.bf16.msra.mxu0 %v325
    %390 = vmatpush.bf16.msra.mxu0 %v323
    %391 = vmatmul.bf16.gmra.mxu0 %v86
    %v392 = vpop.f32.mrf.mxu0
    %v393 = vadd.f32 %v255, %v392
    %v394 = vpop.f32.mrf.mxu0
    %v395 = vadd.f32 %v257, %v394
    %396 = vmatmul.bf16.gmra.mxu0 %v87
    %v397 = vpop.f32.mrf.mxu0
    %v398 = vadd.f32 %v260, %v397
    %v399 = vpop.f32.mrf.mxu0
    %v400 = vadd.f32 %v262, %v399
    %401 = vmatmul.bf16.gmra.mxu0 %v88
    %v402 = vpop.f32.mrf.mxu0
    %v403 = vadd.f32 %v265, %v402
    %v404 = vpop.f32.mrf.mxu0
    %v405 = vadd.f32 %v267, %v404
    %406 = vmatmul.bf16.gmra.mxu0 %v89
    %v407 = vpop.f32.mrf.mxu0
    %v408 = vadd.f32 %v270, %v407
    %v409 = vpop.f32.mrf.mxu0
    %v410 = vadd.f32 %v272, %v409
    %411 = vdwg.mxu0
    %v412 = vld [vmem:[%s5] sm:$0x3]
    %v414 = vperm.slane %v412, 0
    %v415 = vperm.slane %v412, 1
    %v418 = vadd.f32 %v364, %v414
    %v419 = vadd.f32 %v393, %v415
    %v420 = vadd.f32 %v366, %v414
    %v421 = vadd.f32 %v395, %v415
    %v422 = vadd.f32 %v369, %v414
    %v423 = vadd.f32 %v398, %v415
    %v424 = vadd.f32 %v371, %v414
    %v425 = vadd.f32 %v400, %v415
    %v426 = vadd.f32 %v374, %v414
    %v427 = vadd.f32 %v403, %v415
    %v428 = vadd.f32 %v376, %v414
    %v429 = vadd.f32 %v405, %v415
    %v430 = vadd.f32 %v379, %v414
    %v431 = vadd.f32 %v408, %v415
    %v432 = vadd.f32 %v381, %v414
    %v433 = vadd.f32 %v410, %v415
    %vm434 = vcmp.gt.f32.partialorder %v418, 0.0
    %vm435 = vcmp.gt.f32.partialorder %v419, 0.0
    %vm436 = vcmp.gt.f32.partialorder %v420, 0.0
    %vm437 = vcmp.gt.f32.partialorder %v421, 0.0
    %vm438 = vcmp.gt.f32.partialorder %v422, 0.0
    %vm439 = vcmp.gt.f32.partialorder %v423, 0.0
    %vm440 = vcmp.gt.f32.partialorder %v424, 0.0
    %vm441 = vcmp.gt.f32.partialorder %v425, 0.0
    %vm442 = vcmp.gt.f32.partialorder %v426, 0.0
    %vm443 = vcmp.gt.f32.partialorder %v427, 0.0
    %vm444 = vcmp.gt.f32.partialorder %v428, 0.0
    %vm445 = vcmp.gt.f32.partialorder %v429, 0.0
    %vm446 = vcmp.gt.f32.partialorder %v430, 0.0
    %vm447 = vcmp.gt.f32.partialorder %v431, 0.0
    %vm448 = vcmp.gt.f32.partialorder %v432, 0.0
    %vm449 = vcmp.gt.f32.partialorder %v433, 0.0
    %v450 = vmul.f32 %v418, 0.01
    %v451 = vmul.f32 %v419, 0.01
    %v452 = vmul.f32 %v420, 0.01
    %v453 = vmul.f32 %v421, 0.01
    %v454 = vmul.f32 %v422, 0.01
    %v455 = vmul.f32 %v423, 0.01
    %v456 = vmul.f32 %v424, 0.01
    %v457 = vmul.f32 %v425, 0.01
    %v458 = vmul.f32 %v426, 0.01
    %v459 = vmul.f32 %v427, 0.01
    %v460 = vmul.f32 %v428, 0.01
    %v461 = vmul.f32 %v429, 0.01
    %v462 = vmul.f32 %v430, 0.01
    %v463 = vmul.f32 %v431, 0.01
    %v464 = vmul.f32 %v432, 0.01
    %v465 = vmul.f32 %v433, 0.01
    %v466 = vsel %vm434, %v418, %v450
    %v467 = vsel %vm435, %v419, %v451
    %v468 = vsel %vm436, %v420, %v452
    %v469 = vsel %vm437, %v421, %v453
    %v470 = vsel %vm438, %v422, %v454
    %v471 = vsel %vm439, %v423, %v455
    %v472 = vsel %vm440, %v424, %v456
    %v473 = vsel %vm441, %v425, %v457
    %v474 = vsel %vm442, %v426, %v458
    %v475 = vsel %vm443, %v427, %v459
    %v476 = vsel %vm444, %v428, %v460
    %v477 = vsel %vm445, %v429, %v461
    %v478 = vsel %vm446, %v430, %v462
    %v479 = vsel %vm447, %v431, %v463
    %v480 = vsel %vm448, %v432, %v464
    %v481 = vsel %vm449, %v433, %v465
    %v482 = vpack.c.bf16 %v468, %v466
    %v483 = vpack.c.bf16 %v469, %v467
    %v484 = vpack.c.bf16 %v472, %v470
    %v485 = vpack.c.bf16 %v473, %v471
    %v486 = vpack.c.bf16 %v476, %v474
    %v487 = vpack.c.bf16 %v477, %v475
    %v488 = vpack.c.bf16 %v480, %v478
    %v489 = vpack.c.bf16 %v481, %v479
    %v490 = vld [vmem:[%s6] sm:$0xf]
    %v491 = vld [vmem:[%s6 + $0x4] sm:$0xf]
    %v492 = vld [vmem:[%s6 + $0x8] sm:$0xf]
    %v493 = vld [vmem:[%s6 + $0xc] sm:$0xf]
    %v494 = vld [vmem:[%s6 + $0x10] sm:$0xf]
    %v495 = vld [vmem:[%s6 + $0x14] sm:$0xf]
    %v496 = vld [vmem:[%s6 + $0x18] sm:$0xf]
    %v497 = vld [vmem:[%s6 + $0x1c] sm:$0xf]
    %v498 = vld [vmem:[%s6 + $0x20] sm:$0xf]
    %v499 = vld [vmem:[%s6 + $0x24] sm:$0xf]
    %v500 = vld [vmem:[%s6 + $0x28] sm:$0xf]
    %v501 = vld [vmem:[%s6 + $0x2c] sm:$0xf]
    %v502 = vld [vmem:[%s6 + $0x30] sm:$0xf]
    %v503 = vld [vmem:[%s6 + $0x34] sm:$0xf]
    %v504 = vld [vmem:[%s6 + $0x38] sm:$0xf]
    %v505 = vld [vmem:[%s6 + $0x3c] sm:$0xf]
    %v506 = vld [vmem:[%s6 + $0x40] sm:$0xf]
    %v507 = vld [vmem:[%s6 + $0x44] sm:$0xf]
    %v508 = vld [vmem:[%s6 + $0x48] sm:$0xf]
    %v509 = vld [vmem:[%s6 + $0x4c] sm:$0xf]
    %v510 = vld [vmem:[%s6 + $0x50] sm:$0xf]
    %v511 = vld [vmem:[%s6 + $0x54] sm:$0xf]
    %v512 = vld [vmem:[%s6 + $0x58] sm:$0xf]
    %v513 = vld [vmem:[%s6 + $0x5c] sm:$0xf]
    %v514 = vld [vmem:[%s6 + $0x60] sm:$0xf]
    %v515 = vld [vmem:[%s6 + $0x64] sm:$0xf]
    %v516 = vld [vmem:[%s6 + $0x68] sm:$0xf]
    %v517 = vld [vmem:[%s6 + $0x6c] sm:$0xf]
    %v518 = vld [vmem:[%s6 + $0x70] sm:$0xf]
    %v519 = vld [vmem:[%s6 + $0x74] sm:$0xf]
    %v520 = vld [vmem:[%s6 + $0x78] sm:$0xf]
    %v521 = vld [vmem:[%s6 + $0x7c] sm:$0xf]
    %v522 = vld [vmem:[%s7] sm:$0x1]
    %v524 = vperm.slane %v522, 0
    %v558 = vunpack.c.l.b16 %v490
    %v559 = vunpack.c.l.b16 %v491
    %v560 = vunpack.c.l.b16 %v492
    %v561 = vunpack.c.l.b16 %v493
    %v562 = vunpack.c.l.b16 %v494
    %v563 = vunpack.c.l.b16 %v495
    %v564 = vunpack.c.l.b16 %v496
    %v565 = vunpack.c.l.b16 %v497
    %v566 = vunpack.c.l.b16 %v498
    %v567 = vunpack.c.l.b16 %v499
    %v568 = vunpack.c.l.b16 %v500
    %v569 = vunpack.c.l.b16 %v501
    %v570 = vunpack.c.l.b16 %v502
    %v571 = vunpack.c.l.b16 %v503
    %v572 = vunpack.c.l.b16 %v504
    %v573 = vunpack.c.l.b16 %v505
    %v574 = vunpack.c.l.b16 %v506
    %v575 = vunpack.c.l.b16 %v507
    %v576 = vunpack.c.l.b16 %v508
    %v577 = vunpack.c.l.b16 %v509
    %v578 = vunpack.c.l.b16 %v510
    %v579 = vunpack.c.l.b16 %v511
    %v580 = vunpack.c.l.b16 %v512
    %v581 = vunpack.c.l.b16 %v513
    %v582 = vunpack.c.l.b16 %v514
    %v583 = vunpack.c.l.b16 %v515
    %v584 = vunpack.c.l.b16 %v516
    %v585 = vunpack.c.l.b16 %v517
    %v586 = vunpack.c.l.b16 %v518
    %v587 = vunpack.c.l.b16 %v519
    %v588 = vunpack.c.l.b16 %v520
    %v589 = vunpack.c.l.b16 %v521
    %v590 = vpack.c.b16 %v559, %v558
    %v591 = vpack.c.b16 %v561, %v560
    %v592 = vpack.c.b16 %v563, %v562
    %v593 = vpack.c.b16 %v565, %v564
    %v594 = vpack.c.b16 %v567, %v566
    %v595 = vpack.c.b16 %v569, %v568
    %v596 = vpack.c.b16 %v571, %v570
    %v597 = vpack.c.b16 %v573, %v572
    %v598 = vpack.c.b16 %v575, %v574
    %v599 = vpack.c.b16 %v577, %v576
    %v600 = vpack.c.b16 %v579, %v578
    %v601 = vpack.c.b16 %v581, %v580
    %v602 = vpack.c.b16 %v583, %v582
    %v603 = vpack.c.b16 %v585, %v584
    %v604 = vpack.c.b16 %v587, %v586
    %v605 = vpack.c.b16 %v589, %v588
    %622 = vmatpush.bf16.msra.mxu0 %v597
    %623 = vmatpush.bf16.msra.mxu0 %v596
    %624 = vmatpush.bf16.msra.mxu0 %v595
    %625 = vmatpush.bf16.msra.mxu0 %v594
    %626 = vmatpush.bf16.msra.mxu0 %v593
    %627 = vmatpush.bf16.msra.mxu0 %v592
    %628 = vmatpush.bf16.msra.mxu0 %v591
    %629 = vmatpush.bf16.msra.mxu0 %v590
    %630 = vmatmul.bf16.gmra.mxu0 %v482
    %v631 = vpop.f32.mrf.mxu0
    %v632 = vadd.f32 %v524, %v631
    %v633 = vpop.f32.mrf.mxu0
    %v634 = vadd.f32 %v524, %v633
    %635 = vmatmul.bf16.gmra.mxu0 %v484
    %v636 = vpop.f32.mrf.mxu0
    %v637 = vadd.f32 %v524, %v636
    %v638 = vpop.f32.mrf.mxu0
    %v639 = vadd.f32 %v524, %v638
    %640 = vmatmul.bf16.gmra.mxu0 %v486
    %v641 = vpop.f32.mrf.mxu0
    %v642 = vadd.f32 %v524, %v641
    %v643 = vpop.f32.mrf.mxu0
    %v644 = vadd.f32 %v524, %v643
    %645 = vmatmul.bf16.gmra.mxu0 %v488
    %v646 = vpop.f32.mrf.mxu0
    %v647 = vadd.f32 %v524, %v646
    %v648 = vpop.f32.mrf.mxu0
    %v649 = vadd.f32 %v524, %v648
    %650 = vdwg.mxu0
    %651 = vmatpush.bf16.msra.mxu0 %v605
    %652 = vmatpush.bf16.msra.mxu0 %v604
    %653 = vmatpush.bf16.msra.mxu0 %v603
    %654 = vmatpush.bf16.msra.mxu0 %v602
    %655 = vmatpush.bf16.msra.mxu0 %v601
    %656 = vmatpush.bf16.msra.mxu0 %v600
    %657 = vmatpush.bf16.msra.mxu0 %v599
    %658 = vmatpush.bf16.msra.mxu0 %v598
    %659 = vmatmul.bf16.gmra.mxu0 %v483
    %v660 = vpop.f32.mrf.mxu0
    %v661 = vadd.f32 %v632, %v660
    %v662 = vpop.f32.mrf.mxu0
    %v663 = vadd.f32 %v634, %v662
    %664 = vmatmul.bf16.gmra.mxu0 %v485
    %v665 = vpop.f32.mrf.mxu0
    %v666 = vadd.f32 %v637, %v665
    %v667 = vpop.f32.mrf.mxu0
    %v668 = vadd.f32 %v639, %v667
    %669 = vmatmul.bf16.gmra.mxu0 %v487
    %v670 = vpop.f32.mrf.mxu0
    %v671 = vadd.f32 %v642, %v670
    %v672 = vpop.f32.mrf.mxu0
    %v673 = vadd.f32 %v644, %v672
    %674 = vmatmul.bf16.gmra.mxu0 %v489
    %v675 = vpop.f32.mrf.mxu0
    %v676 = vadd.f32 %v647, %v675
    %v677 = vpop.f32.mrf.mxu0
    %v678 = vadd.f32 %v649, %v677
    %679 = vdwg.mxu0
    %v680 = vstv %s102
    %v681 = vmul.f32 %v680, %v661
    %v682 = vmul.f32 %v680, %v663
    %v683 = vmul.f32 %v680, %v666
    %v684 = vmul.f32 %v680, %v668
    %v685 = vmul.f32 %v680, %v671
    %v686 = vmul.f32 %v680, %v673
    %v687 = vmul.f32 %v680, %v676
    %v688 = vmul.f32 %v680, %v678
    %689 = vst [vmem:[#allocation3] sm:$0xff] %v681
    %690 = vst [vmem:[#allocation3 + $0x8] sm:$0xff] %v682
    %691 = vst [vmem:[#allocation3 + $0x10] sm:$0xff] %v683
    %692 = vst [vmem:[#allocation3 + $0x18] sm:$0xff] %v684
    %693 = vst [vmem:[#allocation3 + $0x20] sm:$0xff] %v685
    %694 = vst [vmem:[#allocation3 + $0x28] sm:$0xff] %v686
    %695 = vst [vmem:[#allocation3 + $0x30] sm:$0xff] %v687
    %696 = vst [vmem:[#allocation3 + $0x38] sm:$0xff] %v688
    %v697 = vld [vmem:[%s8] sm:$0xf]
    %v698 = vld [vmem:[%s8 + $0x4] sm:$0xf]
    %v699 = vld [vmem:[%s8 + $0x8] sm:$0xf]
    %v700 = vld [vmem:[%s8 + $0xc] sm:$0xf]
    %v701 = vld [vmem:[%s8 + $0x10] sm:$0xf]
    %v702 = vld [vmem:[%s8 + $0x14] sm:$0xf]
    %v703 = vld [vmem:[%s8 + $0x18] sm:$0xf]
    %v704 = vld [vmem:[%s8 + $0x1c] sm:$0xf]
    %v705 = vld [vmem:[%s8 + $0x20] sm:$0xf]
    %v706 = vld [vmem:[%s8 + $0x24] sm:$0xf]
    %v707 = vld [vmem:[%s8 + $0x28] sm:$0xf]
    %v708 = vld [vmem:[%s8 + $0x2c] sm:$0xf]
    %v709 = vld [vmem:[%s8 + $0x30] sm:$0xf]
    %v710 = vld [vmem:[%s8 + $0x34] sm:$0xf]
    %v711 = vld [vmem:[%s8 + $0x38] sm:$0xf]
    %v712 = vld [vmem:[%s8 + $0x3c] sm:$0xf]
    %v713 = vld [vmem:[%s11] sm:$0x1]
    %v715 = vperm.slane %v713, 0
    %v733 = vunpack.c.l.b16 %v697
    %v734 = vunpack.c.l.b16 %v698
    %v735 = vunpack.c.l.b16 %v699
    %v736 = vunpack.c.l.b16 %v700
    %v737 = vunpack.c.l.b16 %v701
    %v738 = vunpack.c.l.b16 %v702
    %v739 = vunpack.c.l.b16 %v703
    %v740 = vunpack.c.l.b16 %v704
    %v741 = vunpack.c.l.b16 %v705
    %v742 = vunpack.c.l.b16 %v706
    %v743 = vunpack.c.l.b16 %v707
    %v744 = vunpack.c.l.b16 %v708
    %v745 = vunpack.c.l.b16 %v709
    %v746 = vunpack.c.l.b16 %v710
    %v747 = vunpack.c.l.b16 %v711
    %v748 = vunpack.c.l.b16 %v712
    %v749 = vpack.c.b16 %v734, %v733
    %v750 = vpack.c.b16 %v736, %v735
    %v751 = vpack.c.b16 %v738, %v737
    %v752 = vpack.c.b16 %v740, %v739
    %v753 = vpack.c.b16 %v742, %v741
    %v754 = vpack.c.b16 %v744, %v743
    %v755 = vpack.c.b16 %v746, %v745
    %v756 = vpack.c.b16 %v748, %v747
    %765 = vmatpush.bf16.msra.mxu0 %v756
    %766 = vmatpush.bf16.msra.mxu0 %v755
    %767 = vmatpush.bf16.msra.mxu0 %v754
    %768 = vmatpush.bf16.msra.mxu0 %v753
    %769 = vmatpush.bf16.msra.mxu0 %v752
    %770 = vmatpush.bf16.msra.mxu0 %v751
    %771 = vmatpush.bf16.msra.mxu0 %v750
    %772 = vmatpush.bf16.msra.mxu0 %v749
    %773 = vmatmul.bf16.gmra.mxu0 %v86
    %v774 = vpop.f32.mrf.mxu0
    %v775 = vadd.f32 %v715, %v774
    %v776 = vpop.f32.mrf.mxu0
    %v777 = vadd.f32 %v715, %v776
    %778 = vmatmul.bf16.gmra.mxu0 %v87
    %v779 = vpop.f32.mrf.mxu0
    %v780 = vadd.f32 %v715, %v779
    %v781 = vpop.f32.mrf.mxu0
    %v782 = vadd.f32 %v715, %v781
    %783 = vmatmul.bf16.gmra.mxu0 %v88
    %v784 = vpop.f32.mrf.mxu0
    %v785 = vadd.f32 %v715, %v784
    %v786 = vpop.f32.mrf.mxu0
    %v787 = vadd.f32 %v715, %v786
    %788 = vmatmul.bf16.gmra.mxu0 %v89
    %v789 = vpop.f32.mrf.mxu0
    %v790 = vadd.f32 %v715, %v789
    %v791 = vpop.f32.mrf.mxu0
    %v792 = vadd.f32 %v715, %v791
    %793 = vdwg.mxu0
    %v794 = vld [vmem:[%s9] sm:$0xf]
    %v795 = vld [vmem:[%s9 + $0x4] sm:$0xf]
    %v796 = vld [vmem:[%s9 + $0x8] sm:$0xf]
    %v797 = vld [vmem:[%s9 + $0xc] sm:$0xf]
    %v798 = vld [vmem:[%s9 + $0x10] sm:$0xf]
    %v799 = vld [vmem:[%s9 + $0x14] sm:$0xf]
    %v800 = vld [vmem:[%s9 + $0x18] sm:$0xf]
    %v801 = vld [vmem:[%s9 + $0x1c] sm:$0xf]
    %v802 = vld [vmem:[%s9 + $0x20] sm:$0xf]
    %v803 = vld [vmem:[%s9 + $0x24] sm:$0xf]
    %v804 = vld [vmem:[%s9 + $0x28] sm:$0xf]
    %v805 = vld [vmem:[%s9 + $0x2c] sm:$0xf]
    %v806 = vld [vmem:[%s9 + $0x30] sm:$0xf]
    %v807 = vld [vmem:[%s9 + $0x34] sm:$0xf]
    %v808 = vld [vmem:[%s9 + $0x38] sm:$0xf]
    %v809 = vld [vmem:[%s9 + $0x3c] sm:$0xf]
    %v810 = vld [vmem:[%s12] sm:$0x1]
    %v812 = vperm.slane %v810, 0
    %v830 = vunpack.c.l.b16 %v794
    %v831 = vunpack.c.l.b16 %v795
    %v832 = vunpack.c.l.b16 %v796
    %v833 = vunpack.c.l.b16 %v797
    %v834 = vunpack.c.l.b16 %v798
    %v835 = vunpack.c.l.b16 %v799
    %v836 = vunpack.c.l.b16 %v800
    %v837 = vunpack.c.l.b16 %v801
    %v838 = vunpack.c.l.b16 %v802
    %v839 = vunpack.c.l.b16 %v803
    %v840 = vunpack.c.l.b16 %v804
    %v841 = vunpack.c.l.b16 %v805
    %v842 = vunpack.c.l.b16 %v806
    %v843 = vunpack.c.l.b16 %v807
    %v844 = vunpack.c.l.b16 %v808
    %v845 = vunpack.c.l.b16 %v809
    %v846 = vpack.c.b16 %v831, %v830
    %v847 = vpack.c.b16 %v833, %v832
    %v848 = vpack.c.b16 %v835, %v834
    %v849 = vpack.c.b16 %v837, %v836
    %v850 = vpack.c.b16 %v839, %v838
    %v851 = vpack.c.b16 %v841, %v840
    %v852 = vpack.c.b16 %v843, %v842
    %v853 = vpack.c.b16 %v845, %v844
    %862 = vmatpush.bf16.msra.mxu0 %v853
    %863 = vmatpush.bf16.msra.mxu0 %v852
    %864 = vmatpush.bf16.msra.mxu0 %v851
    %865 = vmatpush.bf16.msra.mxu0 %v850
    %866 = vmatpush.bf16.msra.mxu0 %v849
    %867 = vmatpush.bf16.msra.mxu0 %v848
    %868 = vmatpush.bf16.msra.mxu0 %v847
    %869 = vmatpush.bf16.msra.mxu0 %v846
    %870 = vmatmul.bf16.gmra.mxu0 %v98
    %v871 = vpop.f32.mrf.mxu0
    %v872 = vadd.f32 %v812, %v871
    %v873 = vpop.f32.mrf.mxu0
    %v874 = vadd.f32 %v812, %v873
    %875 = vmatmul.bf16.gmra.mxu0 %v99
    %v876 = vpop.f32.mrf.mxu0
    %v877 = vadd.f32 %v812, %v876
    %v878 = vpop.f32.mrf.mxu0
    %v879 = vadd.f32 %v812, %v878
    %880 = vmatmul.bf16.gmra.mxu0 %v100
    %v881 = vpop.f32.mrf.mxu0
    %v882 = vadd.f32 %v812, %v881
    %v883 = vpop.f32.mrf.mxu0
    %v884 = vadd.f32 %v812, %v883
    %885 = vmatmul.bf16.gmra.mxu0 %v101
    %v886 = vpop.f32.mrf.mxu0
    %v887 = vadd.f32 %v812, %v886
    %v888 = vpop.f32.mrf.mxu0
    %v889 = vadd.f32 %v812, %v888
    %890 = vdwg.mxu0
    %v891 = vld [vmem:[%s10] sm:$0xf]
    %v892 = vld [vmem:[%s10 + $0x4] sm:$0xf]
    %v893 = vld [vmem:[%s10 + $0x8] sm:$0xf]
    %v894 = vld [vmem:[%s10 + $0xc] sm:$0xf]
    %v895 = vld [vmem:[%s10 + $0x10] sm:$0xf]
    %v896 = vld [vmem:[%s10 + $0x14] sm:$0xf]
    %v897 = vld [vmem:[%s10 + $0x18] sm:$0xf]
    %v898 = vld [vmem:[%s10 + $0x1c] sm:$0xf]
    %v899 = vld [vmem:[%s10 + $0x20] sm:$0xf]
    %v900 = vld [vmem:[%s10 + $0x24] sm:$0xf]
    %v901 = vld [vmem:[%s10 + $0x28] sm:$0xf]
    %v902 = vld [vmem:[%s10 + $0x2c] sm:$0xf]
    %v903 = vld [vmem:[%s10 + $0x30] sm:$0xf]
    %v904 = vld [vmem:[%s10 + $0x34] sm:$0xf]
    %v905 = vld [vmem:[%s10 + $0x38] sm:$0xf]
    %v906 = vld [vmem:[%s10 + $0x3c] sm:$0xf]
    %v907 = vld [vmem:[%s13] sm:$0x1]
    %v909 = vperm.slane %v907, 0
    %v927 = vunpack.c.l.b16 %v891
    %v928 = vunpack.c.l.b16 %v892
    %v929 = vunpack.c.l.b16 %v893
    %v930 = vunpack.c.l.b16 %v894
    %v931 = vunpack.c.l.b16 %v895
    %v932 = vunpack.c.l.b16 %v896
    %v933 = vunpack.c.l.b16 %v897
    %v934 = vunpack.c.l.b16 %v898
    %v935 = vunpack.c.l.b16 %v899
    %v936 = vunpack.c.l.b16 %v900
    %v937 = vunpack.c.l.b16 %v901
    %v938 = vunpack.c.l.b16 %v902
    %v939 = vunpack.c.l.b16 %v903
    %v940 = vunpack.c.l.b16 %v904
    %v941 = vunpack.c.l.b16 %v905
    %v942 = vunpack.c.l.b16 %v906
    %v943 = vpack.c.b16 %v928, %v927
    %v944 = vpack.c.b16 %v930, %v929
    %v945 = vpack.c.b16 %v932, %v931
    %v946 = vpack.c.b16 %v934, %v933
    %v947 = vpack.c.b16 %v936, %v935
    %v948 = vpack.c.b16 %v938, %v937
    %v949 = vpack.c.b16 %v940, %v939
    %v950 = vpack.c.b16 %v942, %v941
    %959 = vmatpush.bf16.msra.mxu0 %v950
    %960 = vmatpush.bf16.msra.mxu0 %v949
    %961 = vmatpush.bf16.msra.mxu0 %v948
    %962 = vmatpush.bf16.msra.mxu0 %v947
    %963 = vmatpush.bf16.msra.mxu0 %v946
    %964 = vmatpush.bf16.msra.mxu0 %v945
    %965 = vmatpush.bf16.msra.mxu0 %v944
    %966 = vmatpush.bf16.msra.mxu0 %v943
    %967 = vmatmul.bf16.gmra.mxu0 %v98
    %v968 = vpop.f32.mrf.mxu0
    %v969 = vadd.f32 %v909, %v968
    %v970 = vpop.f32.mrf.mxu0
    %v971 = vadd.f32 %v909, %v970
    %972 = vmatmul.bf16.gmra.mxu0 %v99
    %v973 = vpop.f32.mrf.mxu0
    %v974 = vadd.f32 %v909, %v973
    %v975 = vpop.f32.mrf.mxu0
    %v976 = vadd.f32 %v909, %v975
    %977 = vmatmul.bf16.gmra.mxu0 %v100
    %v978 = vpop.f32.mrf.mxu0
    %v979 = vadd.f32 %v909, %v978
    %v980 = vpop.f32.mrf.mxu0
    %v981 = vadd.f32 %v909, %v980
    %982 = vmatmul.bf16.gmra.mxu0 %v101
    %v983 = vpop.f32.mrf.mxu0
    %v984 = vadd.f32 %v909, %v983
    %v985 = vpop.f32.mrf.mxu0
    %v986 = vadd.f32 %v909, %v985
    %987 = vdwg.mxu0
    %v988 = vpack.c.bf16 %v777, %v775
    %v989 = vpack.c.bf16 %v782, %v780
    %v990 = vpack.c.bf16 %v787, %v785
    %v991 = vpack.c.bf16 %v792, %v790
    %v992 = vpack.c.bf16 %v874, %v872
    %v993 = vpack.c.bf16 %v879, %v877
    %v994 = vpack.c.bf16 %v884, %v882
    %v995 = vpack.c.bf16 %v889, %v887
    %vm996 = vcmask 261120
    %v998 = vsel %vm996, %v988, 0
    %v1001 = vsel %vm996, %v989, 0
    %v1004 = vsel %vm996, %v990, 0
    %v1007 = vsel %vm996, %v991, 0
    %v1010 = vsel %vm996, %v992, 0
    %v1013 = vsel %vm996, %v993, 0
    %v1016 = vsel %vm996, %v994, 0
    %v1019 = vsel %vm996, %v995, 0
    %1021 = vmatpush.bf16.xpose.msra.mxu0 0
    %1022 = vmatpush.bf16.xpose.msra.mxu0 0
    %1023 = vmatpush.bf16.xpose.msra.mxu0 0
    %1024 = vmatpush.bf16.xpose.msra.mxu0 0
    %1025 = vmatpush.bf16.xpose.msra.mxu0 %v1019
    %1026 = vmatpush.bf16.xpose.msra.mxu0 %v1016
    %1027 = vmatpush.bf16.xpose.msra.mxu0 %v1013
    %1028 = vmatpush.bf16.xpose.msra.mxu0 %v1010
    %1029 = vmatmul.bf16.gmra.mxu0 %v998
    %v1030 = vpop.f32.mrf.mxu0
    %v1031 = vadd.f32 0.0, %v1030
    %v1032 = vpop.f32.mrf.mxu0
    %v1033 = vadd.f32 0.0, %v1032
    %1034 = vmatmul.bf16.gmra.mxu0 %v1001
    %v1035 = vpop.f32.mrf.mxu0
    %v1036 = vadd.f32 0.0, %v1035
    %v1037 = vpop.f32.mrf.mxu0
    %v1038 = vadd.f32 0.0, %v1037
    %1039 = vmatmul.bf16.gmra.mxu0 %v1004
    %v1040 = vpop.f32.mrf.mxu0
    %v1041 = vadd.f32 0.0, %v1040
    %v1042 = vpop.f32.mrf.mxu0
    %v1043 = vadd.f32 0.0, %v1042
    %1044 = vmatmul.bf16.gmra.mxu0 %v1007
    %v1045 = vpop.f32.mrf.mxu0
    %v1046 = vadd.f32 0.0, %v1045
    %v1047 = vpop.f32.mrf.mxu0
    %v1048 = vadd.f32 0.0, %v1047
    %1049 = vdwg.mxu0
    %v1050 = vmul.f32 %v1031, 0.17677669
    %v1051 = vmul.f32 %v1033, 0.17677669
    %v1052 = vmul.f32 %v1036, 0.17677669
    %v1053 = vmul.f32 %v1038, 0.17677669
    %v1054 = vmul.f32 %v1041, 0.17677669
    %v1055 = vmul.f32 %v1043, 0.17677669
    %v1056 = vmul.f32 %v1046, 0.17677669
    %v1057 = vmul.f32 %v1048, 0.17677669
    %vm1058 = vcmask 523264
    %v1059 = vsel %vm1058, %v1050, -inf
    %1060 = vmax.xlane.f32.xlu0 %v1059
    %v1061 = vpop.xlane.xlu0 %1060
    %v1062 = vsel %vm1058, %v1051, -inf
    %1063 = vmax.xlane.f32.xlu0 %v1062
    %v1064 = vpop.xlane.xlu0 %1063
    %v1065 = vsel %vm1058, %v1052, -inf
    %1066 = vmax.xlane.f32.xlu0 %v1065
    %v1067 = vpop.xlane.xlu0 %1066
    %v1068 = vsel %vm1058, %v1053, -inf
    %1069 = vmax.xlane.f32.xlu0 %v1068
    %v1070 = vpop.xlane.xlu0 %1069
    %v1071 = vsel %vm1058, %v1054, -inf
    %1072 = vmax.xlane.f32.xlu0 %v1071
    %v1073 = vpop.xlane.xlu0 %1072
    %v1074 = vsel %vm1058, %v1055, -inf
    %1075 = vmax.xlane.f32.xlu0 %v1074
    %v1076 = vpop.xlane.xlu0 %1075
    %v1077 = vsel %vm1058, %v1056, -inf
    %1078 = vmax.xlane.f32.xlu0 %v1077
    %v1079 = vpop.xlane.xlu0 %1078
    %v1080 = vsel %vm1058, %v1057, -inf
    %1081 = vmax.xlane.f32.xlu0 %v1080
    %v1082 = vpop.xlane.xlu0 %1081
    %v1083 = vsub.f32 %v1050, %v1061
    %v1084 = vsub.f32 %v1051, %v1064
    %v1085 = vsub.f32 %v1052, %v1067
    %v1086 = vsub.f32 %v1053, %v1070
    %v1087 = vsub.f32 %v1054, %v1073
    %v1088 = vsub.f32 %v1055, %v1076
    %v1089 = vsub.f32 %v1056, %v1079
    %v1090 = vsub.f32 %v1057, %v1082
    %v1091 = vmul.f32 %v1083, 1.442695
    %v1092 = vpow.pop %v1091
    %v1093 = vmul.f32 %v1084, 1.442695
    %v1094 = vpow.pop %v1093
    %v1095 = vmul.f32 %v1085, 1.442695
    %v1096 = vpow.pop %v1095
    %v1097 = vmul.f32 %v1086, 1.442695
    %v1098 = vpow.pop %v1097
    %v1099 = vmul.f32 %v1087, 1.442695
    %v1100 = vpow.pop %v1099
    %v1101 = vmul.f32 %v1088, 1.442695
    %v1102 = vpow.pop %v1101
    %v1103 = vmul.f32 %v1089, 1.442695
    %v1104 = vpow.pop %v1103
    %v1105 = vmul.f32 %v1090, 1.442695
    %v1106 = vpow.pop %v1105
    %v1107 = vsel %vm1058, %v1092, 0.0
    %1108 = vadd.xlane.f32.xlu0 %v1107
    %v1109 = vpop.xlane.xlu0 %1108
    %v1110 = vsel %vm1058, %v1094, 0.0
    %1111 = vadd.xlane.f32.xlu0 %v1110
    %v1112 = vpop.xlane.xlu0 %1111
    %v1113 = vsel %vm1058, %v1096, 0.0
    %1114 = vadd.xlane.f32.xlu0 %v1113
    %v1115 = vpop.xlane.xlu0 %1114
    %v1116 = vsel %vm1058, %v1098, 0.0
    %1117 = vadd.xlane.f32.xlu0 %v1116
    %v1118 = vpop.xlane.xlu0 %1117
    %v1119 = vsel %vm1058, %v1100, 0.0
    %1120 = vadd.xlane.f32.xlu0 %v1119
    %v1121 = vpop.xlane.xlu0 %1120
    %v1122 = vsel %vm1058, %v1102, 0.0
    %1123 = vadd.xlane.f32.xlu0 %v1122
    %v1124 = vpop.xlane.xlu0 %1123
    %v1125 = vsel %vm1058, %v1104, 0.0
    %1126 = vadd.xlane.f32.xlu0 %v1125
    %v1127 = vpop.xlane.xlu0 %1126
    %v1128 = vsel %vm1058, %v1106, 0.0
    %1129 = vadd.xlane.f32.xlu0 %v1128
    %v1130 = vpop.xlane.xlu0 %1129
    %v1131 = vrcp.pop %v1109
    %v1132 = vrcp.pop %v1112
    %v1133 = vrcp.pop %v1115
    %v1134 = vrcp.pop %v1118
    %v1135 = vrcp.pop %v1121
    %v1136 = vrcp.pop %v1124
    %v1137 = vrcp.pop %v1127
    %v1138 = vrcp.pop %v1130
    %v1139 = vmul.f32 %v1092, %v1131
    %v1140 = vmul.f32 %v1094, %v1132
    %v1141 = vmul.f32 %v1096, %v1133
    %v1142 = vmul.f32 %v1098, %v1134
    %v1143 = vmul.f32 %v1100, %v1135
    %v1144 = vmul.f32 %v1102, %v1136
    %v1145 = vmul.f32 %v1104, %v1137
    %v1146 = vmul.f32 %v1106, %v1138
    %v1147 = vpack.c.bf16 %v1140, %v1139
    %v1148 = vpack.c.bf16 %v1142, %v1141
    %v1149 = vpack.c.bf16 %v1144, %v1143
    %v1150 = vpack.c.bf16 %v1146, %v1145
    %v1151 = vpack.c.bf16 %v971, %v969
    %v1152 = vpack.c.bf16 %v976, %v974
    %v1153 = vpack.c.bf16 %v981, %v979
    %v1154 = vpack.c.bf16 %v986, %v984
    %v1156 = vsel %vm1058, %v1147, 0
    %v1159 = vsel %vm1058, %v1148, 0
    %v1162 = vsel %vm1058, %v1149, 0
    %v1165 = vsel %vm1058, %v1150, 0
    %1167 = vmatpush.bf16.msra.mxu0 0
    %1168 = vmatpush.bf16.msra.mxu0 0
    %1169 = vmatpush.bf16.msra.mxu0 0
    %1170 = vmatpush.bf16.msra.mxu0 0
    %1171 = vmatpush.bf16.msra.mxu0 %v1154
    %1172 = vmatpush.bf16.msra.mxu0 %v1153
    %1173 = vmatpush.bf16.msra.mxu0 %v1152
    %1174 = vmatpush.bf16.msra.mxu0 %v1151
    %1175 = vmatmul.bf16.gmra.mxu0 %v1156
    %v1176 = vpop.f32.mrf.mxu0
    %v1177 = vadd.f32 0.0, %v1176
    %v1178 = vpop.f32.mrf.mxu0
    %v1179 = vadd.f32 0.0, %v1178
    %1180 = vmatmul.bf16.gmra.mxu0 %v1159
    %v1181 = vpop.f32.mrf.mxu0
    %v1182 = vadd.f32 0.0, %v1181
    %v1183 = vpop.f32.mrf.mxu0
    %v1184 = vadd.f32 0.0, %v1183
    %1185 = vmatmul.bf16.gmra.mxu0 %v1162
    %v1186 = vpop.f32.mrf.mxu0
    %v1187 = vadd.f32 0.0, %v1186
    %v1188 = vpop.f32.mrf.mxu0
    %v1189 = vadd.f32 0.0, %v1188
    %1190 = vmatmul.bf16.gmra.mxu0 %v1165
    %v1191 = vpop.f32.mrf.mxu0
    %v1192 = vadd.f32 0.0, %v1191
    %v1193 = vpop.f32.mrf.mxu0
    %v1194 = vadd.f32 0.0, %v1193
    %1195 = vdwg.mxu0
    %v1196 = vld [vmem:[#allocation3] sm:$0xff]
    %v1197 = vld [vmem:[#allocation3 + $0x8] sm:$0xff]
    %v1198 = vld [vmem:[#allocation3 + $0x10] sm:$0xff]
    %v1199 = vld [vmem:[#allocation3 + $0x18] sm:$0xff]
    %v1200 = vld [vmem:[#allocation3 + $0x20] sm:$0xff]
    %v1201 = vld [vmem:[#allocation3 + $0x28] sm:$0xff]
    %v1202 = vld [vmem:[#allocation3 + $0x30] sm:$0xff]
    %v1203 = vld [vmem:[#allocation3 + $0x38] sm:$0xff]
    %v1204 = vpack.c.bf16 %v1179, %v1177
    %v1205 = vpack.c.bf16 %v1184, %v1182
    %v1206 = vpack.c.bf16 %v1189, %v1187
    %v1207 = vpack.c.bf16 %v1194, %v1192
    %v1208 = vld [vmem:[%s14] sm:$0xf]
    %v1209 = vld [vmem:[%s14 + $0x4] sm:$0xf]
    %v1210 = vld [vmem:[%s14 + $0x8] sm:$0xf]
    %v1211 = vld [vmem:[%s14 + $0xc] sm:$0xf]
    %v1216 = vunpack.c.l.b16 %v1208
    %v1217 = vunpack.c.l.b16 %v1209
    %v1218 = vunpack.c.l.b16 %v1210
    %v1219 = vunpack.c.l.b16 %v1211
    %v1220 = vpack.c.b16 %v1217, %v1216
    %v1221 = vpack.c.b16 %v1219, %v1218
    %v1225 = vsel %vm996, %v1204, 0
    %v1228 = vsel %vm996, %v1205, 0
    %v1231 = vsel %vm996, %v1206, 0
    %v1234 = vsel %vm996, %v1207, 0
    %1236 = vmatpush.bf16.msra.mxu0 0
    %1237 = vmatpush.bf16.msra.mxu0 0
    %1238 = vmatpush.bf16.msra.mxu0 0
    %1239 = vmatpush.bf16.msra.mxu0 0
    %1240 = vmatpush.bf16.msra.mxu0 0
    %1241 = vmatpush.bf16.msra.mxu0 0
    %1242 = vmatpush.bf16.msra.mxu0 %v1221
    %1243 = vmatpush.bf16.msra.mxu0 %v1220
    %1244 = vmatmul.bf16.gmra.mxu0 %v1225
    %v1245 = vpop.f32.mrf.mxu0
    %v1246 = vadd.f32 0.0, %v1245
    %v1247 = vpop.f32.mrf.mxu0
    %v1248 = vadd.f32 0.0, %v1247
    %1249 = vmatmul.bf16.gmra.mxu0 %v1228
    %v1250 = vpop.f32.mrf.mxu0
    %v1251 = vadd.f32 0.0, %v1250
    %v1252 = vpop.f32.mrf.mxu0
    %v1253 = vadd.f32 0.0, %v1252
    %1254 = vmatmul.bf16.gmra.mxu0 %v1231
    %v1255 = vpop.f32.mrf.mxu0
    %v1256 = vadd.f32 0.0, %v1255
    %v1257 = vpop.f32.mrf.mxu0
    %v1258 = vadd.f32 0.0, %v1257
    %1259 = vmatmul.bf16.gmra.mxu0 %v1234
    %v1260 = vpop.f32.mrf.mxu0
    %v1261 = vadd.f32 0.0, %v1260
    %v1262 = vpop.f32.mrf.mxu0
    %v1263 = vadd.f32 0.0, %v1262
    %1264 = vdwg.mxu0
    %v1265 = vstv %s103
    %v1266 = vmul.f32 %v1265, %v1246
    %v1267 = vmul.f32 %v1265, %v1248
    %v1268 = vmul.f32 %v1265, %v1251
    %v1269 = vmul.f32 %v1265, %v1253
    %v1270 = vmul.f32 %v1265, %v1256
    %v1271 = vmul.f32 %v1265, %v1258
    %v1272 = vmul.f32 %v1265, %v1261
    %v1273 = vmul.f32 %v1265, %v1263
    %v1274 = vadd.f32 %v1196, %v1266
    %v1275 = vadd.f32 %v1197, %v1267
    %v1276 = vadd.f32 %v1198, %v1268
    %v1277 = vadd.f32 %v1199, %v1269
    %v1278 = vadd.f32 %v1200, %v1270
    %v1279 = vadd.f32 %v1201, %v1271
    %v1280 = vadd.f32 %v1202, %v1272
    %v1281 = vadd.f32 %v1203, %v1273
    %1282 = vst [vmem:[#allocation3] sm:$0xff] %v1274
    %1283 = vst [vmem:[#allocation3 + $0x8] sm:$0xff] %v1275
    %1284 = vst [vmem:[#allocation3 + $0x10] sm:$0xff] %v1276
    %1285 = vst [vmem:[#allocation3 + $0x18] sm:$0xff] %v1277
    %1286 = vst [vmem:[#allocation3 + $0x20] sm:$0xff] %v1278
    %1287 = vst [vmem:[#allocation3 + $0x28] sm:$0xff] %v1279
    %1288 = vst [vmem:[#allocation3 + $0x30] sm:$0xff] %v1280
    %1289 = vst [vmem:[#allocation3 + $0x38] sm:$0xff] %v1281
    %s1290 = scalar_lea.vmem %s8, 64
    %v1291 = vld [vmem:[%s1290] sm:$0xf]
    %v1292 = vld [vmem:[%s1290 + $0x4] sm:$0xf]
    %v1293 = vld [vmem:[%s1290 + $0x8] sm:$0xf]
    %v1294 = vld [vmem:[%s1290 + $0xc] sm:$0xf]
    %v1295 = vld [vmem:[%s1290 + $0x10] sm:$0xf]
    %v1296 = vld [vmem:[%s1290 + $0x14] sm:$0xf]
    %v1297 = vld [vmem:[%s1290 + $0x18] sm:$0xf]
    %v1298 = vld [vmem:[%s1290 + $0x1c] sm:$0xf]
    %v1299 = vld [vmem:[%s1290 + $0x20] sm:$0xf]
    %v1300 = vld [vmem:[%s1290 + $0x24] sm:$0xf]
    %v1301 = vld [vmem:[%s1290 + $0x28] sm:$0xf]
    %v1302 = vld [vmem:[%s1290 + $0x2c] sm:$0xf]
    %v1303 = vld [vmem:[%s1290 + $0x30] sm:$0xf]
    %v1304 = vld [vmem:[%s1290 + $0x34] sm:$0xf]
    %v1305 = vld [vmem:[%s1290 + $0x38] sm:$0xf]
    %v1306 = vld [vmem:[%s1290 + $0x3c] sm:$0xf]
    %s1307 = scalar_lea.vmem %s11, 1
    %v1308 = vld [vmem:[%s1307] sm:$0x1]
    %v1310 = vperm.slane %v1308, 0
    %v1328 = vunpack.c.l.b16 %v1291
    %v1329 = vunpack.c.l.b16 %v1292
    %v1330 = vunpack.c.l.b16 %v1293
    %v1331 = vunpack.c.l.b16 %v1294
    %v1332 = vunpack.c.l.b16 %v1295
    %v1333 = vunpack.c.l.b16 %v1296
    %v1334 = vunpack.c.l.b16 %v1297
    %v1335 = vunpack.c.l.b16 %v1298
    %v1336 = vunpack.c.l.b16 %v1299
    %v1337 = vunpack.c.l.b16 %v1300
    %v1338 = vunpack.c.l.b16 %v1301
    %v1339 = vunpack.c.l.b16 %v1302
    %v1340 = vunpack.c.l.b16 %v1303
    %v1341 = vunpack.c.l.b16 %v1304
    %v1342 = vunpack.c.l.b16 %v1305
    %v1343 = vunpack.c.l.b16 %v1306
    %v1344 = vpack.c.b16 %v1329, %v1328
    %v1345 = vpack.c.b16 %v1331, %v1330
    %v1346 = vpack.c.b16 %v1333, %v1332
    %v1347 = vpack.c.b16 %v1335, %v1334
    %v1348 = vpack.c.b16 %v1337, %v1336
    %v1349 = vpack.c.b16 %v1339, %v1338
    %v1350 = vpack.c.b16 %v1341, %v1340
    %v1351 = vpack.c.b16 %v1343, %v1342
    %1360 = vmatpush.bf16.msra.mxu0 %v1351
    %1361 = vmatpush.bf16.msra.mxu0 %v1350
    %1362 = vmatpush.bf16.msra.mxu0 %v1349
    %1363 = vmatpush.bf16.msra.mxu0 %v1348
    %1364 = vmatpush.bf16.msra.mxu0 %v1347
    %1365 = vmatpush.bf16.msra.mxu0 %v1346
    %1366 = vmatpush.bf16.msra.mxu0 %v1345
    %1367 = vmatpush.bf16.msra.mxu0 %v1344
    %1368 = vmatmul.bf16.gmra.mxu0 %v86
    %v1369 = vpop.f32.mrf.mxu0
    %v1370 = vadd.f32 %v1310, %v1369
    %v1371 = vpop.f32.mrf.mxu0
    %v1372 = vadd.f32 %v1310, %v1371
    %1373 = vmatmul.bf16.gmra.mxu0 %v87
    %v1374 = vpop.f32.mrf.mxu0
    %v1375 = vadd.f32 %v1310, %v1374
    %v1376 = vpop.f32.mrf.mxu0
    %v1377 = vadd.f32 %v1310, %v1376
    %1378 = vmatmul.bf16.gmra.mxu0 %v88
    %v1379 = vpop.f32.mrf.mxu0
    %v1380 = vadd.f32 %v1310, %v1379
    %v1381 = vpop.f32.mrf.mxu0
    %v1382 = vadd.f32 %v1310, %v1381
    %1383 = vmatmul.bf16.gmra.mxu0 %v89
    %v1384 = vpop.f32.mrf.mxu0
    %v1385 = vadd.f32 %v1310, %v1384
    %v1386 = vpop.f32.mrf.mxu0
    %v1387 = vadd.f32 %v1310, %v1386
    %1388 = vdwg.mxu0
    %s1389 = scalar_lea.vmem %s9, 64
    %v1390 = vld [vmem:[%s1389] sm:$0xf]
    %v1391 = vld [vmem:[%s1389 + $0x4] sm:$0xf]
    %v1392 = vld [vmem:[%s1389 + $0x8] sm:$0xf]
    %v1393 = vld [vmem:[%s1389 + $0xc] sm:$0xf]
    %v1394 = vld [vmem:[%s1389 + $0x10] sm:$0xf]
    %v1395 = vld [vmem:[%s1389 + $0x14] sm:$0xf]
    %v1396 = vld [vmem:[%s1389 + $0x18] sm:$0xf]
    %v1397 = vld [vmem:[%s1389 + $0x1c] sm:$0xf]
    %v1398 = vld [vmem:[%s1389 + $0x20] sm:$0xf]
    %v1399 = vld [vmem:[%s1389 + $0x24] sm:$0xf]
    %v1400 = vld [vmem:[%s1389 + $0x28] sm:$0xf]
    %v1401 = vld [vmem:[%s1389 + $0x2c] sm:$0xf]
    %v1402 = vld [vmem:[%s1389 + $0x30] sm:$0xf]
    %v1403 = vld [vmem:[%s1389 + $0x34] sm:$0xf]
    %v1404 = vld [vmem:[%s1389 + $0x38] sm:$0xf]
    %v1405 = vld [vmem:[%s1389 + $0x3c] sm:$0xf]
    %s1406 = scalar_lea.vmem %s12, 1
    %v1407 = vld [vmem:[%s1406] sm:$0x1]
    %v1409 = vperm.slane %v1407, 0
    %v1427 = vunpack.c.l.b16 %v1390
    %v1428 = vunpack.c.l.b16 %v1391
    %v1429 = vunpack.c.l.b16 %v1392
    %v1430 = vunpack.c.l.b16 %v1393
    %v1431 = vunpack.c.l.b16 %v1394
    %v1432 = vunpack.c.l.b16 %v1395
    %v1433 = vunpack.c.l.b16 %v1396
    %v1434 = vunpack.c.l.b16 %v1397
    %v1435 = vunpack.c.l.b16 %v1398
    %v1436 = vunpack.c.l.b16 %v1399
    %v1437 = vunpack.c.l.b16 %v1400
    %v1438 = vunpack.c.l.b16 %v1401
    %v1439 = vunpack.c.l.b16 %v1402
    %v1440 = vunpack.c.l.b16 %v1403
    %v1441 = vunpack.c.l.b16 %v1404
    %v1442 = vunpack.c.l.b16 %v1405
    %v1443 = vpack.c.b16 %v1428, %v1427
    %v1444 = vpack.c.b16 %v1430, %v1429
    %v1445 = vpack.c.b16 %v1432, %v1431
    %v1446 = vpack.c.b16 %v1434, %v1433
    %v1447 = vpack.c.b16 %v1436, %v1435
    %v1448 = vpack.c.b16 %v1438, %v1437
    %v1449 = vpack.c.b16 %v1440, %v1439
    %v1450 = vpack.c.b16 %v1442, %v1441
    %1459 = vmatpush.bf16.msra.mxu0 %v1450
    %1460 = vmatpush.bf16.msra.mxu0 %v1449
    %1461 = vmatpush.bf16.msra.mxu0 %v1448
    %1462 = vmatpush.bf16.msra.mxu0 %v1447
    %1463 = vmatpush.bf16.msra.mxu0 %v1446
    %1464 = vmatpush.bf16.msra.mxu0 %v1445
    %1465 = vmatpush.bf16.msra.mxu0 %v1444
    %1466 = vmatpush.bf16.msra.mxu0 %v1443
    %1467 = vmatmul.bf16.gmra.mxu0 %v98
    %v1468 = vpop.f32.mrf.mxu0
    %v1469 = vadd.f32 %v1409, %v1468
    %v1470 = vpop.f32.mrf.mxu0
    %v1471 = vadd.f32 %v1409, %v1470
    %1472 = vmatmul.bf16.gmra.mxu0 %v99
    %v1473 = vpop.f32.mrf.mxu0
    %v1474 = vadd.f32 %v1409, %v1473
    %v1475 = vpop.f32.mrf.mxu0
    %v1476 = vadd.f32 %v1409, %v1475
    %1477 = vmatmul.bf16.gmra.mxu0 %v100
    %v1478 = vpop.f32.mrf.mxu0
    %v1479 = vadd.f32 %v1409, %v1478
    %v1480 = vpop.f32.mrf.mxu0
    %v1481 = vadd.f32 %v1409, %v1480
    %1482 = vmatmul.bf16.gmra.mxu0 %v101
    %v1483 = vpop.f32.mrf.mxu0
    %v1484 = vadd.f32 %v1409, %v1483
    %v1485 = vpop.f32.mrf.mxu0
    %v1486 = vadd.f32 %v1409, %v1485
    %1487 = vdwg.mxu0
    %s1488 = scalar_lea.vmem %s10, 64
    %v1489 = vld [vmem:[%s1488] sm:$0xf]
    %v1490 = vld [vmem:[%s1488 + $0x4] sm:$0xf]
    %v1491 = vld [vmem:[%s1488 + $0x8] sm:$0xf]
    %v1492 = vld [vmem:[%s1488 + $0xc] sm:$0xf]
    %v1493 = vld [vmem:[%s1488 + $0x10] sm:$0xf]
    %v1494 = vld [vmem:[%s1488 + $0x14] sm:$0xf]
    %v1495 = vld [vmem:[%s1488 + $0x18] sm:$0xf]
    %v1496 = vld [vmem:[%s1488 + $0x1c] sm:$0xf]
    %v1497 = vld [vmem:[%s1488 + $0x20] sm:$0xf]
    %v1498 = vld [vmem:[%s1488 + $0x24] sm:$0xf]
    %v1499 = vld [vmem:[%s1488 + $0x28] sm:$0xf]
    %v1500 = vld [vmem:[%s1488 + $0x2c] sm:$0xf]
    %v1501 = vld [vmem:[%s1488 + $0x30] sm:$0xf]
    %v1502 = vld [vmem:[%s1488 + $0x34] sm:$0xf]
    %v1503 = vld [vmem:[%s1488 + $0x38] sm:$0xf]
    %v1504 = vld [vmem:[%s1488 + $0x3c] sm:$0xf]
    %s1505 = scalar_lea.vmem %s13, 1
    %v1506 = vld [vmem:[%s1505] sm:$0x1]
    %v1508 = vperm.slane %v1506, 0
    %v1526 = vunpack.c.l.b16 %v1489
    %v1527 = vunpack.c.l.b16 %v1490
    %v1528 = vunpack.c.l.b16 %v1491
    %v1529 = vunpack.c.l.b16 %v1492
    %v1530 = vunpack.c.l.b16 %v1493
    %v1531 = vunpack.c.l.b16 %v1494
    %v1532 = vunpack.c.l.b16 %v1495
    %v1533 = vunpack.c.l.b16 %v1496
    %v1534 = vunpack.c.l.b16 %v1497
    %v1535 = vunpack.c.l.b16 %v1498
    %v1536 = vunpack.c.l.b16 %v1499
    %v1537 = vunpack.c.l.b16 %v1500
    %v1538 = vunpack.c.l.b16 %v1501
    %v1539 = vunpack.c.l.b16 %v1502
    %v1540 = vunpack.c.l.b16 %v1503
    %v1541 = vunpack.c.l.b16 %v1504
    %v1542 = vpack.c.b16 %v1527, %v1526
    %v1543 = vpack.c.b16 %v1529, %v1528
    %v1544 = vpack.c.b16 %v1531, %v1530
    %v1545 = vpack.c.b16 %v1533, %v1532
    %v1546 = vpack.c.b16 %v1535, %v1534
    %v1547 = vpack.c.b16 %v1537, %v1536
    %v1548 = vpack.c.b16 %v1539, %v1538
    %v1549 = vpack.c.b16 %v1541, %v1540
    %1558 = vmatpush.bf16.msra.mxu0 %v1549
    %1559 = vmatpush.bf16.msra.mxu0 %v1548
    %1560 = vmatpush.bf16.msra.mxu0 %v1547
    %1561 = vmatpush.bf16.msra.mxu0 %v1546
    %1562 = vmatpush.bf16.msra.mxu0 %v1545
    %1563 = vmatpush.bf16.msra.mxu0 %v1544
    %1564 = vmatpush.bf16.msra.mxu0 %v1543
    %1565 = vmatpush.bf16.msra.mxu0 %v1542
    %1566 = vmatmul.bf16.gmra.mxu0 %v98
    %v1567 = vpop.f32.mrf.mxu0
    %v1568 = vadd.f32 %v1508, %v1567
    %v1569 = vpop.f32.mrf.mxu0
    %v1570 = vadd.f32 %v1508, %v1569
    %1571 = vmatmul.bf16.gmra.mxu0 %v99
    %v1572 = vpop.f32.mrf.mxu0
    %v1573 = vadd.f32 %v1508, %v1572
    %v1574 = vpop.f32.mrf.mxu0
    %v1575 = vadd.f32 %v1508, %v1574
    %1576 = vmatmul.bf16.gmra.mxu0 %v100
    %v1577 = vpop.f32.mrf.mxu0
    %v1578 = vadd.f32 %v1508, %v1577
    %v1579 = vpop.f32.mrf.mxu0
    %v1580 = vadd.f32 %v1508, %v1579
    %1581 = vmatmul.bf16.gmra.mxu0 %v101
    %v1582 = vpop.f32.mrf.mxu0
    %v1583 = vadd.f32 %v1508, %v1582
    %v1584 = vpop.f32.mrf.mxu0
    %v1585 = vadd.f32 %v1508, %v1584
    %1586 = vdwg.mxu0
    %v1587 = vpack.c.bf16 %v1372, %v1370
    %v1588 = vpack.c.bf16 %v1377, %v1375
    %v1589 = vpack.c.bf16 %v1382, %v1380
    %v1590 = vpack.c.bf16 %v1387, %v1385
    %v1591 = vpack.c.bf16 %v1471, %v1469
    %v1592 = vpack.c.bf16 %v1476, %v1474
    %v1593 = vpack.c.bf16 %v1481, %v1479
    %v1594 = vpack.c.bf16 %v1486, %v1484
    %v1596 = vsel %vm996, %v1587, 0
    %v1599 = vsel %vm996, %v1588, 0
    %v1602 = vsel %vm996, %v1589, 0
    %v1605 = vsel %vm996, %v1590, 0
    %v1608 = vsel %vm996, %v1591, 0
    %v1611 = vsel %vm996, %v1592, 0
    %v1614 = vsel %vm996, %v1593, 0
    %v1617 = vsel %vm996, %v1594, 0
    %1619 = vmatpush.bf16.xpose.msra.mxu0 0
    %1620 = vmatpush.bf16.xpose.msra.mxu0 0
    %1621 = vmatpush.bf16.xpose.msra.mxu0 0
    %1622 = vmatpush.bf16.xpose.msra.mxu0 0
    %1623 = vmatpush.bf16.xpose.msra.mxu0 %v1617
    %1624 = vmatpush.bf16.xpose.msra.mxu0 %v1614
    %1625 = vmatpush.bf16.xpose.msra.mxu0 %v1611
    %1626 = vmatpush.bf16.xpose.msra.mxu0 %v1608
    %1627 = vmatmul.bf16.gmra.mxu0 %v1596
    %v1628 = vpop.f32.mrf.mxu0
    %v1629 = vadd.f32 0.0, %v1628
    %v1630 = vpop.f32.mrf.mxu0
    %v1631 = vadd.f32 0.0, %v1630
    %1632 = vmatmul.bf16.gmra.mxu0 %v1599
    %v1633 = vpop.f32.mrf.mxu0
    %v1634 = vadd.f32 0.0, %v1633
    %v1635 = vpop.f32.mrf.mxu0
    %v1636 = vadd.f32 0.0, %v1635
    %1637 = vmatmul.bf16.gmra.mxu0 %v1602
    %v1638 = vpop.f32.mrf.mxu0
    %v1639 = vadd.f32 0.0, %v1638
    %v1640 = vpop.f32.mrf.mxu0
    %v1641 = vadd.f32 0.0, %v1640
    %1642 = vmatmul.bf16.gmra.mxu0 %v1605
    %v1643 = vpop.f32.mrf.mxu0
    %v1644 = vadd.f32 0.0, %v1643
    %v1645 = vpop.f32.mrf.mxu0
    %v1646 = vadd.f32 0.0, %v1645
    %1647 = vdwg.mxu0
    %v1648 = vmul.f32 %v1629, 0.17677669
    %v1649 = vmul.f32 %v1631, 0.17677669
    %v1650 = vmul.f32 %v1634, 0.17677669
    %v1651 = vmul.f32 %v1636, 0.17677669
    %v1652 = vmul.f32 %v1639, 0.17677669
    %v1653 = vmul.f32 %v1641, 0.17677669
    %v1654 = vmul.f32 %v1644, 0.17677669
    %v1655 = vmul.f32 %v1646, 0.17677669
    %v1656 = vsel %vm1058, %v1648, -inf
    %1657 = vmax.xlane.f32.xlu0 %v1656
    %v1658 = vpop.xlane.xlu0 %1657
    %v1659 = vsel %vm1058, %v1649, -inf
    %1660 = vmax.xlane.f32.xlu0 %v1659
    %v1661 = vpop.xlane.xlu0 %1660
    %v1662 = vsel %vm1058, %v1650, -inf
    %1663 = vmax.xlane.f32.xlu0 %v1662
    %v1664 = vpop.xlane.xlu0 %1663
    %v1665 = vsel %vm1058, %v1651, -inf
    %1666 = vmax.xlane.f32.xlu0 %v1665
    %v1667 = vpop.xlane.xlu0 %1666
    %v1668 = vsel %vm1058, %v1652, -inf
    %1669 = vmax.xlane.f32.xlu0 %v1668
    %v1670 = vpop.xlane.xlu0 %1669
    %v1671 = vsel %vm1058, %v1653, -inf
    %1672 = vmax.xlane.f32.xlu0 %v1671
    %v1673 = vpop.xlane.xlu0 %1672
    %v1674 = vsel %vm1058, %v1654, -inf
    %1675 = vmax.xlane.f32.xlu0 %v1674
    %v1676 = vpop.xlane.xlu0 %1675
    %v1677 = vsel %vm1058, %v1655, -inf
    %1678 = vmax.xlane.f32.xlu0 %v1677
    %v1679 = vpop.xlane.xlu0 %1678
    %v1680 = vsub.f32 %v1648, %v1658
    %v1681 = vsub.f32 %v1649, %v1661
    %v1682 = vsub.f32 %v1650, %v1664
    %v1683 = vsub.f32 %v1651, %v1667
    %v1684 = vsub.f32 %v1652, %v1670
    %v1685 = vsub.f32 %v1653, %v1673
    %v1686 = vsub.f32 %v1654, %v1676
    %v1687 = vsub.f32 %v1655, %v1679
    %v1688 = vmul.f32 %v1680, 1.442695
    %v1689 = vpow.pop %v1688
    %v1690 = vmul.f32 %v1681, 1.442695
    %v1691 = vpow.pop %v1690
    %v1692 = vmul.f32 %v1682, 1.442695
    %v1693 = vpow.pop %v1692
    %v1694 = vmul.f32 %v1683, 1.442695
    %v1695 = vpow.pop %v1694
    %v1696 = vmul.f32 %v1684, 1.442695
    %v1697 = vpow.pop %v1696
    %v1698 = vmul.f32 %v1685, 1.442695
    %v1699 = vpow.pop %v1698
    %v1700 = vmul.f32 %v1686, 1.442695
    %v1701 = vpow.pop %v1700
    %v1702 = vmul.f32 %v1687, 1.442695
    %v1703 = vpow.pop %v1702
    %v1704 = vsel %vm1058, %v1689, 0.0
    %1705 = vadd.xlane.f32.xlu0 %v1704
    %v1706 = vpop.xlane.xlu0 %1705
    %v1707 = vsel %vm1058, %v1691, 0.0
    %1708 = vadd.xlane.f32.xlu0 %v1707
    %v1709 = vpop.xlane.xlu0 %1708
    %v1710 = vsel %vm1058, %v1693, 0.0
    %1711 = vadd.xlane.f32.xlu0 %v1710
    %v1712 = vpop.xlane.xlu0 %1711
    %v1713 = vsel %vm1058, %v1695, 0.0
    %1714 = vadd.xlane.f32.xlu0 %v1713
    %v1715 = vpop.xlane.xlu0 %1714
    %v1716 = vsel %vm1058, %v1697, 0.0
    %1717 = vadd.xlane.f32.xlu0 %v1716
    %v1718 = vpop.xlane.xlu0 %1717
    %v1719 = vsel %vm1058, %v1699, 0.0
    %1720 = vadd.xlane.f32.xlu0 %v1719
    %v1721 = vpop.xlane.xlu0 %1720
    %v1722 = vsel %vm1058, %v1701, 0.0
    %1723 = vadd.xlane.f32.xlu0 %v1722
    %v1724 = vpop.xlane.xlu0 %1723
    %v1725 = vsel %vm1058, %v1703, 0.0
    %1726 = vadd.xlane.f32.xlu0 %v1725
    %v1727 = vpop.xlane.xlu0 %1726
    %v1728 = vrcp.pop %v1706
    %v1729 = vrcp.pop %v1709
    %v1730 = vrcp.pop %v1712
    %v1731 = vrcp.pop %v1715
    %v1732 = vrcp.pop %v1718
    %v1733 = vrcp.pop %v1721
    %v1734 = vrcp.pop %v1724
    %v1735 = vrcp.pop %v1727
    %v1736 = vmul.f32 %v1689, %v1728
    %v1737 = vmul.f32 %v1691, %v1729
    %v1738 = vmul.f32 %v1693, %v1730
    %v1739 = vmul.f32 %v1695, %v1731
    %v1740 = vmul.f32 %v1697, %v1732
    %v1741 = vmul.f32 %v1699, %v1733
    %v1742 = vmul.f32 %v1701, %v1734
    %v1743 = vmul.f32 %v1703, %v1735
    %v1744 = vpack.c.bf16 %v1737, %v1736
    %v1745 = vpack.c.bf16 %v1739, %v1738
    %v1746 = vpack.c.bf16 %v1741, %v1740
    %v1747 = vpack.c.bf16 %v1743, %v1742
    %v1748 = vpack.c.bf16 %v1570, %v1568
    %v1749 = vpack.c.bf16 %v1575, %v1573
    %v1750 = vpack.c.bf16 %v1580, %v1578
    %v1751 = vpack.c.bf16 %v1585, %v1583
    %v1753 = vsel %vm1058, %v1744, 0
    %v1756 = vsel %vm1058, %v1745, 0
    %v1759 = vsel %vm1058, %v1746, 0
    %v1762 = vsel %vm1058, %v1747, 0
    %1764 = vmatpush.bf16.msra.mxu0 0
    %1765 = vmatpush.bf16.msra.mxu0 0
    %1766 = vmatpush.bf16.msra.mxu0 0
    %1767 = vmatpush.bf16.msra.mxu0 0
    %1768 = vmatpush.bf16.msra.mxu0 %v1751
    %1769 = vmatpush.bf16.msra.mxu0 %v1750
    %1770 = vmatpush.bf16.msra.mxu0 %v1749
    %1771 = vmatpush.bf16.msra.mxu0 %v1748
    %1772 = vmatmul.bf16.gmra.mxu0 %v1753
    %v1773 = vpop.f32.mrf.mxu0
    %v1774 = vadd.f32 0.0, %v1773
    %v1775 = vpop.f32.mrf.mxu0
    %v1776 = vadd.f32 0.0, %v1775
    %1777 = vmatmul.bf16.gmra.mxu0 %v1756
    %v1778 = vpop.f32.mrf.mxu0
    %v1779 = vadd.f32 0.0, %v1778
    %v1780 = vpop.f32.mrf.mxu0
    %v1781 = vadd.f32 0.0, %v1780
    %1782 = vmatmul.bf16.gmra.mxu0 %v1759
    %v1783 = vpop.f32.mrf.mxu0
    %v1784 = vadd.f32 0.0, %v1783
    %v1785 = vpop.f32.mrf.mxu0
    %v1786 = vadd.f32 0.0, %v1785
    %1787 = vmatmul.bf16.gmra.mxu0 %v1762
    %v1788 = vpop.f32.mrf.mxu0
    %v1789 = vadd.f32 0.0, %v1788
    %v1790 = vpop.f32.mrf.mxu0
    %v1791 = vadd.f32 0.0, %v1790
    %1792 = vdwg.mxu0
    %v1793 = vld [vmem:[#allocation3] sm:$0xff]
    %v1794 = vld [vmem:[#allocation3 + $0x8] sm:$0xff]
    %v1795 = vld [vmem:[#allocation3 + $0x10] sm:$0xff]
    %v1796 = vld [vmem:[#allocation3 + $0x18] sm:$0xff]
    %v1797 = vld [vmem:[#allocation3 + $0x20] sm:$0xff]
    %v1798 = vld [vmem:[#allocation3 + $0x28] sm:$0xff]
    %v1799 = vld [vmem:[#allocation3 + $0x30] sm:$0xff]
    %v1800 = vld [vmem:[#allocation3 + $0x38] sm:$0xff]
    %v1801 = vpack.c.bf16 %v1776, %v1774
    %v1802 = vpack.c.bf16 %v1781, %v1779
    %v1803 = vpack.c.bf16 %v1786, %v1784
    %v1804 = vpack.c.bf16 %v1791, %v1789
    %s1805 = scalar_lea.vmem %s14, 16
    %v1806 = vld [vmem:[%s1805] sm:$0xf]
    %v1807 = vld [vmem:[%s1805 + $0x4] sm:$0xf]
    %v1808 = vld [vmem:[%s1805 + $0x8] sm:$0xf]
    %v1809 = vld [vmem:[%s1805 + $0xc] sm:$0xf]
    %v1814 = vunpack.c.l.b16 %v1806
    %v1815 = vunpack.c.l.b16 %v1807
    %v1816 = vunpack.c.l.b16 %v1808
    %v1817 = vunpack.c.l.b16 %v1809
    %v1818 = vpack.c.b16 %v1815, %v1814
    %v1819 = vpack.c.b16 %v1817, %v1816
    %v1823 = vsel %vm996, %v1801, 0
    %v1826 = vsel %vm996, %v1802, 0
    %v1829 = vsel %vm996, %v1803, 0
    %v1832 = vsel %vm996, %v1804, 0
    %1834 = vmatpush.bf16.msra.mxu0 0
    %1835 = vmatpush.bf16.msra.mxu0 0
    %1836 = vmatpush.bf16.msra.mxu0 0
    %1837 = vmatpush.bf16.msra.mxu0 0
    %1838 = vmatpush.bf16.msra.mxu0 0
    %1839 = vmatpush.bf16.msra.mxu0 0
    %1840 = vmatpush.bf16.msra.mxu0 %v1819
    %1841 = vmatpush.bf16.msra.mxu0 %v1818
    %1842 = vmatmul.bf16.gmra.mxu0 %v1823
    %v1843 = vpop.f32.mrf.mxu0
    %v1844 = vadd.f32 0.0, %v1843
    %v1845 = vpop.f32.mrf.mxu0
    %v1846 = vadd.f32 0.0, %v1845
    %1847 = vmatmul.bf16.gmra.mxu0 %v1826
    %v1848 = vpop.f32.mrf.mxu0
    %v1849 = vadd.f32 0.0, %v1848
    %v1850 = vpop.f32.mrf.mxu0
    %v1851 = vadd.f32 0.0, %v1850
    %1852 = vmatmul.bf16.gmra.mxu0 %v1829
    %v1853 = vpop.f32.mrf.mxu0
    %v1854 = vadd.f32 0.0, %v1853
    %v1855 = vpop.f32.mrf.mxu0
    %v1856 = vadd.f32 0.0, %v1855
    %1857 = vmatmul.bf16.gmra.mxu0 %v1832
    %v1858 = vpop.f32.mrf.mxu0
    %v1859 = vadd.f32 0.0, %v1858
    %v1860 = vpop.f32.mrf.mxu0
    %v1861 = vadd.f32 0.0, %v1860
    %1862 = vdwg.mxu0
    %v1863 = vmul.f32 %v1265, %v1844
    %v1864 = vmul.f32 %v1265, %v1846
    %v1865 = vmul.f32 %v1265, %v1849
    %v1866 = vmul.f32 %v1265, %v1851
    %v1867 = vmul.f32 %v1265, %v1854
    %v1868 = vmul.f32 %v1265, %v1856
    %v1869 = vmul.f32 %v1265, %v1859
    %v1870 = vmul.f32 %v1265, %v1861
    %v1871 = vadd.f32 %v1793, %v1863
    %v1872 = vadd.f32 %v1794, %v1864
    %v1873 = vadd.f32 %v1795, %v1865
    %v1874 = vadd.f32 %v1796, %v1866
    %v1875 = vadd.f32 %v1797, %v1867
    %v1876 = vadd.f32 %v1798, %v1868
    %v1877 = vadd.f32 %v1799, %v1869
    %v1878 = vadd.f32 %v1800, %v1870
    %1879 = vst [vmem:[#allocation3] sm:$0xff] %v1871
    %1880 = vst [vmem:[#allocation3 + $0x8] sm:$0xff] %v1872
    %1881 = vst [vmem:[#allocation3 + $0x10] sm:$0xff] %v1873
    %1882 = vst [vmem:[#allocation3 + $0x18] sm:$0xff] %v1874
    %1883 = vst [vmem:[#allocation3 + $0x20] sm:$0xff] %v1875
    %1884 = vst [vmem:[#allocation3 + $0x28] sm:$0xff] %v1876
    %1885 = vst [vmem:[#allocation3 + $0x30] sm:$0xff] %v1877
    %1886 = vst [vmem:[#allocation3 + $0x38] sm:$0xff] %v1878
    %s1887 = scalar_lea.vmem %s8, 128
    %v1888 = vld [vmem:[%s1887] sm:$0xf]
    %v1889 = vld [vmem:[%s1887 + $0x4] sm:$0xf]
    %v1890 = vld [vmem:[%s1887 + $0x8] sm:$0xf]
    %v1891 = vld [vmem:[%s1887 + $0xc] sm:$0xf]
    %v1892 = vld [vmem:[%s1887 + $0x10] sm:$0xf]
    %v1893 = vld [vmem:[%s1887 + $0x14] sm:$0xf]
    %v1894 = vld [vmem:[%s1887 + $0x18] sm:$0xf]
    %v1895 = vld [vmem:[%s1887 + $0x1c] sm:$0xf]
    %v1896 = vld [vmem:[%s1887 + $0x20] sm:$0xf]
    %v1897 = vld [vmem:[%s1887 + $0x24] sm:$0xf]
    %v1898 = vld [vmem:[%s1887 + $0x28] sm:$0xf]
    %v1899 = vld [vmem:[%s1887 + $0x2c] sm:$0xf]
    %v1900 = vld [vmem:[%s1887 + $0x30] sm:$0xf]
    %v1901 = vld [vmem:[%s1887 + $0x34] sm:$0xf]
    %v1902 = vld [vmem:[%s1887 + $0x38] sm:$0xf]
    %v1903 = vld [vmem:[%s1887 + $0x3c] sm:$0xf]
    %s1904 = scalar_lea.vmem %s11, 2
    %v1905 = vld [vmem:[%s1904] sm:$0x1]
    %v1907 = vperm.slane %v1905, 0
    %v1925 = vunpack.c.l.b16 %v1888
    %v1926 = vunpack.c.l.b16 %v1889
    %v1927 = vunpack.c.l.b16 %v1890
    %v1928 = vunpack.c.l.b16 %v1891
    %v1929 = vunpack.c.l.b16 %v1892
    %v1930 = vunpack.c.l.b16 %v1893
    %v1931 = vunpack.c.l.b16 %v1894
    %v1932 = vunpack.c.l.b16 %v1895
    %v1933 = vunpack.c.l.b16 %v1896
    %v1934 = vunpack.c.l.b16 %v1897
    %v1935 = vunpack.c.l.b16 %v1898
    %v1936 = vunpack.c.l.b16 %v1899
    %v1937 = vunpack.c.l.b16 %v1900
    %v1938 = vunpack.c.l.b16 %v1901
    %v1939 = vunpack.c.l.b16 %v1902
    %v1940 = vunpack.c.l.b16 %v1903
    %v1941 = vpack.c.b16 %v1926, %v1925
    %v1942 = vpack.c.b16 %v1928, %v1927
    %v1943 = vpack.c.b16 %v1930, %v1929
    %v1944 = vpack.c.b16 %v1932, %v1931
    %v1945 = vpack.c.b16 %v1934, %v1933
    %v1946 = vpack.c.b16 %v1936, %v1935
    %v1947 = vpack.c.b16 %v1938, %v1937
    %v1948 = vpack.c.b16 %v1940, %v1939
    %1957 = vmatpush.bf16.msra.mxu0 %v1948
    %1958 = vmatpush.bf16.msra.mxu0 %v1947
    %1959 = vmatpush.bf16.msra.mxu0 %v1946
    %1960 = vmatpush.bf16.msra.mxu0 %v1945
    %1961 = vmatpush.bf16.msra.mxu0 %v1944
    %1962 = vmatpush.bf16.msra.mxu0 %v1943
    %1963 = vmatpush.bf16.msra.mxu0 %v1942
    %1964 = vmatpush.bf16.msra.mxu0 %v1941
    %1965 = vmatmul.bf16.gmra.mxu0 %v86
    %v1966 = vpop.f32.mrf.mxu0
    %v1967 = vadd.f32 %v1907, %v1966
    %v1968 = vpop.f32.mrf.mxu0
    %v1969 = vadd.f32 %v1907, %v1968
    %1970 = vmatmul.bf16.gmra.mxu0 %v87
    %v1971 = vpop.f32.mrf.mxu0
    %v1972 = vadd.f32 %v1907, %v1971
    %v1973 = vpop.f32.mrf.mxu0
    %v1974 = vadd.f32 %v1907, %v1973
    %1975 = vmatmul.bf16.gmra.mxu0 %v88
    %v1976 = vpop.f32.mrf.mxu0
    %v1977 = vadd.f32 %v1907, %v1976
    %v1978 = vpop.f32.mrf.mxu0
    %v1979 = vadd.f32 %v1907, %v1978
    %1980 = vmatmul.bf16.gmra.mxu0 %v89
    %v1981 = vpop.f32.mrf.mxu0
    %v1982 = vadd.f32 %v1907, %v1981
    %v1983 = vpop.f32.mrf.mxu0
    %v1984 = vadd.f32 %v1907, %v1983
    %1985 = vdwg.mxu0
    %s1986 = scalar_lea.vmem %s9, 128
    %v1987 = vld [vmem:[%s1986] sm:$0xf]
    %v1988 = vld [vmem:[%s1986 + $0x4] sm:$0xf]
    %v1989 = vld [vmem:[%s1986 + $0x8] sm:$0xf]
    %v1990 = vld [vmem:[%s1986 + $0xc] sm:$0xf]
    %v1991 = vld [vmem:[%s1986 + $0x10] sm:$0xf]
    %v1992 = vld [vmem:[%s1986 + $0x14] sm:$0xf]
    %v1993 = vld [vmem:[%s1986 + $0x18] sm:$0xf]
    %v1994 = vld [vmem:[%s1986 + $0x1c] sm:$0xf]
    %v1995 = vld [vmem:[%s1986 + $0x20] sm:$0xf]
    %v1996 = vld [vmem:[%s1986 + $0x24] sm:$0xf]
    %v1997 = vld [vmem:[%s1986 + $0x28] sm:$0xf]
    %v1998 = vld [vmem:[%s1986 + $0x2c] sm:$0xf]
    %v1999 = vld [vmem:[%s1986 + $0x30] sm:$0xf]
    %v2000 = vld [vmem:[%s1986 + $0x34] sm:$0xf]
    %v2001 = vld [vmem:[%s1986 + $0x38] sm:$0xf]
    %v2002 = vld [vmem:[%s1986 + $0x3c] sm:$0xf]
    %s2003 = scalar_lea.vmem %s12, 2
    %v2004 = vld [vmem:[%s2003] sm:$0x1]
    %v2006 = vperm.slane %v2004, 0
    %v2024 = vunpack.c.l.b16 %v1987
    %v2025 = vunpack.c.l.b16 %v1988
    %v2026 = vunpack.c.l.b16 %v1989
    %v2027 = vunpack.c.l.b16 %v1990
    %v2028 = vunpack.c.l.b16 %v1991
    %v2029 = vunpack.c.l.b16 %v1992
    %v2030 = vunpack.c.l.b16 %v1993
    %v2031 = vunpack.c.l.b16 %v1994
    %v2032 = vunpack.c.l.b16 %v1995
    %v2033 = vunpack.c.l.b16 %v1996
    %v2034 = vunpack.c.l.b16 %v1997
    %v2035 = vunpack.c.l.b16 %v1998
    %v2036 = vunpack.c.l.b16 %v1999
    %v2037 = vunpack.c.l.b16 %v2000
    %v2038 = vunpack.c.l.b16 %v2001
    %v2039 = vunpack.c.l.b16 %v2002
    %v2040 = vpack.c.b16 %v2025, %v2024
    %v2041 = vpack.c.b16 %v2027, %v2026
    %v2042 = vpack.c.b16 %v2029, %v2028
    %v2043 = vpack.c.b16 %v2031, %v2030
    %v2044 = vpack.c.b16 %v2033, %v2032
    %v2045 = vpack.c.b16 %v2035, %v2034
    %v2046 = vpack.c.b16 %v2037, %v2036
    %v2047 = vpack.c.b16 %v2039, %v2038
    %2056 = vmatpush.bf16.msra.mxu0 %v2047
    %2057 = vmatpush.bf16.msra.mxu0 %v2046
    %2058 = vmatpush.bf16.msra.mxu0 %v2045
    %2059 = vmatpush.bf16.msra.mxu0 %v2044
    %2060 = vmatpush.bf16.msra.mxu0 %v2043
    %2061 = vmatpush.bf16.msra.mxu0 %v2042
    %2062 = vmatpush.bf16.msra.mxu0 %v2041
    %2063 = vmatpush.bf16.msra.mxu0 %v2040
    %2064 = vmatmul.bf16.gmra.mxu0 %v98
    %v2065 = vpop.f32.mrf.mxu0
    %v2066 = vadd.f32 %v2006, %v2065
    %v2067 = vpop.f32.mrf.mxu0
    %v2068 = vadd.f32 %v2006, %v2067
    %2069 = vmatmul.bf16.gmra.mxu0 %v99
    %v2070 = vpop.f32.mrf.mxu0
    %v2071 = vadd.f32 %v2006, %v2070
    %v2072 = vpop.f32.mrf.mxu0
    %v2073 = vadd.f32 %v2006, %v2072
    %2074 = vmatmul.bf16.gmra.mxu0 %v100
    %v2075 = vpop.f32.mrf.mxu0
    %v2076 = vadd.f32 %v2006, %v2075
    %v2077 = vpop.f32.mrf.mxu0
    %v2078 = vadd.f32 %v2006, %v2077
    %2079 = vmatmul.bf16.gmra.mxu0 %v101
    %v2080 = vpop.f32.mrf.mxu0
    %v2081 = vadd.f32 %v2006, %v2080
    %v2082 = vpop.f32.mrf.mxu0
    %v2083 = vadd.f32 %v2006, %v2082
    %2084 = vdwg.mxu0
    %s2085 = scalar_lea.vmem %s10, 128
    %v2086 = vld [vmem:[%s2085] sm:$0xf]
    %v2087 = vld [vmem:[%s2085 + $0x4] sm:$0xf]
    %v2088 = vld [vmem:[%s2085 + $0x8] sm:$0xf]
    %v2089 = vld [vmem:[%s2085 + $0xc] sm:$0xf]
    %v2090 = vld [vmem:[%s2085 + $0x10] sm:$0xf]
    %v2091 = vld [vmem:[%s2085 + $0x14] sm:$0xf]
    %v2092 = vld [vmem:[%s2085 + $0x18] sm:$0xf]
    %v2093 = vld [vmem:[%s2085 + $0x1c] sm:$0xf]
    %v2094 = vld [vmem:[%s2085 + $0x20] sm:$0xf]
    %v2095 = vld [vmem:[%s2085 + $0x24] sm:$0xf]
    %v2096 = vld [vmem:[%s2085 + $0x28] sm:$0xf]
    %v2097 = vld [vmem:[%s2085 + $0x2c] sm:$0xf]
    %v2098 = vld [vmem:[%s2085 + $0x30] sm:$0xf]
    %v2099 = vld [vmem:[%s2085 + $0x34] sm:$0xf]
    %v2100 = vld [vmem:[%s2085 + $0x38] sm:$0xf]
    %v2101 = vld [vmem:[%s2085 + $0x3c] sm:$0xf]
    %s2102 = scalar_lea.vmem %s13, 2
    %v2103 = vld [vmem:[%s2102] sm:$0x1]
    %v2105 = vperm.slane %v2103, 0
    %v2123 = vunpack.c.l.b16 %v2086
    %v2124 = vunpack.c.l.b16 %v2087
    %v2125 = vunpack.c.l.b16 %v2088
    %v2126 = vunpack.c.l.b16 %v2089
    %v2127 = vunpack.c.l.b16 %v2090
    %v2128 = vunpack.c.l.b16 %v2091
    %v2129 = vunpack.c.l.b16 %v2092
    %v2130 = vunpack.c.l.b16 %v2093
    %v2131 = vunpack.c.l.b16 %v2094
    %v2132 = vunpack.c.l.b16 %v2095
    %v2133 = vunpack.c.l.b16 %v2096
    %v2134 = vunpack.c.l.b16 %v2097
    %v2135 = vunpack.c.l.b16 %v2098
    %v2136 = vunpack.c.l.b16 %v2099
    %v2137 = vunpack.c.l.b16 %v2100
    %v2138 = vunpack.c.l.b16 %v2101
    %v2139 = vpack.c.b16 %v2124, %v2123
    %v2140 = vpack.c.b16 %v2126, %v2125
    %v2141 = vpack.c.b16 %v2128, %v2127
    %v2142 = vpack.c.b16 %v2130, %v2129
    %v2143 = vpack.c.b16 %v2132, %v2131
    %v2144 = vpack.c.b16 %v2134, %v2133
    %v2145 = vpack.c.b16 %v2136, %v2135
    %v2146 = vpack.c.b16 %v2138, %v2137
    %2155 = vmatpush.bf16.msra.mxu0 %v2146
    %2156 = vmatpush.bf16.msra.mxu0 %v2145
    %2157 = vmatpush.bf16.msra.mxu0 %v2144
    %2158 = vmatpush.bf16.msra.mxu0 %v2143
    %2159 = vmatpush.bf16.msra.mxu0 %v2142
    %2160 = vmatpush.bf16.msra.mxu0 %v2141
    %2161 = vmatpush.bf16.msra.mxu0 %v2140
    %2162 = vmatpush.bf16.msra.mxu0 %v2139
    %2163 = vmatmul.bf16.gmra.mxu0 %v98
    %v2164 = vpop.f32.mrf.mxu0
    %v2165 = vadd.f32 %v2105, %v2164
    %v2166 = vpop.f32.mrf.mxu0
    %v2167 = vadd.f32 %v2105, %v2166
    %2168 = vmatmul.bf16.gmra.mxu0 %v99
    %v2169 = vpop.f32.mrf.mxu0
    %v2170 = vadd.f32 %v2105, %v2169
    %v2171 = vpop.f32.mrf.mxu0
    %v2172 = vadd.f32 %v2105, %v2171
    %2173 = vmatmul.bf16.gmra.mxu0 %v100
    %v2174 = vpop.f32.mrf.mxu0
    %v2175 = vadd.f32 %v2105, %v2174
    %v2176 = vpop.f32.mrf.mxu0
    %v2177 = vadd.f32 %v2105, %v2176
    %2178 = vmatmul.bf16.gmra.mxu0 %v101
    %v2179 = vpop.f32.mrf.mxu0
    %v2180 = vadd.f32 %v2105, %v2179
    %v2181 = vpop.f32.mrf.mxu0
    %v2182 = vadd.f32 %v2105, %v2181
    %2183 = vdwg.mxu0
    %v2184 = vpack.c.bf16 %v1969, %v1967
    %v2185 = vpack.c.bf16 %v1974, %v1972
    %v2186 = vpack.c.bf16 %v1979, %v1977
    %v2187 = vpack.c.bf16 %v1984, %v1982
    %v2188 = vpack.c.bf16 %v2068, %v2066
    %v2189 = vpack.c.bf16 %v2073, %v2071
    %v2190 = vpack.c.bf16 %v2078, %v2076
    %v2191 = vpack.c.bf16 %v2083, %v2081
    %v2193 = vsel %vm996, %v2184, 0
    %v2196 = vsel %vm996, %v2185, 0
    %v2199 = vsel %vm996, %v2186, 0
    %v2202 = vsel %vm996, %v2187, 0
    %v2205 = vsel %vm996, %v2188, 0
    %v2208 = vsel %vm996, %v2189, 0
    %v2211 = vsel %vm996, %v2190, 0
    %v2214 = vsel %vm996, %v2191, 0
    %2216 = vmatpush.bf16.xpose.msra.mxu0 0
    %2217 = vmatpush.bf16.xpose.msra.mxu0 0
    %2218 = vmatpush.bf16.xpose.msra.mxu0 0
    %2219 = vmatpush.bf16.xpose.msra.mxu0 0
    %2220 = vmatpush.bf16.xpose.msra.mxu0 %v2214
    %2221 = vmatpush.bf16.xpose.msra.mxu0 %v2211
    %2222 = vmatpush.bf16.xpose.msra.mxu0 %v2208
    %2223 = vmatpush.bf16.xpose.msra.mxu0 %v2205
    %2224 = vmatmul.bf16.gmra.mxu0 %v2193
    %v2225 = vpop.f32.mrf.mxu0
    %v2226 = vadd.f32 0.0, %v2225
    %v2227 = vpop.f32.mrf.mxu0
    %v2228 = vadd.f32 0.0, %v2227
    %2229 = vmatmul.bf16.gmra.mxu0 %v2196
    %v2230 = vpop.f32.mrf.mxu0
    %v2231 = vadd.f32 0.0, %v2230
    %v2232 = vpop.f32.mrf.mxu0
    %v2233 = vadd.f32 0.0, %v2232
    %2234 = vmatmul.bf16.gmra.mxu0 %v2199
    %v2235 = vpop.f32.mrf.mxu0
    %v2236 = vadd.f32 0.0, %v2235
    %v2237 = vpop.f32.mrf.mxu0
    %v2238 = vadd.f32 0.0, %v2237
    %2239 = vmatmul.bf16.gmra.mxu0 %v2202
    %v2240 = vpop.f32.mrf.mxu0
    %v2241 = vadd.f32 0.0, %v2240
    %v2242 = vpop.f32.mrf.mxu0
    %v2243 = vadd.f32 0.0, %v2242
    %2244 = vdwg.mxu0
    %v2245 = vmul.f32 %v2226, 0.17677669
    %v2246 = vmul.f32 %v2228, 0.17677669
    %v2247 = vmul.f32 %v2231, 0.17677669
    %v2248 = vmul.f32 %v2233, 0.17677669
    %v2249 = vmul.f32 %v2236, 0.17677669
    %v2250 = vmul.f32 %v2238, 0.17677669
    %v2251 = vmul.f32 %v2241, 0.17677669
    %v2252 = vmul.f32 %v2243, 0.17677669
    %v2253 = vsel %vm1058, %v2245, -inf
    %2254 = vmax.xlane.f32.xlu0 %v2253
    %v2255 = vpop.xlane.xlu0 %2254
    %v2256 = vsel %vm1058, %v2246, -inf
    %2257 = vmax.xlane.f32.xlu0 %v2256
    %v2258 = vpop.xlane.xlu0 %2257
    %v2259 = vsel %vm1058, %v2247, -inf
    %2260 = vmax.xlane.f32.xlu0 %v2259
    %v2261 = vpop.xlane.xlu0 %2260
    %v2262 = vsel %vm1058, %v2248, -inf
    %2263 = vmax.xlane.f32.xlu0 %v2262
    %v2264 = vpop.xlane.xlu0 %2263
    %v2265 = vsel %vm1058, %v2249, -inf
    %2266 = vmax.xlane.f32.xlu0 %v2265
    %v2267 = vpop.xlane.xlu0 %2266
    %v2268 = vsel %vm1058, %v2250, -inf
    %2269 = vmax.xlane.f32.xlu0 %v2268
    %v2270 = vpop.xlane.xlu0 %2269
    %v2271 = vsel %vm1058, %v2251, -inf
    %2272 = vmax.xlane.f32.xlu0 %v2271
    %v2273 = vpop.xlane.xlu0 %2272
    %v2274 = vsel %vm1058, %v2252, -inf
    %2275 = vmax.xlane.f32.xlu0 %v2274
    %v2276 = vpop.xlane.xlu0 %2275
    %v2277 = vsub.f32 %v2245, %v2255
    %v2278 = vsub.f32 %v2246, %v2258
    %v2279 = vsub.f32 %v2247, %v2261
    %v2280 = vsub.f32 %v2248, %v2264
    %v2281 = vsub.f32 %v2249, %v2267
    %v2282 = vsub.f32 %v2250, %v2270
    %v2283 = vsub.f32 %v2251, %v2273
    %v2284 = vsub.f32 %v2252, %v2276
    %v2285 = vmul.f32 %v2277, 1.442695
    %v2286 = vpow.pop %v2285
    %v2287 = vmul.f32 %v2278, 1.442695
    %v2288 = vpow.pop %v2287
    %v2289 = vmul.f32 %v2279, 1.442695
    %v2290 = vpow.pop %v2289
    %v2291 = vmul.f32 %v2280, 1.442695
    %v2292 = vpow.pop %v2291
    %v2293 = vmul.f32 %v2281, 1.442695
    %v2294 = vpow.pop %v2293
    %v2295 = vmul.f32 %v2282, 1.442695
    %v2296 = vpow.pop %v2295
    %v2297 = vmul.f32 %v2283, 1.442695
    %v2298 = vpow.pop %v2297
    %v2299 = vmul.f32 %v2284, 1.442695
    %v2300 = vpow.pop %v2299
    %v2301 = vsel %vm1058, %v2286, 0.0
    %2302 = vadd.xlane.f32.xlu0 %v2301
    %v2303 = vpop.xlane.xlu0 %2302
    %v2304 = vsel %vm1058, %v2288, 0.0
    %2305 = vadd.xlane.f32.xlu0 %v2304
    %v2306 = vpop.xlane.xlu0 %2305
    %v2307 = vsel %vm1058, %v2290, 0.0
    %2308 = vadd.xlane.f32.xlu0 %v2307
    %v2309 = vpop.xlane.xlu0 %2308
    %v2310 = vsel %vm1058, %v2292, 0.0
    %2311 = vadd.xlane.f32.xlu0 %v2310
    %v2312 = vpop.xlane.xlu0 %2311
    %v2313 = vsel %vm1058, %v2294, 0.0
    %2314 = vadd.xlane.f32.xlu0 %v2313
    %v2315 = vpop.xlane.xlu0 %2314
    %v2316 = vsel %vm1058, %v2296, 0.0
    %2317 = vadd.xlane.f32.xlu0 %v2316
    %v2318 = vpop.xlane.xlu0 %2317
    %v2319 = vsel %vm1058, %v2298, 0.0
    %2320 = vadd.xlane.f32.xlu0 %v2319
    %v2321 = vpop.xlane.xlu0 %2320
    %v2322 = vsel %vm1058, %v2300, 0.0
    %2323 = vadd.xlane.f32.xlu0 %v2322
    %v2324 = vpop.xlane.xlu0 %2323
    %v2325 = vrcp.pop %v2303
    %v2326 = vrcp.pop %v2306
    %v2327 = vrcp.pop %v2309
    %v2328 = vrcp.pop %v2312
    %v2329 = vrcp.pop %v2315
    %v2330 = vrcp.pop %v2318
    %v2331 = vrcp.pop %v2321
    %v2332 = vrcp.pop %v2324
    %v2333 = vmul.f32 %v2286, %v2325
    %v2334 = vmul.f32 %v2288, %v2326
    %v2335 = vmul.f32 %v2290, %v2327
    %v2336 = vmul.f32 %v2292, %v2328
    %v2337 = vmul.f32 %v2294, %v2329
    %v2338 = vmul.f32 %v2296, %v2330
    %v2339 = vmul.f32 %v2298, %v2331
    %v2340 = vmul.f32 %v2300, %v2332
    %v2341 = vpack.c.bf16 %v2334, %v2333
    %v2342 = vpack.c.bf16 %v2336, %v2335
    %v2343 = vpack.c.bf16 %v2338, %v2337
    %v2344 = vpack.c.bf16 %v2340, %v2339
    %v2345 = vpack.c.bf16 %v2167, %v2165
    %v2346 = vpack.c.bf16 %v2172, %v2170
    %v2347 = vpack.c.bf16 %v2177, %v2175
    %v2348 = vpack.c.bf16 %v2182, %v2180
    %v2350 = vsel %vm1058, %v2341, 0
    %v2353 = vsel %vm1058, %v2342, 0
    %v2356 = vsel %vm1058, %v2343, 0
    %v2359 = vsel %vm1058, %v2344, 0
    %2361 = vmatpush.bf16.msra.mxu0 0
    %2362 = vmatpush.bf16.msra.mxu0 0
    %2363 = vmatpush.bf16.msra.mxu0 0
    %2364 = vmatpush.bf16.msra.mxu0 0
    %2365 = vmatpush.bf16.msra.mxu0 %v2348
    %2366 = vmatpush.bf16.msra.mxu0 %v2347
    %2367 = vmatpush.bf16.msra.mxu0 %v2346
    %2368 = vmatpush.bf16.msra.mxu0 %v2345
    %2369 = vmatmul.bf16.gmra.mxu0 %v2350
    %v2370 = vpop.f32.mrf.mxu0
    %v2371 = vadd.f32 0.0, %v2370
    %v2372 = vpop.f32.mrf.mxu0
    %v2373 = vadd.f32 0.0, %v2372
    %2374 = vmatmul.bf16.gmra.mxu0 %v2353
    %v2375 = vpop.f32.mrf.mxu0
    %v2376 = vadd.f32 0.0, %v2375
    %v2377 = vpop.f32.mrf.mxu0
    %v2378 = vadd.f32 0.0, %v2377
    %2379 = vmatmul.bf16.gmra.mxu0 %v2356
    %v2380 = vpop.f32.mrf.mxu0
    %v2381 = vadd.f32 0.0, %v2380
    %v2382 = vpop.f32.mrf.mxu0
    %v2383 = vadd.f32 0.0, %v2382
    %2384 = vmatmul.bf16.gmra.mxu0 %v2359
    %v2385 = vpop.f32.mrf.mxu0
    %v2386 = vadd.f32 0.0, %v2385
    %v2387 = vpop.f32.mrf.mxu0
    %v2388 = vadd.f32 0.0, %v2387
    %2389 = vdwg.mxu0
    %v2390 = vld [vmem:[#allocation3] sm:$0xff]
    %v2391 = vld [vmem:[#allocation3 + $0x8] sm:$0xff]
    %v2392 = vld [vmem:[#allocation3 + $0x10] sm:$0xff]
    %v2393 = vld [vmem:[#allocation3 + $0x18] sm:$0xff]
    %v2394 = vld [vmem:[#allocation3 + $0x20] sm:$0xff]
    %v2395 = vld [vmem:[#allocation3 + $0x28] sm:$0xff]
    %v2396 = vld [vmem:[#allocation3 + $0x30] sm:$0xff]
    %v2397 = vld [vmem:[#allocation3 + $0x38] sm:$0xff]
    %v2398 = vpack.c.bf16 %v2373, %v2371
    %v2399 = vpack.c.bf16 %v2378, %v2376
    %v2400 = vpack.c.bf16 %v2383, %v2381
    %v2401 = vpack.c.bf16 %v2388, %v2386
    %s2402 = scalar_lea.vmem %s14, 32
    %v2403 = vld [vmem:[%s2402] sm:$0xf]
    %v2404 = vld [vmem:[%s2402 + $0x4] sm:$0xf]
    %v2405 = vld [vmem:[%s2402 + $0x8] sm:$0xf]
    %v2406 = vld [vmem:[%s2402 + $0xc] sm:$0xf]
    %v2411 = vunpack.c.l.b16 %v2403
    %v2412 = vunpack.c.l.b16 %v2404
    %v2413 = vunpack.c.l.b16 %v2405
    %v2414 = vunpack.c.l.b16 %v2406
    %v2415 = vpack.c.b16 %v2412, %v2411
    %v2416 = vpack.c.b16 %v2414, %v2413
    %v2420 = vsel %vm996, %v2398, 0
    %v2423 = vsel %vm996, %v2399, 0
    %v2426 = vsel %vm996, %v2400, 0
    %v2429 = vsel %vm996, %v2401, 0
    %2431 = vmatpush.bf16.msra.mxu0 0
    %2432 = vmatpush.bf16.msra.mxu0 0
    %2433 = vmatpush.bf16.msra.mxu0 0
    %2434 = vmatpush.bf16.msra.mxu0 0
    %2435 = vmatpush.bf16.msra.mxu0 0
    %2436 = vmatpush.bf16.msra.mxu0 0
    %2437 = vmatpush.bf16.msra.mxu0 %v2416
    %2438 = vmatpush.bf16.msra.mxu0 %v2415
    %2439 = vmatmul.bf16.gmra.mxu0 %v2420
    %v2440 = vpop.f32.mrf.mxu0
    %v2441 = vadd.f32 0.0, %v2440
    %v2442 = vpop.f32.mrf.mxu0
    %v2443 = vadd.f32 0.0, %v2442
    %2444 = vmatmul.bf16.gmra.mxu0 %v2423
    %v2445 = vpop.f32.mrf.mxu0
    %v2446 = vadd.f32 0.0, %v2445
    %v2447 = vpop.f32.mrf.mxu0
    %v2448 = vadd.f32 0.0, %v2447
    %2449 = vmatmul.bf16.gmra.mxu0 %v2426
    %v2450 = vpop.f32.mrf.mxu0
    %v2451 = vadd.f32 0.0, %v2450
    %v2452 = vpop.f32.mrf.mxu0
    %v2453 = vadd.f32 0.0, %v2452
    %2454 = vmatmul.bf16.gmra.mxu0 %v2429
    %v2455 = vpop.f32.mrf.mxu0
    %v2456 = vadd.f32 0.0, %v2455
    %v2457 = vpop.f32.mrf.mxu0
    %v2458 = vadd.f32 0.0, %v2457
    %2459 = vdwg.mxu0
    %v2460 = vmul.f32 %v1265, %v2441
    %v2461 = vmul.f32 %v1265, %v2443
    %v2462 = vmul.f32 %v1265, %v2446
    %v2463 = vmul.f32 %v1265, %v2448
    %v2464 = vmul.f32 %v1265, %v2451
    %v2465 = vmul.f32 %v1265, %v2453
    %v2466 = vmul.f32 %v1265, %v2456
    %v2467 = vmul.f32 %v1265, %v2458
    %v2468 = vadd.f32 %v2390, %v2460
    %v2469 = vadd.f32 %v2391, %v2461
    %v2470 = vadd.f32 %v2392, %v2462
    %v2471 = vadd.f32 %v2393, %v2463
    %v2472 = vadd.f32 %v2394, %v2464
    %v2473 = vadd.f32 %v2395, %v2465
    %v2474 = vadd.f32 %v2396, %v2466
    %v2475 = vadd.f32 %v2397, %v2467
    %2476 = vst [vmem:[#allocation3] sm:$0xff] %v2468
    %2477 = vst [vmem:[#allocation3 + $0x8] sm:$0xff] %v2469
    %2478 = vst [vmem:[#allocation3 + $0x10] sm:$0xff] %v2470
    %2479 = vst [vmem:[#allocation3 + $0x18] sm:$0xff] %v2471
    %2480 = vst [vmem:[#allocation3 + $0x20] sm:$0xff] %v2472
    %2481 = vst [vmem:[#allocation3 + $0x28] sm:$0xff] %v2473
    %2482 = vst [vmem:[#allocation3 + $0x30] sm:$0xff] %v2474
    %2483 = vst [vmem:[#allocation3 + $0x38] sm:$0xff] %v2475
    %s2484 = scalar_lea.vmem %s8, 192
    %v2485 = vld [vmem:[%s2484] sm:$0xf]
    %v2486 = vld [vmem:[%s2484 + $0x4] sm:$0xf]
    %v2487 = vld [vmem:[%s2484 + $0x8] sm:$0xf]
    %v2488 = vld [vmem:[%s2484 + $0xc] sm:$0xf]
    %v2489 = vld [vmem:[%s2484 + $0x10] sm:$0xf]
    %v2490 = vld [vmem:[%s2484 + $0x14] sm:$0xf]
    %v2491 = vld [vmem:[%s2484 + $0x18] sm:$0xf]
    %v2492 = vld [vmem:[%s2484 + $0x1c] sm:$0xf]
    %v2493 = vld [vmem:[%s2484 + $0x20] sm:$0xf]
    %v2494 = vld [vmem:[%s2484 + $0x24] sm:$0xf]
    %v2495 = vld [vmem:[%s2484 + $0x28] sm:$0xf]
    %v2496 = vld [vmem:[%s2484 + $0x2c] sm:$0xf]
    %v2497 = vld [vmem:[%s2484 + $0x30] sm:$0xf]
    %v2498 = vld [vmem:[%s2484 + $0x34] sm:$0xf]
    %v2499 = vld [vmem:[%s2484 + $0x38] sm:$0xf]
    %v2500 = vld [vmem:[%s2484 + $0x3c] sm:$0xf]
    %s2501 = scalar_lea.vmem %s11, 3
    %v2502 = vld [vmem:[%s2501] sm:$0x1]
    %v2504 = vperm.slane %v2502, 0
    %v2522 = vunpack.c.l.b16 %v2485
    %v2523 = vunpack.c.l.b16 %v2486
    %v2524 = vunpack.c.l.b16 %v2487
    %v2525 = vunpack.c.l.b16 %v2488
    %v2526 = vunpack.c.l.b16 %v2489
    %v2527 = vunpack.c.l.b16 %v2490
    %v2528 = vunpack.c.l.b16 %v2491
    %v2529 = vunpack.c.l.b16 %v2492
    %v2530 = vunpack.c.l.b16 %v2493
    %v2531 = vunpack.c.l.b16 %v2494
    %v2532 = vunpack.c.l.b16 %v2495
    %v2533 = vunpack.c.l.b16 %v2496
    %v2534 = vunpack.c.l.b16 %v2497
    %v2535 = vunpack.c.l.b16 %v2498
    %v2536 = vunpack.c.l.b16 %v2499
    %v2537 = vunpack.c.l.b16 %v2500
    %v2538 = vpack.c.b16 %v2523, %v2522
    %v2539 = vpack.c.b16 %v2525, %v2524
    %v2540 = vpack.c.b16 %v2527, %v2526
    %v2541 = vpack.c.b16 %v2529, %v2528
    %v2542 = vpack.c.b16 %v2531, %v2530
    %v2543 = vpack.c.b16 %v2533, %v2532
    %v2544 = vpack.c.b16 %v2535, %v2534
    %v2545 = vpack.c.b16 %v2537, %v2536
    %2554 = vmatpush.bf16.msra.mxu0 %v2545
    %2555 = vmatpush.bf16.msra.mxu0 %v2544
    %2556 = vmatpush.bf16.msra.mxu0 %v2543
    %2557 = vmatpush.bf16.msra.mxu0 %v2542
    %2558 = vmatpush.bf16.msra.mxu0 %v2541
    %2559 = vmatpush.bf16.msra.mxu0 %v2540
    %2560 = vmatpush.bf16.msra.mxu0 %v2539
    %2561 = vmatpush.bf16.msra.mxu0 %v2538
    %2562 = vmatmul.bf16.gmra.mxu0 %v86
    %v2563 = vpop.f32.mrf.mxu0
    %v2564 = vadd.f32 %v2504, %v2563
    %v2565 = vpop.f32.mrf.mxu0
    %v2566 = vadd.f32 %v2504, %v2565
    %2567 = vmatmul.bf16.gmra.mxu0 %v87
    %v2568 = vpop.f32.mrf.mxu0
    %v2569 = vadd.f32 %v2504, %v2568
    %v2570 = vpop.f32.mrf.mxu0
    %v2571 = vadd.f32 %v2504, %v2570
    %2572 = vmatmul.bf16.gmra.mxu0 %v88
    %v2573 = vpop.f32.mrf.mxu0
    %v2574 = vadd.f32 %v2504, %v2573
    %v2575 = vpop.f32.mrf.mxu0
    %v2576 = vadd.f32 %v2504, %v2575
    %2577 = vmatmul.bf16.gmra.mxu0 %v89
    %v2578 = vpop.f32.mrf.mxu0
    %v2579 = vadd.f32 %v2504, %v2578
    %v2580 = vpop.f32.mrf.mxu0
    %v2581 = vadd.f32 %v2504, %v2580
    %2582 = vdwg.mxu0
    %s2583 = scalar_lea.vmem %s9, 192
    %v2584 = vld [vmem:[%s2583] sm:$0xf]
    %v2585 = vld [vmem:[%s2583 + $0x4] sm:$0xf]
    %v2586 = vld [vmem:[%s2583 + $0x8] sm:$0xf]
    %v2587 = vld [vmem:[%s2583 + $0xc] sm:$0xf]
    %v2588 = vld [vmem:[%s2583 + $0x10] sm:$0xf]
    %v2589 = vld [vmem:[%s2583 + $0x14] sm:$0xf]
    %v2590 = vld [vmem:[%s2583 + $0x18] sm:$0xf]
    %v2591 = vld [vmem:[%s2583 + $0x1c] sm:$0xf]
    %v2592 = vld [vmem:[%s2583 + $0x20] sm:$0xf]
    %v2593 = vld [vmem:[%s2583 + $0x24] sm:$0xf]
    %v2594 = vld [vmem:[%s2583 + $0x28] sm:$0xf]
    %v2595 = vld [vmem:[%s2583 + $0x2c] sm:$0xf]
    %v2596 = vld [vmem:[%s2583 + $0x30] sm:$0xf]
    %v2597 = vld [vmem:[%s2583 + $0x34] sm:$0xf]
    %v2598 = vld [vmem:[%s2583 + $0x38] sm:$0xf]
    %v2599 = vld [vmem:[%s2583 + $0x3c] sm:$0xf]
    %s2600 = scalar_lea.vmem %s12, 3
    %v2601 = vld [vmem:[%s2600] sm:$0x1]
    %v2603 = vperm.slane %v2601, 0
    %v2621 = vunpack.c.l.b16 %v2584
    %v2622 = vunpack.c.l.b16 %v2585
    %v2623 = vunpack.c.l.b16 %v2586
    %v2624 = vunpack.c.l.b16 %v2587
    %v2625 = vunpack.c.l.b16 %v2588
    %v2626 = vunpack.c.l.b16 %v2589
    %v2627 = vunpack.c.l.b16 %v2590
    %v2628 = vunpack.c.l.b16 %v2591
    %v2629 = vunpack.c.l.b16 %v2592
    %v2630 = vunpack.c.l.b16 %v2593
    %v2631 = vunpack.c.l.b16 %v2594
    %v2632 = vunpack.c.l.b16 %v2595
    %v2633 = vunpack.c.l.b16 %v2596
    %v2634 = vunpack.c.l.b16 %v2597
    %v2635 = vunpack.c.l.b16 %v2598
    %v2636 = vunpack.c.l.b16 %v2599
    %v2637 = vpack.c.b16 %v2622, %v2621
    %v2638 = vpack.c.b16 %v2624, %v2623
    %v2639 = vpack.c.b16 %v2626, %v2625
    %v2640 = vpack.c.b16 %v2628, %v2627
    %v2641 = vpack.c.b16 %v2630, %v2629
    %v2642 = vpack.c.b16 %v2632, %v2631
    %v2643 = vpack.c.b16 %v2634, %v2633
    %v2644 = vpack.c.b16 %v2636, %v2635
    %2653 = vmatpush.bf16.msra.mxu0 %v2644
    %2654 = vmatpush.bf16.msra.mxu0 %v2643
    %2655 = vmatpush.bf16.msra.mxu0 %v2642
    %2656 = vmatpush.bf16.msra.mxu0 %v2641
    %2657 = vmatpush.bf16.msra.mxu0 %v2640
    %2658 = vmatpush.bf16.msra.mxu0 %v2639
    %2659 = vmatpush.bf16.msra.mxu0 %v2638
    %2660 = vmatpush.bf16.msra.mxu0 %v2637
    %2661 = vmatmul.bf16.gmra.mxu0 %v98
    %v2662 = vpop.f32.mrf.mxu0
    %v2663 = vadd.f32 %v2603, %v2662
    %v2664 = vpop.f32.mrf.mxu0
    %v2665 = vadd.f32 %v2603, %v2664
    %2666 = vmatmul.bf16.gmra.mxu0 %v99
    %v2667 = vpop.f32.mrf.mxu0
    %v2668 = vadd.f32 %v2603, %v2667
    %v2669 = vpop.f32.mrf.mxu0
    %v2670 = vadd.f32 %v2603, %v2669
    %2671 = vmatmul.bf16.gmra.mxu0 %v100
    %v2672 = vpop.f32.mrf.mxu0
    %v2673 = vadd.f32 %v2603, %v2672
    %v2674 = vpop.f32.mrf.mxu0
    %v2675 = vadd.f32 %v2603, %v2674
    %2676 = vmatmul.bf16.gmra.mxu0 %v101
    %v2677 = vpop.f32.mrf.mxu0
    %v2678 = vadd.f32 %v2603, %v2677
    %v2679 = vpop.f32.mrf.mxu0
    %v2680 = vadd.f32 %v2603, %v2679
    %2681 = vdwg.mxu0
    %s2682 = scalar_lea.vmem %s10, 192
    %v2683 = vld [vmem:[%s2682] sm:$0xf]
    %v2684 = vld [vmem:[%s2682 + $0x4] sm:$0xf]
    %v2685 = vld [vmem:[%s2682 + $0x8] sm:$0xf]
    %v2686 = vld [vmem:[%s2682 + $0xc] sm:$0xf]
    %v2687 = vld [vmem:[%s2682 + $0x10] sm:$0xf]
    %v2688 = vld [vmem:[%s2682 + $0x14] sm:$0xf]
    %v2689 = vld [vmem:[%s2682 + $0x18] sm:$0xf]
    %v2690 = vld [vmem:[%s2682 + $0x1c] sm:$0xf]
    %v2691 = vld [vmem:[%s2682 + $0x20] sm:$0xf]
    %v2692 = vld [vmem:[%s2682 + $0x24] sm:$0xf]
    %v2693 = vld [vmem:[%s2682 + $0x28] sm:$0xf]
    %v2694 = vld [vmem:[%s2682 + $0x2c] sm:$0xf]
    %v2695 = vld [vmem:[%s2682 + $0x30] sm:$0xf]
    %v2696 = vld [vmem:[%s2682 + $0x34] sm:$0xf]
    %v2697 = vld [vmem:[%s2682 + $0x38] sm:$0xf]
    %v2698 = vld [vmem:[%s2682 + $0x3c] sm:$0xf]
    %s2699 = scalar_lea.vmem %s13, 3
    %v2700 = vld [vmem:[%s2699] sm:$0x1]
    %v2702 = vperm.slane %v2700, 0
    %v2720 = vunpack.c.l.b16 %v2683
    %v2721 = vunpack.c.l.b16 %v2684
    %v2722 = vunpack.c.l.b16 %v2685
    %v2723 = vunpack.c.l.b16 %v2686
    %v2724 = vunpack.c.l.b16 %v2687
    %v2725 = vunpack.c.l.b16 %v2688
    %v2726 = vunpack.c.l.b16 %v2689
    %v2727 = vunpack.c.l.b16 %v2690
    %v2728 = vunpack.c.l.b16 %v2691
    %v2729 = vunpack.c.l.b16 %v2692
    %v2730 = vunpack.c.l.b16 %v2693
    %v2731 = vunpack.c.l.b16 %v2694
    %v2732 = vunpack.c.l.b16 %v2695
    %v2733 = vunpack.c.l.b16 %v2696
    %v2734 = vunpack.c.l.b16 %v2697
    %v2735 = vunpack.c.l.b16 %v2698
    %v2736 = vpack.c.b16 %v2721, %v2720
    %v2737 = vpack.c.b16 %v2723, %v2722
    %v2738 = vpack.c.b16 %v2725, %v2724
    %v2739 = vpack.c.b16 %v2727, %v2726
    %v2740 = vpack.c.b16 %v2729, %v2728
    %v2741 = vpack.c.b16 %v2731, %v2730
    %v2742 = vpack.c.b16 %v2733, %v2732
    %v2743 = vpack.c.b16 %v2735, %v2734
    %2752 = vmatpush.bf16.msra.mxu0 %v2743
    %2753 = vmatpush.bf16.msra.mxu0 %v2742
    %2754 = vmatpush.bf16.msra.mxu0 %v2741
    %2755 = vmatpush.bf16.msra.mxu0 %v2740
    %2756 = vmatpush.bf16.msra.mxu0 %v2739
    %2757 = vmatpush.bf16.msra.mxu0 %v2738
    %2758 = vmatpush.bf16.msra.mxu0 %v2737
    %2759 = vmatpush.bf16.msra.mxu0 %v2736
    %2760 = vmatmul.bf16.gmra.mxu0 %v98
    %v2761 = vpop.f32.mrf.mxu0
    %v2762 = vadd.f32 %v2702, %v2761
    %v2763 = vpop.f32.mrf.mxu0
    %v2764 = vadd.f32 %v2702, %v2763
    %2765 = vmatmul.bf16.gmra.mxu0 %v99
    %v2766 = vpop.f32.mrf.mxu0
    %v2767 = vadd.f32 %v2702, %v2766
    %v2768 = vpop.f32.mrf.mxu0
    %v2769 = vadd.f32 %v2702, %v2768
    %2770 = vmatmul.bf16.gmra.mxu0 %v100
    %v2771 = vpop.f32.mrf.mxu0
    %v2772 = vadd.f32 %v2702, %v2771
    %v2773 = vpop.f32.mrf.mxu0
    %v2774 = vadd.f32 %v2702, %v2773
    %2775 = vmatmul.bf16.gmra.mxu0 %v101
    %v2776 = vpop.f32.mrf.mxu0
    %v2777 = vadd.f32 %v2702, %v2776
    %v2778 = vpop.f32.mrf.mxu0
    %v2779 = vadd.f32 %v2702, %v2778
    %2780 = vdwg.mxu0
    %v2781 = vpack.c.bf16 %v2566, %v2564
    %v2782 = vpack.c.bf16 %v2571, %v2569
    %v2783 = vpack.c.bf16 %v2576, %v2574
    %v2784 = vpack.c.bf16 %v2581, %v2579
    %v2785 = vpack.c.bf16 %v2665, %v2663
    %v2786 = vpack.c.bf16 %v2670, %v2668
    %v2787 = vpack.c.bf16 %v2675, %v2673
    %v2788 = vpack.c.bf16 %v2680, %v2678
    %v2790 = vsel %vm996, %v2781, 0
    %v2793 = vsel %vm996, %v2782, 0
    %v2796 = vsel %vm996, %v2783, 0
    %v2799 = vsel %vm996, %v2784, 0
    %v2802 = vsel %vm996, %v2785, 0
    %v2805 = vsel %vm996, %v2786, 0
    %v2808 = vsel %vm996, %v2787, 0
    %v2811 = vsel %vm996, %v2788, 0
    %2813 = vmatpush.bf16.xpose.msra.mxu0 0
    %2814 = vmatpush.bf16.xpose.msra.mxu0 0
    %2815 = vmatpush.bf16.xpose.msra.mxu0 0
    %2816 = vmatpush.bf16.xpose.msra.mxu0 0
    %2817 = vmatpush.bf16.xpose.msra.mxu0 %v2811
    %2818 = vmatpush.bf16.xpose.msra.mxu0 %v2808
    %2819 = vmatpush.bf16.xpose.msra.mxu0 %v2805
    %2820 = vmatpush.bf16.xpose.msra.mxu0 %v2802
    %2821 = vmatmul.bf16.gmra.mxu0 %v2790
    %v2822 = vpop.f32.mrf.mxu0
    %v2823 = vadd.f32 0.0, %v2822
    %v2824 = vpop.f32.mrf.mxu0
    %v2825 = vadd.f32 0.0, %v2824
    %2826 = vmatmul.bf16.gmra.mxu0 %v2793
    %v2827 = vpop.f32.mrf.mxu0
    %v2828 = vadd.f32 0.0, %v2827
    %v2829 = vpop.f32.mrf.mxu0
    %v2830 = vadd.f32 0.0, %v2829
    %2831 = vmatmul.bf16.gmra.mxu0 %v2796
    %v2832 = vpop.f32.mrf.mxu0
    %v2833 = vadd.f32 0.0, %v2832
    %v2834 = vpop.f32.mrf.mxu0
    %v2835 = vadd.f32 0.0, %v2834
    %2836 = vmatmul.bf16.gmra.mxu0 %v2799
    %v2837 = vpop.f32.mrf.mxu0
    %v2838 = vadd.f32 0.0, %v2837
    %v2839 = vpop.f32.mrf.mxu0
    %v2840 = vadd.f32 0.0, %v2839
    %2841 = vdwg.mxu0
    %v2842 = vmul.f32 %v2823, 0.17677669
    %v2843 = vmul.f32 %v2825, 0.17677669
    %v2844 = vmul.f32 %v2828, 0.17677669
    %v2845 = vmul.f32 %v2830, 0.17677669
    %v2846 = vmul.f32 %v2833, 0.17677669
    %v2847 = vmul.f32 %v2835, 0.17677669
    %v2848 = vmul.f32 %v2838, 0.17677669
    %v2849 = vmul.f32 %v2840, 0.17677669
    %v2850 = vsel %vm1058, %v2842, -inf
    %2851 = vmax.xlane.f32.xlu0 %v2850
    %v2852 = vpop.xlane.xlu0 %2851
    %v2853 = vsel %vm1058, %v2843, -inf
    %2854 = vmax.xlane.f32.xlu0 %v2853
    %v2855 = vpop.xlane.xlu0 %2854
    %v2856 = vsel %vm1058, %v2844, -inf
    %2857 = vmax.xlane.f32.xlu0 %v2856
    %v2858 = vpop.xlane.xlu0 %2857
    %v2859 = vsel %vm1058, %v2845, -inf
    %2860 = vmax.xlane.f32.xlu0 %v2859
    %v2861 = vpop.xlane.xlu0 %2860
    %v2862 = vsel %vm1058, %v2846, -inf
    %2863 = vmax.xlane.f32.xlu0 %v2862
    %v2864 = vpop.xlane.xlu0 %2863
    %v2865 = vsel %vm1058, %v2847, -inf
    %2866 = vmax.xlane.f32.xlu0 %v2865
    %v2867 = vpop.xlane.xlu0 %2866
    %v2868 = vsel %vm1058, %v2848, -inf
    %2869 = vmax.xlane.f32.xlu0 %v2868
    %v2870 = vpop.xlane.xlu0 %2869
    %v2871 = vsel %vm1058, %v2849, -inf
    %2872 = vmax.xlane.f32.xlu0 %v2871
    %v2873 = vpop.xlane.xlu0 %2872
    %v2874 = vsub.f32 %v2842, %v2852
    %v2875 = vsub.f32 %v2843, %v2855
    %v2876 = vsub.f32 %v2844, %v2858
    %v2877 = vsub.f32 %v2845, %v2861
    %v2878 = vsub.f32 %v2846, %v2864
    %v2879 = vsub.f32 %v2847, %v2867
    %v2880 = vsub.f32 %v2848, %v2870
    %v2881 = vsub.f32 %v2849, %v2873
    %v2882 = vmul.f32 %v2874, 1.442695
    %v2883 = vpow.pop %v2882
    %v2884 = vmul.f32 %v2875, 1.442695
    %v2885 = vpow.pop %v2884
    %v2886 = vmul.f32 %v2876, 1.442695
    %v2887 = vpow.pop %v2886
    %v2888 = vmul.f32 %v2877, 1.442695
    %v2889 = vpow.pop %v2888
    %v2890 = vmul.f32 %v2878, 1.442695
    %v2891 = vpow.pop %v2890
    %v2892 = vmul.f32 %v2879, 1.442695
    %v2893 = vpow.pop %v2892
    %v2894 = vmul.f32 %v2880, 1.442695
    %v2895 = vpow.pop %v2894
    %v2896 = vmul.f32 %v2881, 1.442695
    %v2897 = vpow.pop %v2896
    %v2898 = vsel %vm1058, %v2883, 0.0
    %2899 = vadd.xlane.f32.xlu0 %v2898
    %v2900 = vpop.xlane.xlu0 %2899
    %v2901 = vsel %vm1058, %v2885, 0.0
    %2902 = vadd.xlane.f32.xlu0 %v2901
    %v2903 = vpop.xlane.xlu0 %2902
    %v2904 = vsel %vm1058, %v2887, 0.0
    %2905 = vadd.xlane.f32.xlu0 %v2904
    %v2906 = vpop.xlane.xlu0 %2905
    %v2907 = vsel %vm1058, %v2889, 0.0
    %2908 = vadd.xlane.f32.xlu0 %v2907
    %v2909 = vpop.xlane.xlu0 %2908
    %v2910 = vsel %vm1058, %v2891, 0.0
    %2911 = vadd.xlane.f32.xlu0 %v2910
    %v2912 = vpop.xlane.xlu0 %2911
    %v2913 = vsel %vm1058, %v2893, 0.0
    %2914 = vadd.xlane.f32.xlu0 %v2913
    %v2915 = vpop.xlane.xlu0 %2914
    %v2916 = vsel %vm1058, %v2895, 0.0
    %2917 = vadd.xlane.f32.xlu0 %v2916
    %v2918 = vpop.xlane.xlu0 %2917
    %v2919 = vsel %vm1058, %v2897, 0.0
    %2920 = vadd.xlane.f32.xlu0 %v2919
    %v2921 = vpop.xlane.xlu0 %2920
    %v2922 = vrcp.pop %v2900
    %v2923 = vrcp.pop %v2903
    %v2924 = vrcp.pop %v2906
    %v2925 = vrcp.pop %v2909
    %v2926 = vrcp.pop %v2912
    %v2927 = vrcp.pop %v2915
    %v2928 = vrcp.pop %v2918
    %v2929 = vrcp.pop %v2921
    %v2930 = vmul.f32 %v2883, %v2922
    %v2931 = vmul.f32 %v2885, %v2923
    %v2932 = vmul.f32 %v2887, %v2924
    %v2933 = vmul.f32 %v2889, %v2925
    %v2934 = vmul.f32 %v2891, %v2926
    %v2935 = vmul.f32 %v2893, %v2927
    %v2936 = vmul.f32 %v2895, %v2928
    %v2937 = vmul.f32 %v2897, %v2929
    %v2938 = vpack.c.bf16 %v2931, %v2930
    %v2939 = vpack.c.bf16 %v2933, %v2932
    %v2940 = vpack.c.bf16 %v2935, %v2934
    %v2941 = vpack.c.bf16 %v2937, %v2936
    %v2942 = vpack.c.bf16 %v2764, %v2762
    %v2943 = vpack.c.bf16 %v2769, %v2767
    %v2944 = vpack.c.bf16 %v2774, %v2772
    %v2945 = vpack.c.bf16 %v2779, %v2777
    %v2947 = vsel %vm1058, %v2938, 0
    %v2950 = vsel %vm1058, %v2939, 0
    %v2953 = vsel %vm1058, %v2940, 0
    %v2956 = vsel %vm1058, %v2941, 0
    %2958 = vmatpush.bf16.msra.mxu0 0
    %2959 = vmatpush.bf16.msra.mxu0 0
    %2960 = vmatpush.bf16.msra.mxu0 0
    %2961 = vmatpush.bf16.msra.mxu0 0
    %2962 = vmatpush.bf16.msra.mxu0 %v2945
    %2963 = vmatpush.bf16.msra.mxu0 %v2944
    %2964 = vmatpush.bf16.msra.mxu0 %v2943
    %2965 = vmatpush.bf16.msra.mxu0 %v2942
    %2966 = vmatmul.bf16.gmra.mxu0 %v2947
    %v2967 = vpop.f32.mrf.mxu0
    %v2968 = vadd.f32 0.0, %v2967
    %v2969 = vpop.f32.mrf.mxu0
    %v2970 = vadd.f32 0.0, %v2969
    %2971 = vmatmul.bf16.gmra.mxu0 %v2950
    %v2972 = vpop.f32.mrf.mxu0
    %v2973 = vadd.f32 0.0, %v2972
    %v2974 = vpop.f32.mrf.mxu0
    %v2975 = vadd.f32 0.0, %v2974
    %2976 = vmatmul.bf16.gmra.mxu0 %v2953
    %v2977 = vpop.f32.mrf.mxu0
    %v2978 = vadd.f32 0.0, %v2977
    %v2979 = vpop.f32.mrf.mxu0
    %v2980 = vadd.f32 0.0, %v2979
    %2981 = vmatmul.bf16.gmra.mxu0 %v2956
    %v2982 = vpop.f32.mrf.mxu0
    %v2983 = vadd.f32 0.0, %v2982
    %v2984 = vpop.f32.mrf.mxu0
    %v2985 = vadd.f32 0.0, %v2984
    %2986 = vdwg.mxu0
    %v2987 = vld [vmem:[#allocation3] sm:$0xff]
    %v2988 = vld [vmem:[#allocation3 + $0x8] sm:$0xff]
    %v2989 = vld [vmem:[#allocation3 + $0x10] sm:$0xff]
    %v2990 = vld [vmem:[#allocation3 + $0x18] sm:$0xff]
    %v2991 = vld [vmem:[#allocation3 + $0x20] sm:$0xff]
    %v2992 = vld [vmem:[#allocation3 + $0x28] sm:$0xff]
    %v2993 = vld [vmem:[#allocation3 + $0x30] sm:$0xff]
    %v2994 = vld [vmem:[#allocation3 + $0x38] sm:$0xff]
    %v2995 = vpack.c.bf16 %v2970, %v2968
    %v2996 = vpack.c.bf16 %v2975, %v2973
    %v2997 = vpack.c.bf16 %v2980, %v2978
    %v2998 = vpack.c.bf16 %v2985, %v2983
    %s2999 = scalar_lea.vmem %s14, 48
    %v3000 = vld [vmem:[%s2999] sm:$0xf]
    %v3001 = vld [vmem:[%s2999 + $0x4] sm:$0xf]
    %v3002 = vld [vmem:[%s2999 + $0x8] sm:$0xf]
    %v3003 = vld [vmem:[%s2999 + $0xc] sm:$0xf]
    %v3008 = vunpack.c.l.b16 %v3000
    %v3009 = vunpack.c.l.b16 %v3001
    %v3010 = vunpack.c.l.b16 %v3002
    %v3011 = vunpack.c.l.b16 %v3003
    %v3012 = vpack.c.b16 %v3009, %v3008
    %v3013 = vpack.c.b16 %v3011, %v3010
    %v3017 = vsel %vm996, %v2995, 0
    %v3020 = vsel %vm996, %v2996, 0
    %v3023 = vsel %vm996, %v2997, 0
    %v3026 = vsel %vm996, %v2998, 0
    %3028 = vmatpush.bf16.msra.mxu0 0
    %3029 = vmatpush.bf16.msra.mxu0 0
    %3030 = vmatpush.bf16.msra.mxu0 0
    %3031 = vmatpush.bf16.msra.mxu0 0
    %3032 = vmatpush.bf16.msra.mxu0 0
    %3033 = vmatpush.bf16.msra.mxu0 0
    %3034 = vmatpush.bf16.msra.mxu0 %v3013
    %3035 = vmatpush.bf16.msra.mxu0 %v3012
    %3036 = vmatmul.bf16.gmra.mxu0 %v3017
    %v3037 = vpop.f32.mrf.mxu0
    %v3038 = vadd.f32 0.0, %v3037
    %v3039 = vpop.f32.mrf.mxu0
    %v3040 = vadd.f32 0.0, %v3039
    %3041 = vmatmul.bf16.gmra.mxu0 %v3020
    %v3042 = vpop.f32.mrf.mxu0
    %v3043 = vadd.f32 0.0, %v3042
    %v3044 = vpop.f32.mrf.mxu0
    %v3045 = vadd.f32 0.0, %v3044
    %3046 = vmatmul.bf16.gmra.mxu0 %v3023
    %v3047 = vpop.f32.mrf.mxu0
    %v3048 = vadd.f32 0.0, %v3047
    %v3049 = vpop.f32.mrf.mxu0
    %v3050 = vadd.f32 0.0, %v3049
    %3051 = vmatmul.bf16.gmra.mxu0 %v3026
    %v3052 = vpop.f32.mrf.mxu0
    %v3053 = vadd.f32 0.0, %v3052
    %v3054 = vpop.f32.mrf.mxu0
    %v3055 = vadd.f32 0.0, %v3054
    %3056 = vdwg.mxu0
    %v3057 = vmul.f32 %v1265, %v3038
    %v3058 = vmul.f32 %v1265, %v3040
    %v3059 = vmul.f32 %v1265, %v3043
    %v3060 = vmul.f32 %v1265, %v3045
    %v3061 = vmul.f32 %v1265, %v3048
    %v3062 = vmul.f32 %v1265, %v3050
    %v3063 = vmul.f32 %v1265, %v3053
    %v3064 = vmul.f32 %v1265, %v3055
    %v3065 = vadd.f32 %v2987, %v3057
    %v3066 = vadd.f32 %v2988, %v3058
    %v3067 = vadd.f32 %v2989, %v3059
    %v3068 = vadd.f32 %v2990, %v3060
    %v3069 = vadd.f32 %v2991, %v3061
    %v3070 = vadd.f32 %v2992, %v3062
    %v3071 = vadd.f32 %v2993, %v3063
    %v3072 = vadd.f32 %v2994, %v3064
    %3073 = vst [vmem:[#allocation3] sm:$0xff] %v3065
    %3074 = vst [vmem:[#allocation3 + $0x8] sm:$0xff] %v3066
    %3075 = vst [vmem:[#allocation3 + $0x10] sm:$0xff] %v3067
    %3076 = vst [vmem:[#allocation3 + $0x18] sm:$0xff] %v3068
    %3077 = vst [vmem:[#allocation3 + $0x20] sm:$0xff] %v3069
    %3078 = vst [vmem:[#allocation3 + $0x28] sm:$0xff] %v3070
    %3079 = vst [vmem:[#allocation3 + $0x30] sm:$0xff] %v3071
    %3080 = vst [vmem:[#allocation3 + $0x38] sm:$0xff] %v3072
    %v3081 = vld [vmem:[#allocation3] sm:$0xff]
    %v3082 = vld [vmem:[#allocation3 + $0x8] sm:$0xff]
    %v3083 = vld [vmem:[#allocation3 + $0x10] sm:$0xff]
    %v3084 = vld [vmem:[#allocation3 + $0x18] sm:$0xff]
    %v3085 = vld [vmem:[#allocation3 + $0x20] sm:$0xff]
    %v3086 = vld [vmem:[#allocation3 + $0x28] sm:$0xff]
    %v3087 = vld [vmem:[#allocation3 + $0x30] sm:$0xff]
    %v3088 = vld [vmem:[#allocation3 + $0x38] sm:$0xff]
    %v3089 = vld [vmem:[%s15] sm:$0x1]
    %v3090 = vmul.f32 %v1265, %v3089
    %v3092 = vperm.slane %v3090, 0
    %v3094 = vadd.f32 %v3081, %v3092
    %v3095 = vadd.f32 %v3082, %v3092
    %v3096 = vadd.f32 %v3083, %v3092
    %v3097 = vadd.f32 %v3084, %v3092
    %v3098 = vadd.f32 %v3085, %v3092
    %v3099 = vadd.f32 %v3086, %v3092
    %v3100 = vadd.f32 %v3087, %v3092
    %v3101 = vadd.f32 %v3088, %v3092
    %3102 = vst [vmem:[#allocation3] sm:$0xff] %v3094
    %3103 = vst [vmem:[#allocation3 + $0x8] sm:$0xff] %v3095
    %3104 = vst [vmem:[#allocation3 + $0x10] sm:$0xff] %v3096
    %3105 = vst [vmem:[#allocation3 + $0x18] sm:$0xff] %v3097
    %3106 = vst [vmem:[#allocation3 + $0x20] sm:$0xff] %v3098
    %3107 = vst [vmem:[#allocation3 + $0x28] sm:$0xff] %v3099
    %3108 = vst [vmem:[#allocation3 + $0x30] sm:$0xff] %v3100
    %3109 = vst [vmem:[#allocation3 + $0x38] sm:$0xff] %v3101
    %v3110 = vld [vmem:[%s16] sm:$0xff]
    %v3111 = vld [vmem:[%s16 + $0x8] sm:$0xff]
    %v3112 = vld [vmem:[%s16 + $0x10] sm:$0xff]
    %v3113 = vld [vmem:[%s16 + $0x18] sm:$0xff]
    %v3114 = vpack.c.bf16 %v3111, %v3110
    %v3115 = vpack.c.bf16 %v3113, %v3112
    %v3116 = vld [vmem:[%s17] sm:$0xf]
    %v3117 = vld [vmem:[%s18] sm:$0x1]
    %v3119 = vperm.slane %v3117, 0
    %vm3121 = vcmask 64512
    %v3123 = vsel %vm3121, %v3114, 0
    %v3126 = vsel %vm3121, %v3115, 0
    %vm3128 = vcmask 1043456
    %v3130 = vsel %vm3128, %v3116, 0
    %3132 = vmatpush.bf16.msra.mxu0 0
    %3133 = vmatpush.bf16.msra.mxu0 0
    %3134 = vmatpush.bf16.msra.mxu0 0
    %3135 = vmatpush.bf16.msra.mxu0 0
    %3136 = vmatpush.bf16.msra.mxu0 0
    %3137 = vmatpush.bf16.msra.mxu0 0
    %3138 = vmatpush.bf16.msra.mxu0 0
    %3139 = vmatpush.bf16.msra.mxu0 %v3130
    %3140 = vmatmul.bf16.gmra.mxu0 %v3123
    %v3141 = vpop.f32.mrf.mxu0
    %v3142 = vadd.f32 %v3119, %v3141
    %v3143 = vpop.f32.mrf.mxu0
    %v3144 = vadd.f32 %v3119, %v3143
    %3145 = vmatmul.bf16.gmra.mxu0 %v3126
    %v3146 = vpop.f32.mrf.mxu0
    %v3147 = vadd.f32 %v3119, %v3146
    %v3148 = vpop.f32.mrf.mxu0
    %v3149 = vadd.f32 %v3119, %v3148
    %3150 = vdwg.mxu0
    %3151 = vst [vmem:[#allocation5] sm:$0xff] %v3142
    %3152 = vst [vmem:[#allocation5 + $0x8] sm:$0xff] %v3144
    %3153 = vst [vmem:[#allocation5 + $0x10] sm:$0xff] %v3147
    %3154 = vst [vmem:[#allocation5 + $0x18] sm:$0xff] %v3149
    %v3155 = vld [vmem:[%s19] sm:$0xff]
    %v3156 = vld [vmem:[%s19 + $0x8] sm:$0xff]
    %v3157 = vld [vmem:[%s19 + $0x10] sm:$0xff]
    %v3158 = vld [vmem:[%s19 + $0x18] sm:$0xff]
    %v3159 = vld [vmem:[%s19 + $0x20] sm:$0xff]
    %v3160 = vld [vmem:[%s20] sm:$0xff]
    %v3161 = vld [vmem:[%s20 + $0x8] sm:$0xff]
    %v3162 = vld [vmem:[%s20 + $0x10] sm:$0xff]
    %v3163 = vld [vmem:[%s20 + $0x18] sm:$0xff]
    %v3164 = vld [vmem:[%s20 + $0x20] sm:$0xff]
    %v3165 = vsub.f32 %v3155, %v3160
    %v3166 = vsub.f32 %v3156, %v3161
    %v3167 = vsub.f32 %v3157, %v3162
    %v3168 = vsub.f32 %v3158, %v3163
    %v3169 = vsub.f32 %v3159, %v3164
    %v3170 = vmul.f32 %v3165, %v3165
    %v3171 = vmul.f32 %v3166, %v3166
    %v3172 = vmul.f32 %v3167, %v3167
    %v3173 = vmul.f32 %v3168, %v3168
    %v3174 = vmul.f32 %v3169, %v3169
    %vm3175 = vcmask 23552
    %v3176 = vsel %vm3175, %v3170, 0.0
    %3177 = vadd.xlane.f32.xlu0 %v3176
    %v3178 = vpop.xlane.xlu0 %3177
    %v3179 = vsel %vm3175, %v3171, 0.0
    %3180 = vadd.xlane.f32.xlu0 %v3179
    %v3181 = vpop.xlane.xlu0 %3180
    %v3182 = vsel %vm3175, %v3172, 0.0
    %3183 = vadd.xlane.f32.xlu0 %v3182
    %v3184 = vpop.xlane.xlu0 %3183
    %v3185 = vsel %vm3175, %v3173, 0.0
    %3186 = vadd.xlane.f32.xlu0 %v3185
    %v3187 = vpop.xlane.xlu0 %3186
    %v3188 = vsel %vm3175, %v3174, 0.0
    %3189 = vadd.xlane.f32.xlu0 %v3188
    %v3190 = vpop.xlane.xlu0 %3189
    %v3191 = vld [vmem:[%s21] sm:$0xff]
    %v3192 = vld [vmem:[%s21 + $0x8] sm:$0xff]
    %v3193 = vld [vmem:[%s21 + $0x10] sm:$0xff]
    %v3194 = vld [vmem:[%s21 + $0x18] sm:$0xff]
    %v3195 = vld [vmem:[%s21 + $0x20] sm:$0xff]
    %v3196 = vlaneseq
    %v3197 = vand.u32 %v3196, 127
    %3198 = vset.pattern.permute.xlu0 0
    %3199 = vperm.xlu0 %3198, %v3191
    %v3200 = vpop.permute.xlu0 %3199
    %3201 = vset.pattern.permute.xlu0 0
    %3202 = vperm.xlu0 %3201, %v3192
    %v3203 = vpop.permute.xlu0 %3202
    %3204 = vset.pattern.permute.xlu0 0
    %3205 = vperm.xlu0 %3204, %v3193
    %v3206 = vpop.permute.xlu0 %3205
    %3207 = vset.pattern.permute.xlu0 0
    %3208 = vperm.xlu0 %3207, %v3194
    %v3209 = vpop.permute.xlu0 %3208
    %3210 = vset.pattern.permute.xlu0 0
    %3211 = vperm.xlu0 %3210, %v3195
    %v3212 = vpop.permute.xlu0 %3211
    %vm3213 = vcmp.eq.s32.totalorder %v3200, %v3197
    %vm3214 = vcmp.eq.s32.totalorder %v3203, %v3197
    %vm3215 = vcmp.eq.s32.totalorder %v3206, %v3197
    %vm3216 = vcmp.eq.s32.totalorder %v3209, %v3197
    %vm3217 = vcmp.eq.s32.totalorder %v3212, %v3197
    %v3218 = vsel %vm3213, 1, 0
    %v3219 = vsel %vm3214, 1, 0
    %v3220 = vsel %vm3215, 1, 0
    %v3221 = vsel %vm3216, 1, 0
    %v3222 = vsel %vm3217, 1, 0
    %v3223 = vcvt.s32.f32 %v3218
    %v3224 = vcvt.s32.f32 %v3219
    %v3225 = vcvt.s32.f32 %v3220
    %v3226 = vcvt.s32.f32 %v3221
    %v3227 = vcvt.s32.f32 %v3222
    %v3228 = vmul.f32 %v3223, %v3178
    %v3229 = vmul.f32 %v3224, %v3181
    %v3230 = vmul.f32 %v3225, %v3184
    %v3231 = vmul.f32 %v3226, %v3187
    %v3232 = vmul.f32 %v3227, %v3190
    %vm3233 = vcmask 15360
    %v3234 = vsel %vm3233, %v3228, 0.0
    %v3235 = vsel %vm3233, %v3229, 0.0
    %v3236 = vadd.f32 %v3234, %v3235
    %v3237 = vsel %vm3233, %v3230, 0.0
    %v3238 = vadd.f32 %v3236, %v3237
    %v3239 = vsel %vm3233, %v3231, 0.0
    %v3240 = vadd.f32 %v3238, %v3239
    %v3241 = vsel %vm3233, %v3232, 0.0
    %v3242 = vadd.f32 %v3240, %v3241
    %v3243 = vrot.slane %v3242, 4
    %v3244 = vadd.f32 %v3242, %v3243
    %v3245 = vrot.slane %v3244, 2
    %v3246 = vadd.f32 %v3244, %v3245
    %v3247 = vrot.slane %v3246, 1
    %v3248 = vadd.f32 %v3246, %v3247
    %v3249 = vsel %vm3233, %v3223, 0.0
    %v3250 = vsel %vm3233, %v3224, 0.0
    %v3251 = vadd.f32 %v3249, %v3250
    %v3252 = vsel %vm3233, %v3225, 0.0
    %v3253 = vadd.f32 %v3251, %v3252
    %v3254 = vsel %vm3233, %v3226, 0.0
    %v3255 = vadd.f32 %v3253, %v3254
    %v3256 = vsel %vm3233, %v3227, 0.0
    %v3257 = vadd.f32 %v3255, %v3256
    %v3258 = vrot.slane %v3257, 4
    %v3259 = vadd.f32 %v3257, %v3258
    %v3260 = vrot.slane %v3259, 2
    %v3261 = vadd.f32 %v3259, %v3260
    %v3262 = vrot.slane %v3261, 1
    %v3263 = vadd.f32 %v3261, %v3262
    %v3264 = vmax.f32 %v3263, 1.0
    %v3265 = vrcp.pop %v3264
    %v3266 = vmul.f32 %v3264, %v3265
    %v3267 = vsub.f32 1.0, %v3266
    %v3268 = vmul.f32 %v3265, %v3267
    %v3269 = vadd.f32 %v3265, %v3268
    %vm3270 = vweird.f32 %v3264
    %vm3271 = vweird.f32 %v3265
    %vm3272 = vmor %vm3270, %vm3271
    %v3273 = vsel %vm3272, %v3265, %v3269
    %v3274 = vand.u32 2147483647, %v3264
    %vm3275 = vcmp.eq.f32.partialorder %v3274, 8.507059e+37
    %v3276 = vand.u32 %v3264, 2147483648
    %v3277 = vor.u32 1.1754944e-38, %v3276
    %v3278 = vsel %vm3275, %v3277, %v3273
    %v3279 = vmul.f32 %v3248, %v3278
    %v3280 = vrsqrt.pop %v3279
    %v3281 = vmul.f32 %v3280, %v3279
    %v3282 = vmul.f32 %v3281, %v3280
    %v3283 = vmul.f32 0.5, %v3282
    %v3284 = vsub.f32 1.5, %v3283
    %v3285 = vmul.f32 %v3280, %v3284
    %v3286 = vmul.f32 %v3279, %v3285
    %vm3287 = vcmp.eq.f32.partialorder %v3279, inf
    %v3288 = vsel %vm3287, %v3279, %v3286
    %vm3289 = vcmp.eq.f32.partialorder %v3279, 0.0
    %v3290 = vand.u32 %v3279, 2147483648
    %v3291 = vsel %vm3289, %v3290, %v3288
    %vm3292 = vcmask 8192
    %3293 = vst.msk [vmem:[%s24] sm:$0x1] %vm3292, %v3291
    // Predicated region
    $region90: #{karma_loop_forward.1} parent=1 // pred_check
      _
    $region91: #{karma_loop_forward.1} parent=1 // pred_check_branch
      %3295 = sbr.rel (0) target = $region93
    $region92: #{karma_loop_forward.1} parent=1 // pred_region
      %3297 = vsyncadd [#allocation4], 0
      %s3298 = sshll.u32 [#allocation3], 4
      %s3299 = int_to_ptr.vmem [resolvable:$true] %s3298
      %s3300 = sshll.u32 %s22, 4
      %s3301 = int_to_ptr.hbm [resolvable:$true] %s3300
      %3306 = dma.vmem_to_hbm [thread:$0]  %s3299, 1024, %s3301, [#allocation4], 128, 128, 8
    $region93: #{karma_loop_forward.1} parent=1 // pred_fallthru
      _
    // Predicated region
    $region94: #{karma_loop_forward.1} parent=1 // pred_check
      _
    $region95: #{karma_loop_forward.1} parent=1 // pred_check_branch
      %3308 = sbr.rel (0) target = $region97
    $region96: #{karma_loop_forward.1} parent=1 // pred_region
      %3310 = vsyncadd [#allocation6], 0
      %s3311 = sshll.u32 [#allocation5], 4
      %s3312 = int_to_ptr.vmem [resolvable:$true] %s3311
      %s3313 = sshll.u32 %s23, 4
      %s3314 = int_to_ptr.hbm [resolvable:$true] %s3313
      %3319 = dma.vmem_to_hbm [thread:$0]  %s3312, 512, %s3314, [#allocation6], 128, 128, 8
    $region97: #{karma_loop_forward.1} parent=1 // pred_fallthru
      _
    // Predicated region
    $region98: #{karma_loop_forward.1} parent=1 // pred_check
      _
    $region99: #{karma_loop_forward.1} parent=1 // pred_check_branch
      %3321 = sbr.rel (0) target = $region101
    $region100: #{karma_loop_forward.1} parent=1 // pred_region
      _
    $region101: #{karma_loop_forward.1} parent=1 // pred_fallthru
      _
    // Predicated region
    $region102: #{karma_loop_forward.1} parent=1 // pred_check
      _
    $region103: #{karma_loop_forward.1} parent=1 // pred_check_branch
      %3323 = sbr.rel (0) target = $region105
    $region104: #{karma_loop_forward.1} parent=1 // pred_region
      %3325 = dma.done [#allocation4], 1024
    $region105: #{karma_loop_forward.1} parent=1 // pred_fallthru
      _
    // Predicated region
    $region106: #{karma_loop_forward.1} parent=1 // pred_check
      _
    $region107: #{karma_loop_forward.1} parent=1 // pred_check_branch
      %3327 = sbr.rel (0) target = $region109
    $region108: #{karma_loop_forward.1} parent=1 // pred_region
      %3329 = dma.done [#allocation6], 512
    $region109: #{karma_loop_forward.1} parent=1 // pred_fallthru
      _
    // Predicated region
    $region110: #{karma_loop_forward.1} parent=1 // pred_check
      _
    $region111: #{karma_loop_forward.1} parent=1 // pred_check_branch
      %3331 = sbr.rel (0) target = $region113
    $region112: #{karma_loop_forward.1} parent=1 // pred_region
      _
    $region113: #{karma_loop_forward.1} parent=1 // pred_fallthru
      _
    %3332 = vsyncpa [#allocation4], 1
    %3333 = vsyncpa [#allocation6], 1

</llo_original>
